<compile_context>
chip_gen: v6e
topology: v6e:2x2x1
jax: 0.10.0
libtpu: 0.0.40
codegen_flags: <defaults>
</compile_context>

<pallas_src>
import functools

import numpy as np

import jax
import jax.numpy as jnp
from jax import lax
from jax.experimental import pallas as pl
from jax.experimental.pallas import tpu as pltpu

BN_EPS = 1e-5
C = 16    # working channel width (conv1's 3 input channels are zero-padded to 16)
KH = 3    # 3x3 kernels


# ------------------------------ kernel ---------------------------------------

def _resnet_kernel(x_ref, w_ref, bn_ref, out_ref, xpad_ref, *, N, H, W):
    """Whole ResNet20_split_05 forward, VMEM resident, lane-dense layout.

    x_ref    : (N*H, W*C)        bf16  input slab (row = h*N+n, lane = w*C+c)
    w_ref    : (4, 3, W*C, W*C)  bf16  banded conv weights (layer, dh, ...)
    bn_ref   : (8, W*C)          f32   [g0,b0,g1,b1,...] pre-broadcast to lanes
    out_ref  : (N*H, W*C)        f32   output slab
    xpad_ref : ((H+2)*N, W*C)    bf16  H-padded activation scratch
    """
    NH = N * H
    WC = W * C
    inv_nhw = 1.0 / float(N * H * W)

    # Zero the slab once; the two H-padding rows per image stay zero for every
    # layer (in-kernel "padding=1" along H; padding along W lives in the
    # banded weights).
    xpad_ref[...] = jnp.zeros(xpad_ref.shape, xpad_ref.dtype)
    xpad_ref[N:N + NH, :] = x_ref[...]

    def channel_sum_lanes(v):
        # (1, WC) -> (1, WC): after log2(W) XLU lane rotations every lane
        # holds the total of its channel (lane % C) over all w-blocks -- this
        # is simultaneously the per-channel reduction and the broadcast back
        # to the 256-lane layout.  Exact f32.
        s = C
        while s < WC:
            v = v + pltpu.roll(v, shift=s, axis=1)
            s *= 2
        return v

    def conv_bn(layer):
        # 3x3 conv == 3 accumulating (NH, WC) @ (WC, WC) matmuls, one per dh.
        acc = jnp.zeros((NH, WC), jnp.float32)
        for dh in range(KH):
            xs = xpad_ref[dh * N:dh * N + NH, :]               # (NH, WC) bf16
            acc = acc + jnp.dot(xs, w_ref[layer, dh],
                                preferred_element_type=jnp.float32)
        # Training-mode BatchNorm2d, two-pass batch statistics, all f32.
        g = bn_ref[2 * layer:2 * layer + 1, :]                 # (1, WC)
        b = bn_ref[2 * layer + 1:2 * layer + 2, :]             # (1, WC)
        mean = channel_sum_lanes(jnp.sum(acc, axis=0, keepdims=True)) * inv_nhw
        d = acc - mean
        var = channel_sum_lanes(jnp.sum(d * d, axis=0, keepdims=True)) * inv_nhw
        return d * (g * lax.rsqrt(var + BN_EPS)) + b           # (NH, WC) f32

    def write_back(y):
        xpad_ref[N:N + NH, :] = y.astype(xpad_ref.dtype)

    # --- stem: conv1/bn1/relu, conv2/bn2/relu ---
    y = jnp.maximum(conv_bn(0), 0.0)
    write_back(y)
    y = jnp.maximum(conv_bn(1), 0.0)
    ident = y                       # block1 identity (f32, stays in VMEM)
    write_back(y)

    # --- block1: BasicBlock(16, 16), identity shortcut ---
    y = jnp.maximum(conv_bn(2), 0.0)
    write_back(y)
    out_ref[...] = jnp.maximum(conv_bn(3) + ident, 0.0)


# ------------------------------ wrapper --------------------------------------

def resnet20_split_05_forward(kparams, x_nchw):
    """Matches ResNet20_split_05.forward: returns (features_NCHW, ee_outs=[])."""
    N, c_in, H, W = x_nchw.shape
    assert W & (W - 1) == 0, "W must be a power of two for the roll-tree BN"

    # NCHW -> lane-dense slab (row = h*N+n, lane = w*C+c), channels padded to 16.
    xs = jnp.transpose(x_nchw, (2, 0, 3, 1))                    # (H, N, W, c_in)
    xs = jnp.pad(xs, ((0, 0), (0, 0), (0, 0), (0, C - c_in)))
    x_slab = xs.reshape(H * N, W * C).astype(jnp.bfloat16)

    kernel = functools.partial(_resnet_kernel, N=N, H=H, W=W)
    vmem = pl.BlockSpec(memory_space=pltpu.MemorySpace.VMEM)
    out_slab = pl.pallas_call(
        kernel,
        out_shape=jax.ShapeDtypeStruct((N * H, W * C), jnp.float32),
        in_specs=[vmem, vmem, vmem],
        out_specs=vmem,
        scratch_shapes=[
            pltpu.VMEM(((H + 2) * N, W * C), jnp.bfloat16),     # padded activations
        ],
    )(x_slab, kparams["wband"], kparams["bn"])

    # slab -> NCHW (single small XLA fusion; kernel output is lane-dense)
    out = jnp.transpose(out_slab.reshape(H, N, W, C), (1, 3, 0, 2))
    ee_outs = []
    return out, ee_outs


# ----------------------------- parameters ------------------------------------

def _conv_w(key, cin, cout):
    # PyTorch layout is (Cout, Cin, 3, 3); we keep HWIO = (3, 3, Cin, Cout).
    fan_in = cin * 9
    return jax.random.normal(key, (3, 3, cin, cout), jnp.float32) * (2.0 / fan_in) ** 0.5


def init_params(key):
    ks = jax.random.split(key, 12)
    p = {}
    p["conv1_w"] = _conv_w(ks[0], 3, 16)
    p["bn1_g"] = 1.0 + 0.1 * jax.random.normal(ks[1], (16,), jnp.float32)
    p["bn1_b"] = 0.1 * jax.random.normal(ks[2], (16,), jnp.float32)
    p["conv2_w"] = _conv_w(ks[3], 16, 16)
    p["bn2_g"] = 1.0 + 0.1 * jax.random.normal(ks[4], (16,), jnp.float32)
    p["bn2_b"] = 0.1 * jax.random.normal(ks[5], (16,), jnp.float32)
    p["b1_conv1_w"] = _conv_w(ks[6], 16, 16)
    p["b1_bn1_g"] = 1.0 + 0.1 * jax.random.normal(ks[7], (16,), jnp.float32)
    p["b1_bn1_b"] = 0.1 * jax.random.normal(ks[8], (16,), jnp.float32)
    p["b1_conv2_w"] = _conv_w(ks[9], 16, 16)
    p["b1_bn2_g"] = 1.0 + 0.1 * jax.random.normal(ks[10], (16,), jnp.float32)
    p["b1_bn2_b"] = 0.1 * jax.random.normal(ks[11], (16,), jnp.float32)
    return p


def _band_weight(w_hwio, W=16):
    """(3,3,Cin,Cout) HWIO conv weight -> (3, W*C, W*C) banded matrices that
    fold the dw taps and the zero padding along W into one matmul per dh."""
    w = np.asarray(w_hwio, np.float32)
    cin = w.shape[2]
    if cin < C:   # conv1: zero-pad 3 input channels to 16 (exact: rows are 0)
        w = np.pad(w, ((0, 0), (0, 0), (0, C - cin), (0, 0)))
    band = np.zeros((KH, W * C, W * C), np.float32)
    for dh in range(KH):
        for dw in range(KH):
            for wo in range(W):
                wi = wo + dw - 1
                if 0 <= wi < W:
                    band[dh, wi * C:(wi + 1) * C, wo * C:(wo + 1) * C] = w[dh, dw]
    return band


def prepare_params(p, W=16):
    """Pack PyTorch-style params into the kernel layout (done once, offline)."""
    wband = np.stack([
        _band_weight(p["conv1_w"], W),
        _band_weight(p["conv2_w"], W),
        _band_weight(p["b1_conv1_w"], W),
        _band_weight(p["b1_conv2_w"], W),
    ])                                                          # (4, 3, W*C, W*C)
    bn = np.stack([
        np.tile(np.asarray(v, np.float32), W)                   # lane w*C+c -> v[c]
        for v in (p["bn1_g"], p["bn1_b"], p["bn2_g"], p["bn2_b"],
                  p["b1_bn1_g"], p["b1_bn1_b"], p["b1_bn2_g"], p["b1_bn2_b"])
    ])                                                          # (8, W*C)
    return {"wband": jnp.asarray(wband, jnp.bfloat16),
            "bn": jnp.asarray(bn, jnp.float32)}


# ------------------------- pure-JAX reference --------------------------------

def _ref_conv_bn_relu(x, w, g, b, residual=None):
    # Same numerics as the kernel: bf16 conv operands, f32 accumulation,
    # training-mode (biased) two-pass batch statistics in f32.
    y = lax.conv_general_dilated(
        x.astype(jnp.bfloat16), w.astype(jnp.bfloat16),
        window_strides=(1, 1), padding="SAME",
        dimension_numbers=("NHWC", "HWIO", "NHWC"),
        preferred_element_type=jnp.float32)
    mean = jnp.mean(y, axis=(0, 1, 2), keepdims=True)
    var = jnp.mean((y - mean) ** 2, axis=(0, 1, 2), keepdims=True)
    y = (y - mean) * lax.rsqrt(var + BN_EPS) * g + b
    if residual is not None:
        y = y + residual
    return jnp.maximum(y, 0.0)


def reference_forward(p, x_nchw):
    x = jnp.transpose(x_nchw, (0, 2, 3, 1))
    x = _ref_conv_bn_relu(x, p["conv1_w"], p["bn1_g"], p["bn1_b"])
    x = _ref_conv_bn_relu(x, p["conv2_w"], p["bn2_g"], p["bn2_b"])
    identity = x
    y = _ref_conv_bn_relu(x, p["b1_conv1_w"], p["b1_bn1_g"], p["b1_bn1_b"])
    y = _ref_conv_bn_relu(y, p["b1_conv2_w"], p["b1_bn2_g"], p["b1_bn2_b"],
                          residual=identity)
    return jnp.transpose(y, (0, 3, 1, 2))


# -------------------------------- main ----------------------------------------

if __name__ == "__main__":
    key = jax.random.PRNGKey(0)
    k_params, k_x = jax.random.split(key)

    params = init_params(k_params)
    kparams = prepare_params(params)
    # conv1 expects 3 input channels (RGB); small spatial 16x16, batch 2.
    x = jax.random.normal(k_x, (2, 3, 16, 16), jnp.float32)

    fwd = jax.jit(resnet20_split_05_forward)
    out, ee_outs = fwd(kparams, x)
    out = jax.block_until_ready(out)

    ref = jax.block_until_ready(reference_forward(params, x))
    assert out.shape == (2, 16, 16, 16), out.shape
    assert ee_outs == []
    max_err = float(jnp.max(jnp.abs(out - ref)))
    assert jnp.allclose(out, ref, rtol=1e-2, atol=1e-2), max_err

    print("KERNEL_OK")
</pallas_src>

<mosaic_0001>
module attributes {stable_mosaic.version = 11 : i64} {
  func.func @_resnet_kernel(%arg0: memref<32x256xbf16, #tpu.memory_space<vmem>>, %arg1: memref<4x3x256x256xbf16, #tpu.memory_space<vmem>>, %arg2: memref<8x256xf32, #tpu.memory_space<vmem>>, %arg3: memref<32x256xf32, #tpu.memory_space<vmem>>, %arg4: memref<36x256xbf16, #tpu.memory_space<vmem>>) attributes {dimension_semantics = [], scalar_prefetch = 0 : i64, scratch_operands = 1 : i64, tpu.core_type = #tpu.core_type<tc>} {
    %cst = arith.constant 0.000000e+00 : bf16
    %0 = vector.broadcast %cst : bf16 to vector<36x256xbf16>
    %c0 = arith.constant 0 : index
    %c0_0 = arith.constant 0 : index
    %1 = vector.load %arg4[%c0, %c0_0] : memref<36x256xbf16, #tpu.memory_space<vmem>>, vector<36x256xbf16>
    tpu.vector_store %arg4[%c0, %c0_0], %0 {strides = array<i32>} : memref<36x256xbf16, #tpu.memory_space<vmem>>, vector<36x256xbf16>,
    %c0_1 = arith.constant 0 : index
    %c0_2 = arith.constant 0 : index
    %2 = vector.load %arg0[%c0_1, %c0_2] : memref<32x256xbf16, #tpu.memory_space<vmem>>, vector<32x256xbf16>
    %c2 = arith.constant 2 : index
    %c0_3 = arith.constant 0 : index
    %3 = vector.load %arg4[%c2, %c0_3] : memref<36x256xbf16, #tpu.memory_space<vmem>>, vector<32x256xbf16>
    tpu.vector_store %arg4[%c2, %c0_3], %2 {strides = array<i32>} : memref<36x256xbf16, #tpu.memory_space<vmem>>, vector<32x256xbf16>,
    %cst_4 = arith.constant 0.000000e+00 : f32
    %4 = vector.broadcast %cst_4 : f32 to vector<32x256xf32>
    %c0_5 = arith.constant 0 : index
    %c0_6 = arith.constant 0 : index
    %5 = vector.load %arg4[%c0_5, %c0_6] : memref<36x256xbf16, #tpu.memory_space<vmem>>, vector<32x256xbf16>
    %c0_7 = arith.constant 0 : index
    %c0_8 = arith.constant 0 : index
    %c0_9 = arith.constant 0 : index
    %c0_10 = arith.constant 0 : index
    %6 = vector.load %arg1[%c0_7, %c0_8, %c0_9, %c0_10] : memref<4x3x256x256xbf16, #tpu.memory_space<vmem>>, vector<1x1x256x256xbf16>
    %7 = vector.shape_cast %6 : vector<1x1x256x256xbf16> to vector<256x256xbf16>
    %cst_11 = arith.constant dense<0.000000e+00> : vector<32x256xf32>
    %8 = tpu.matmul %5, %7, %cst_11 {dimension_numbers = #tpu.dot_dimension_numbers<[1], [0], [0], [1], [0, 0, 1, 1], [], []>} : vector<32x256xbf16>, vector<256x256xbf16>, vector<32x256xf32> -> vector<32x256xf32>
    %9 = arith.addf %4, %8 : vector<32x256xf32>
    %c2_12 = arith.constant 2 : index
    %c0_13 = arith.constant 0 : index
    %10 = vector.load %arg4[%c2_12, %c0_13] : memref<36x256xbf16, #tpu.memory_space<vmem>>, vector<32x256xbf16>
    %c0_14 = arith.constant 0 : index
    %c1 = arith.constant 1 : index
    %c0_15 = arith.constant 0 : index
    %c0_16 = arith.constant 0 : index
    %11 = vector.load %arg1[%c0_14, %c1, %c0_15, %c0_16] : memref<4x3x256x256xbf16, #tpu.memory_space<vmem>>, vector<1x1x256x256xbf16>
    %12 = vector.shape_cast %11 : vector<1x1x256x256xbf16> to vector<256x256xbf16>
    %cst_17 = arith.constant dense<0.000000e+00> : vector<32x256xf32>
    %13 = tpu.matmul %10, %12, %cst_17 {dimension_numbers = #tpu.dot_dimension_numbers<[1], [0], [0], [1], [0, 0, 1, 1], [], []>} : vector<32x256xbf16>, vector<256x256xbf16>, vector<32x256xf32> -> vector<32x256xf32>
    %14 = arith.addf %9, %13 : vector<32x256xf32>
    %c4 = arith.constant 4 : index
    %c0_18 = arith.constant 0 : index
    %15 = vector.load %arg4[%c4, %c0_18] : memref<36x256xbf16, #tpu.memory_space<vmem>>, vector<32x256xbf16>
    %c0_19 = arith.constant 0 : index
    %c2_20 = arith.constant 2 : index
    %c0_21 = arith.constant 0 : index
    %c0_22 = arith.constant 0 : index
    %16 = vector.load %arg1[%c0_19, %c2_20, %c0_21, %c0_22] : memref<4x3x256x256xbf16, #tpu.memory_space<vmem>>, vector<1x1x256x256xbf16>
    %17 = vector.shape_cast %16 : vector<1x1x256x256xbf16> to vector<256x256xbf16>
    %cst_23 = arith.constant dense<0.000000e+00> : vector<32x256xf32>
    %18 = tpu.matmul %15, %17, %cst_23 {dimension_numbers = #tpu.dot_dimension_numbers<[1], [0], [0], [1], [0, 0, 1, 1], [], []>} : vector<32x256xbf16>, vector<256x256xbf16>, vector<32x256xf32> -> vector<32x256xf32>
    %19 = arith.addf %14, %18 : vector<32x256xf32>
    %c0_24 = arith.constant 0 : index
    %c0_25 = arith.constant 0 : index
    %20 = vector.load %arg2[%c0_24, %c0_25] : memref<8x256xf32, #tpu.memory_space<vmem>>, vector<1x256xf32>
    %c1_26 = arith.constant 1 : index
    %c0_27 = arith.constant 0 : index
    %21 = vector.load %arg2[%c1_26, %c0_27] : memref<8x256xf32, #tpu.memory_space<vmem>>, vector<1x256xf32>
    %cst_28 = arith.constant dense<0.000000e+00> : vector<256xf32>
    %22 = vector.multi_reduction <add>, %19, %cst_28 [0] : vector<32x256xf32> to vector<256xf32>
    %23 = vector.shape_cast %22 : vector<256xf32> to vector<1x256xf32>
    %c16_i32 = arith.constant 16 : i32
    %24 = tpu.dynamic_rotate %23 by %c16_i32 dim 1 : vector<1x256xf32>, i32 -> vector<1x256xf32>
    %25 = arith.addf %23, %24 : vector<1x256xf32>
    %c32_i32 = arith.constant 32 : i32
    %26 = tpu.dynamic_rotate %25 by %c32_i32 dim 1 : vector<1x256xf32>, i32 -> vector<1x256xf32>
    %27 = arith.addf %25, %26 : vector<1x256xf32>
    %c64_i32 = arith.constant 64 : i32
    %28 = tpu.dynamic_rotate %27 by %c64_i32 dim 1 : vector<1x256xf32>, i32 -> vector<1x256xf32>
    %29 = arith.addf %27, %28 : vector<1x256xf32>
    %c128_i32 = arith.constant 128 : i32
    %30 = tpu.dynamic_rotate %29 by %c128_i32 dim 1 : vector<1x256xf32>, i32 -> vector<1x256xf32>
    %31 = arith.addf %29, %30 : vector<1x256xf32>
    %cst_29 = arith.constant 0.001953125 : f32
    %32 = vector.broadcast %cst_29 : f32 to vector<1x256xf32>
    %33 = arith.mulf %31, %32 : vector<1x256xf32>
    %34 = vector.broadcast %33 : vector<1x256xf32> to vector<32x256xf32>
    %35 = arith.subf %19, %34 : vector<32x256xf32>
    %36 = arith.mulf %35, %35 : vector<32x256xf32>
    %cst_30 = arith.constant dense<0.000000e+00> : vector<256xf32>
    %37 = vector.multi_reduction <add>, %36, %cst_30 [0] : vector<32x256xf32> to vector<256xf32>
    %38 = vector.shape_cast %37 : vector<256xf32> to vector<1x256xf32>
    %c16_i32_31 = arith.constant 16 : i32
    %39 = tpu.dynamic_rotate %38 by %c16_i32_31 dim 1 : vector<1x256xf32>, i32 -> vector<1x256xf32>
    %40 = arith.addf %38, %39 : vector<1x256xf32>
    %c32_i32_32 = arith.constant 32 : i32
    %41 = tpu.dynamic_rotate %40 by %c32_i32_32 dim 1 : vector<1x256xf32>, i32 -> vector<1x256xf32>
    %42 = arith.addf %40, %41 : vector<1x256xf32>
    %c64_i32_33 = arith.constant 64 : i32
    %43 = tpu.dynamic_rotate %42 by %c64_i32_33 dim 1 : vector<1x256xf32>, i32 -> vector<1x256xf32>
    %44 = arith.addf %42, %43 : vector<1x256xf32>
    %c128_i32_34 = arith.constant 128 : i32
    %45 = tpu.dynamic_rotate %44 by %c128_i32_34 dim 1 : vector<1x256xf32>, i32 -> vector<1x256xf32>
    %46 = arith.addf %44, %45 : vector<1x256xf32>
    %cst_35 = arith.constant 0.001953125 : f32
    %47 = vector.broadcast %cst_35 : f32 to vector<1x256xf32>
    %48 = arith.mulf %46, %47 : vector<1x256xf32>
    %cst_36 = arith.constant 9.99999974E-6 : f32
    %49 = vector.broadcast %cst_36 : f32 to vector<1x256xf32>
    %50 = arith.addf %48, %49 : vector<1x256xf32>
    %51 = math.rsqrt %50 : vector<1x256xf32>
    %52 = arith.mulf %20, %51 : vector<1x256xf32>
    %53 = vector.broadcast %52 : vector<1x256xf32> to vector<32x256xf32>
    %54 = arith.mulf %35, %53 : vector<32x256xf32>
    %55 = vector.broadcast %21 : vector<1x256xf32> to vector<32x256xf32>
    %56 = arith.addf %54, %55 : vector<32x256xf32>
    %cst_37 = arith.constant 0.000000e+00 : f32
    %57 = vector.broadcast %cst_37 : f32 to vector<32x256xf32>
    %58 = arith.maximumf %56, %57 : vector<32x256xf32>
    %59 = arith.truncf %58 : vector<32x256xf32> to vector<32x256xbf16>
    %c2_38 = arith.constant 2 : index
    %c0_39 = arith.constant 0 : index
    %60 = vector.load %arg4[%c2_38, %c0_39] : memref<36x256xbf16, #tpu.memory_space<vmem>>, vector<32x256xbf16>
    tpu.vector_store %arg4[%c2_38, %c0_39], %59 {strides = array<i32>} : memref<36x256xbf16, #tpu.memory_space<vmem>>, vector<32x256xbf16>,
    %cst_40 = arith.constant 0.000000e+00 : f32
    %61 = vector.broadcast %cst_40 : f32 to vector<32x256xf32>
    %c0_41 = arith.constant 0 : index
    %c0_42 = arith.constant 0 : index
    %62 = vector.load %arg4[%c0_41, %c0_42] : memref<36x256xbf16, #tpu.memory_space<vmem>>, vector<32x256xbf16>
    %c1_43 = arith.constant 1 : index
    %c0_44 = arith.constant 0 : index
    %c0_45 = arith.constant 0 : index
    %c0_46 = arith.constant 0 : index
    %63 = vector.load %arg1[%c1_43, %c0_44, %c0_45, %c0_46] : memref<4x3x256x256xbf16, #tpu.memory_space<vmem>>, vector<1x1x256x256xbf16>
    %64 = vector.shape_cast %63 : vector<1x1x256x256xbf16> to vector<256x256xbf16>
    %cst_47 = arith.constant dense<0.000000e+00> : vector<32x256xf32>
    %65 = tpu.matmul %62, %64, %cst_47 {dimension_numbers = #tpu.dot_dimension_numbers<[1], [0], [0], [1], [0, 0, 1, 1], [], []>} : vector<32x256xbf16>, vector<256x256xbf16>, vector<32x256xf32> -> vector<32x256xf32>
    %66 = arith.addf %61, %65 : vector<32x256xf32>
    %c2_48 = arith.constant 2 : index
    %c0_49 = arith.constant 0 : index
    %67 = vector.load %arg4[%c2_48, %c0_49] : memref<36x256xbf16, #tpu.memory_space<vmem>>, vector<32x256xbf16>
    %c1_50 = arith.constant 1 : index
    %c1_51 = arith.constant 1 : index
    %c0_52 = arith.constant 0 : index
    %c0_53 = arith.constant 0 : index
    %68 = vector.load %arg1[%c1_50, %c1_51, %c0_52, %c0_53] : memref<4x3x256x256xbf16, #tpu.memory_space<vmem>>, vector<1x1x256x256xbf16>
    %69 = vector.shape_cast %68 : vector<1x1x256x256xbf16> to vector<256x256xbf16>
    %cst_54 = arith.constant dense<0.000000e+00> : vector<32x256xf32>
    %70 = tpu.matmul %67, %69, %cst_54 {dimension_numbers = #tpu.dot_dimension_numbers<[1], [0], [0], [1], [0, 0, 1, 1], [], []>} : vector<32x256xbf16>, vector<256x256xbf16>, vector<32x256xf32> -> vector<32x256xf32>
    %71 = arith.addf %66, %70 : vector<32x256xf32>
    %c4_55 = arith.constant 4 : index
    %c0_56 = arith.constant 0 : index
    %72 = vector.load %arg4[%c4_55, %c0_56] : memref<36x256xbf16, #tpu.memory_space<vmem>>, vector<32x256xbf16>
    %c1_57 = arith.constant 1 : index
    %c2_58 = arith.constant 2 : index
    %c0_59 = arith.constant 0 : index
    %c0_60 = arith.constant 0 : index
    %73 = vector.load %arg1[%c1_57, %c2_58, %c0_59, %c0_60] : memref<4x3x256x256xbf16, #tpu.memory_space<vmem>>, vector<1x1x256x256xbf16>
    %74 = vector.shape_cast %73 : vector<1x1x256x256xbf16> to vector<256x256xbf16>
    %cst_61 = arith.constant dense<0.000000e+00> : vector<32x256xf32>
    %75 = tpu.matmul %72, %74, %cst_61 {dimension_numbers = #tpu.dot_dimension_numbers<[1], [0], [0], [1], [0, 0, 1, 1], [], []>} : vector<32x256xbf16>, vector<256x256xbf16>, vector<32x256xf32> -> vector<32x256xf32>
    %76 = arith.addf %71, %75 : vector<32x256xf32>
    %c2_62 = arith.constant 2 : index
    %c0_63 = arith.constant 0 : index
    %77 = vector.load %arg2[%c2_62, %c0_63] : memref<8x256xf32, #tpu.memory_space<vmem>>, vector<1x256xf32>
    %c3 = arith.constant 3 : index
    %c0_64 = arith.constant 0 : index
    %78 = vector.load %arg2[%c3, %c0_64] : memref<8x256xf32, #tpu.memory_space<vmem>>, vector<1x256xf32>
    %cst_65 = arith.constant dense<0.000000e+00> : vector<256xf32>
    %79 = vector.multi_reduction <add>, %76, %cst_65 [0] : vector<32x256xf32> to vector<256xf32>
    %80 = vector.shape_cast %79 : vector<256xf32> to vector<1x256xf32>
    %c16_i32_66 = arith.constant 16 : i32
    %81 = tpu.dynamic_rotate %80 by %c16_i32_66 dim 1 : vector<1x256xf32>, i32 -> vector<1x256xf32>
    %82 = arith.addf %80, %81 : vector<1x256xf32>
    %c32_i32_67 = arith.constant 32 : i32
    %83 = tpu.dynamic_rotate %82 by %c32_i32_67 dim 1 : vector<1x256xf32>, i32 -> vector<1x256xf32>
    %84 = arith.addf %82, %83 : vector<1x256xf32>
    %c64_i32_68 = arith.constant 64 : i32
    %85 = tpu.dynamic_rotate %84 by %c64_i32_68 dim 1 : vector<1x256xf32>, i32 -> vector<1x256xf32>
    %86 = arith.addf %84, %85 : vector<1x256xf32>
    %c128_i32_69 = arith.constant 128 : i32
    %87 = tpu.dynamic_rotate %86 by %c128_i32_69 dim 1 : vector<1x256xf32>, i32 -> vector<1x256xf32>
    %88 = arith.addf %86, %87 : vector<1x256xf32>
    %cst_70 = arith.constant 0.001953125 : f32
    %89 = vector.broadcast %cst_70 : f32 to vector<1x256xf32>
    %90 = arith.mulf %88, %89 : vector<1x256xf32>
    %91 = vector.broadcast %90 : vector<1x256xf32> to vector<32x256xf32>
    %92 = arith.subf %76, %91 : vector<32x256xf32>
    %93 = arith.mulf %92, %92 : vector<32x256xf32>
    %cst_71 = arith.constant dense<0.000000e+00> : vector<256xf32>
    %94 = vector.multi_reduction <add>, %93, %cst_71 [0] : vector<32x256xf32> to vector<256xf32>
    %95 = vector.shape_cast %94 : vector<256xf32> to vector<1x256xf32>
    %c16_i32_72 = arith.constant 16 : i32
    %96 = tpu.dynamic_rotate %95 by %c16_i32_72 dim 1 : vector<1x256xf32>, i32 -> vector<1x256xf32>
    %97 = arith.addf %95, %96 : vector<1x256xf32>
    %c32_i32_73 = arith.constant 32 : i32
    %98 = tpu.dynamic_rotate %97 by %c32_i32_73 dim 1 : vector<1x256xf32>, i32 -> vector<1x256xf32>
    %99 = arith.addf %97, %98 : vector<1x256xf32>
    %c64_i32_74 = arith.constant 64 : i32
    %100 = tpu.dynamic_rotate %99 by %c64_i32_74 dim 1 : vector<1x256xf32>, i32 -> vector<1x256xf32>
    %101 = arith.addf %99, %100 : vector<1x256xf32>
    %c128_i32_75 = arith.constant 128 : i32
    %102 = tpu.dynamic_rotate %101 by %c128_i32_75 dim 1 : vector<1x256xf32>, i32 -> vector<1x256xf32>
    %103 = arith.addf %101, %102 : vector<1x256xf32>
    %cst_76 = arith.constant 0.001953125 : f32
    %104 = vector.broadcast %cst_76 : f32 to vector<1x256xf32>
    %105 = arith.mulf %103, %104 : vector<1x256xf32>
    %cst_77 = arith.constant 9.99999974E-6 : f32
    %106 = vector.broadcast %cst_77 : f32 to vector<1x256xf32>
    %107 = arith.addf %105, %106 : vector<1x256xf32>
    %108 = math.rsqrt %107 : vector<1x256xf32>
    %109 = arith.mulf %77, %108 : vector<1x256xf32>
    %110 = vector.broadcast %109 : vector<1x256xf32> to vector<32x256xf32>
    %111 = arith.mulf %92, %110 : vector<32x256xf32>
    %112 = vector.broadcast %78 : vector<1x256xf32> to vector<32x256xf32>
    %113 = arith.addf %111, %112 : vector<32x256xf32>
    %cst_78 = arith.constant 0.000000e+00 : f32
    %114 = vector.broadcast %cst_78 : f32 to vector<32x256xf32>
    %115 = arith.maximumf %113, %114 : vector<32x256xf32>
    %116 = arith.truncf %115 : vector<32x256xf32> to vector<32x256xbf16>
    %c2_79 = arith.constant 2 : index
    %c0_80 = arith.constant 0 : index
    %117 = vector.load %arg4[%c2_79, %c0_80] : memref<36x256xbf16, #tpu.memory_space<vmem>>, vector<32x256xbf16>
    tpu.vector_store %arg4[%c2_79, %c0_80], %116 {strides = array<i32>} : memref<36x256xbf16, #tpu.memory_space<vmem>>, vector<32x256xbf16>,
    %cst_81 = arith.constant 0.000000e+00 : f32
    %118 = vector.broadcast %cst_81 : f32 to vector<32x256xf32>
    %c0_82 = arith.constant 0 : index
    %c0_83 = arith.constant 0 : index
    %119 = vector.load %arg4[%c0_82, %c0_83] : memref<36x256xbf16, #tpu.memory_space<vmem>>, vector<32x256xbf16>
    %c2_84 = arith.constant 2 : index
    %c0_85 = arith.constant 0 : index
    %c0_86 = arith.constant 0 : index
    %c0_87 = arith.constant 0 : index
    %120 = vector.load %arg1[%c2_84, %c0_85, %c0_86, %c0_87] : memref<4x3x256x256xbf16, #tpu.memory_space<vmem>>, vector<1x1x256x256xbf16>
    %121 = vector.shape_cast %120 : vector<1x1x256x256xbf16> to vector<256x256xbf16>
    %cst_88 = arith.constant dense<0.000000e+00> : vector<32x256xf32>
    %122 = tpu.matmul %119, %121, %cst_88 {dimension_numbers = #tpu.dot_dimension_numbers<[1], [0], [0], [1], [0, 0, 1, 1], [], []>} : vector<32x256xbf16>, vector<256x256xbf16>, vector<32x256xf32> -> vector<32x256xf32>
    %123 = arith.addf %118, %122 : vector<32x256xf32>
    %c2_89 = arith.constant 2 : index
    %c0_90 = arith.constant 0 : index
    %124 = vector.load %arg4[%c2_89, %c0_90] : memref<36x256xbf16, #tpu.memory_space<vmem>>, vector<32x256xbf16>
    %c2_91 = arith.constant 2 : index
    %c1_92 = arith.constant 1 : index
    %c0_93 = arith.constant 0 : index
    %c0_94 = arith.constant 0 : index
    %125 = vector.load %arg1[%c2_91, %c1_92, %c0_93, %c0_94] : memref<4x3x256x256xbf16, #tpu.memory_space<vmem>>, vector<1x1x256x256xbf16>
    %126 = vector.shape_cast %125 : vector<1x1x256x256xbf16> to vector<256x256xbf16>
    %cst_95 = arith.constant dense<0.000000e+00> : vector<32x256xf32>
    %127 = tpu.matmul %124, %126, %cst_95 {dimension_numbers = #tpu.dot_dimension_numbers<[1], [0], [0], [1], [0, 0, 1, 1], [], []>} : vector<32x256xbf16>, vector<256x256xbf16>, vector<32x256xf32> -> vector<32x256xf32>
    %128 = arith.addf %123, %127 : vector<32x256xf32>
    %c4_96 = arith.constant 4 : index
    %c0_97 = arith.constant 0 : index
    %129 = vector.load %arg4[%c4_96, %c0_97] : memref<36x256xbf16, #tpu.memory_space<vmem>>, vector<32x256xbf16>
    %c2_98 = arith.constant 2 : index
    %c2_99 = arith.constant 2 : index
    %c0_100 = arith.constant 0 : index
    %c0_101 = arith.constant 0 : index
    %130 = vector.load %arg1[%c2_98, %c2_99, %c0_100, %c0_101] : memref<4x3x256x256xbf16, #tpu.memory_space<vmem>>, vector<1x1x256x256xbf16>
    %131 = vector.shape_cast %130 : vector<1x1x256x256xbf16> to vector<256x256xbf16>
    %cst_102 = arith.constant dense<0.000000e+00> : vector<32x256xf32>
    %132 = tpu.matmul %129, %131, %cst_102 {dimension_numbers = #tpu.dot_dimension_numbers<[1], [0], [0], [1], [0, 0, 1, 1], [], []>} : vector<32x256xbf16>, vector<256x256xbf16>, vector<32x256xf32> -> vector<32x256xf32>
    %133 = arith.addf %128, %132 : vector<32x256xf32>
    %c4_103 = arith.constant 4 : index
    %c0_104 = arith.constant 0 : index
    %134 = vector.load %arg2[%c4_103, %c0_104] : memref<8x256xf32, #tpu.memory_space<vmem>>, vector<1x256xf32>
    %c5 = arith.constant 5 : index
    %c0_105 = arith.constant 0 : index
    %135 = vector.load %arg2[%c5, %c0_105] : memref<8x256xf32, #tpu.memory_space<vmem>>, vector<1x256xf32>
    %cst_106 = arith.constant dense<0.000000e+00> : vector<256xf32>
    %136 = vector.multi_reduction <add>, %133, %cst_106 [0] : vector<32x256xf32> to vector<256xf32>
    %137 = vector.shape_cast %136 : vector<256xf32> to vector<1x256xf32>
    %c16_i32_107 = arith.constant 16 : i32
    %138 = tpu.dynamic_rotate %137 by %c16_i32_107 dim 1 : vector<1x256xf32>, i32 -> vector<1x256xf32>
    %139 = arith.addf %137, %138 : vector<1x256xf32>
    %c32_i32_108 = arith.constant 32 : i32
    %140 = tpu.dynamic_rotate %139 by %c32_i32_108 dim 1 : vector<1x256xf32>, i32 -> vector<1x256xf32>
    %141 = arith.addf %139, %140 : vector<1x256xf32>
    %c64_i32_109 = arith.constant 64 : i32
    %142 = tpu.dynamic_rotate %141 by %c64_i32_109 dim 1 : vector<1x256xf32>, i32 -> vector<1x256xf32>
    %143 = arith.addf %141, %142 : vector<1x256xf32>
    %c128_i32_110 = arith.constant 128 : i32
    %144 = tpu.dynamic_rotate %143 by %c128_i32_110 dim 1 : vector<1x256xf32>, i32 -> vector<1x256xf32>
    %145 = arith.addf %143, %144 : vector<1x256xf32>
    %cst_111 = arith.constant 0.001953125 : f32
    %146 = vector.broadcast %cst_111 : f32 to vector<1x256xf32>
    %147 = arith.mulf %145, %146 : vector<1x256xf32>
    %148 = vector.broadcast %147 : vector<1x256xf32> to vector<32x256xf32>
    %149 = arith.subf %133, %148 : vector<32x256xf32>
    %150 = arith.mulf %149, %149 : vector<32x256xf32>
    %cst_112 = arith.constant dense<0.000000e+00> : vector<256xf32>
    %151 = vector.multi_reduction <add>, %150, %cst_112 [0] : vector<32x256xf32> to vector<256xf32>
    %152 = vector.shape_cast %151 : vector<256xf32> to vector<1x256xf32>
    %c16_i32_113 = arith.constant 16 : i32
    %153 = tpu.dynamic_rotate %152 by %c16_i32_113 dim 1 : vector<1x256xf32>, i32 -> vector<1x256xf32>
    %154 = arith.addf %152, %153 : vector<1x256xf32>
    %c32_i32_114 = arith.constant 32 : i32
    %155 = tpu.dynamic_rotate %154 by %c32_i32_114 dim 1 : vector<1x256xf32>, i32 -> vector<1x256xf32>
    %156 = arith.addf %154, %155 : vector<1x256xf32>
    %c64_i32_115 = arith.constant 64 : i32
    %157 = tpu.dynamic_rotate %156 by %c64_i32_115 dim 1 : vector<1x256xf32>, i32 -> vector<1x256xf32>
    %158 = arith.addf %156, %157 : vector<1x256xf32>
    %c128_i32_116 = arith.constant 128 : i32
    %159 = tpu.dynamic_rotate %158 by %c128_i32_116 dim 1 : vector<1x256xf32>, i32 -> vector<1x256xf32>
    %160 = arith.addf %158, %159 : vector<1x256xf32>
    %cst_117 = arith.constant 0.001953125 : f32
    %161 = vector.broadcast %cst_117 : f32 to vector<1x256xf32>
    %162 = arith.mulf %160, %161 : vector<1x256xf32>
    %cst_118 = arith.constant 9.99999974E-6 : f32
    %163 = vector.broadcast %cst_118 : f32 to vector<1x256xf32>
    %164 = arith.addf %162, %163 : vector<1x256xf32>
    %165 = math.rsqrt %164 : vector<1x256xf32>
    %166 = arith.mulf %134, %165 : vector<1x256xf32>
    %167 = vector.broadcast %166 : vector<1x256xf32> to vector<32x256xf32>
    %168 = arith.mulf %149, %167 : vector<32x256xf32>
    %169 = vector.broadcast %135 : vector<1x256xf32> to vector<32x256xf32>
    %170 = arith.addf %168, %169 : vector<32x256xf32>
    %cst_119 = arith.constant 0.000000e+00 : f32
    %171 = vector.broadcast %cst_119 : f32 to vector<32x256xf32>
    %172 = arith.maximumf %170, %171 : vector<32x256xf32>
    %173 = arith.truncf %172 : vector<32x256xf32> to vector<32x256xbf16>
    %c2_120 = arith.constant 2 : index
    %c0_121 = arith.constant 0 : index
    %174 = vector.load %arg4[%c2_120, %c0_121] : memref<36x256xbf16, #tpu.memory_space<vmem>>, vector<32x256xbf16>
    tpu.vector_store %arg4[%c2_120, %c0_121], %173 {strides = array<i32>} : memref<36x256xbf16, #tpu.memory_space<vmem>>, vector<32x256xbf16>,
    %cst_122 = arith.constant 0.000000e+00 : f32
    %175 = vector.broadcast %cst_122 : f32 to vector<32x256xf32>
    %c0_123 = arith.constant 0 : index
    %c0_124 = arith.constant 0 : index
    %176 = vector.load %arg4[%c0_123, %c0_124] : memref<36x256xbf16, #tpu.memory_space<vmem>>, vector<32x256xbf16>
    %c3_125 = arith.constant 3 : index
    %c0_126 = arith.constant 0 : index
    %c0_127 = arith.constant 0 : index
    %c0_128 = arith.constant 0 : index
    %177 = vector.load %arg1[%c3_125, %c0_126, %c0_127, %c0_128] : memref<4x3x256x256xbf16, #tpu.memory_space<vmem>>, vector<1x1x256x256xbf16>
    %178 = vector.shape_cast %177 : vector<1x1x256x256xbf16> to vector<256x256xbf16>
    %cst_129 = arith.constant dense<0.000000e+00> : vector<32x256xf32>
    %179 = tpu.matmul %176, %178, %cst_129 {dimension_numbers = #tpu.dot_dimension_numbers<[1], [0], [0], [1], [0, 0, 1, 1], [], []>} : vector<32x256xbf16>, vector<256x256xbf16>, vector<32x256xf32> -> vector<32x256xf32>
    %180 = arith.addf %175, %179 : vector<32x256xf32>
    %c2_130 = arith.constant 2 : index
    %c0_131 = arith.constant 0 : index
    %181 = vector.load %arg4[%c2_130, %c0_131] : memref<36x256xbf16, #tpu.memory_space<vmem>>, vector<32x256xbf16>
    %c3_132 = arith.constant 3 : index
    %c1_133 = arith.constant 1 : index
    %c0_134 = arith.constant 0 : index
    %c0_135 = arith.constant 0 : index
    %182 = vector.load %arg1[%c3_132, %c1_133, %c0_134, %c0_135] : memref<4x3x256x256xbf16, #tpu.memory_space<vmem>>, vector<1x1x256x256xbf16>
    %183 = vector.shape_cast %182 : vector<1x1x256x256xbf16> to vector<256x256xbf16>
    %cst_136 = arith.constant dense<0.000000e+00> : vector<32x256xf32>
    %184 = tpu.matmul %181, %183, %cst_136 {dimension_numbers = #tpu.dot_dimension_numbers<[1], [0], [0], [1], [0, 0, 1, 1], [], []>} : vector<32x256xbf16>, vector<256x256xbf16>, vector<32x256xf32> -> vector<32x256xf32>
    %185 = arith.addf %180, %184 : vector<32x256xf32>
    %c4_137 = arith.constant 4 : index
    %c0_138 = arith.constant 0 : index
    %186 = vector.load %arg4[%c4_137, %c0_138] : memref<36x256xbf16, #tpu.memory_space<vmem>>, vector<32x256xbf16>
    %c3_139 = arith.constant 3 : index
    %c2_140 = arith.constant 2 : index
    %c0_141 = arith.constant 0 : index
    %c0_142 = arith.constant 0 : index
    %187 = vector.load %arg1[%c3_139, %c2_140, %c0_141, %c0_142] : memref<4x3x256x256xbf16, #tpu.memory_space<vmem>>, vector<1x1x256x256xbf16>
    %188 = vector.shape_cast %187 : vector<1x1x256x256xbf16> to vector<256x256xbf16>
    %cst_143 = arith.constant dense<0.000000e+00> : vector<32x256xf32>
    %189 = tpu.matmul %186, %188, %cst_143 {dimension_numbers = #tpu.dot_dimension_numbers<[1], [0], [0], [1], [0, 0, 1, 1], [], []>} : vector<32x256xbf16>, vector<256x256xbf16>, vector<32x256xf32> -> vector<32x256xf32>
    %190 = arith.addf %185, %189 : vector<32x256xf32>
    %c6 = arith.constant 6 : index
    %c0_144 = arith.constant 0 : index
    %191 = vector.load %arg2[%c6, %c0_144] : memref<8x256xf32, #tpu.memory_space<vmem>>, vector<1x256xf32>
    %c7 = arith.constant 7 : index
    %c0_145 = arith.constant 0 : index
    %192 = vector.load %arg2[%c7, %c0_145] : memref<8x256xf32, #tpu.memory_space<vmem>>, vector<1x256xf32>
    %cst_146 = arith.constant dense<0.000000e+00> : vector<256xf32>
    %193 = vector.multi_reduction <add>, %190, %cst_146 [0] : vector<32x256xf32> to vector<256xf32>
    %194 = vector.shape_cast %193 : vector<256xf32> to vector<1x256xf32>
    %c16_i32_147 = arith.constant 16 : i32
    %195 = tpu.dynamic_rotate %194 by %c16_i32_147 dim 1 : vector<1x256xf32>, i32 -> vector<1x256xf32>
    %196 = arith.addf %194, %195 : vector<1x256xf32>
    %c32_i32_148 = arith.constant 32 : i32
    %197 = tpu.dynamic_rotate %196 by %c32_i32_148 dim 1 : vector<1x256xf32>, i32 -> vector<1x256xf32>
    %198 = arith.addf %196, %197 : vector<1x256xf32>
    %c64_i32_149 = arith.constant 64 : i32
    %199 = tpu.dynamic_rotate %198 by %c64_i32_149 dim 1 : vector<1x256xf32>, i32 -> vector<1x256xf32>
    %200 = arith.addf %198, %199 : vector<1x256xf32>
    %c128_i32_150 = arith.constant 128 : i32
    %201 = tpu.dynamic_rotate %200 by %c128_i32_150 dim 1 : vector<1x256xf32>, i32 -> vector<1x256xf32>
    %202 = arith.addf %200, %201 : vector<1x256xf32>
    %cst_151 = arith.constant 0.001953125 : f32
    %203 = vector.broadcast %cst_151 : f32 to vector<1x256xf32>
    %204 = arith.mulf %202, %203 : vector<1x256xf32>
    %205 = vector.broadcast %204 : vector<1x256xf32> to vector<32x256xf32>
    %206 = arith.subf %190, %205 : vector<32x256xf32>
    %207 = arith.mulf %206, %206 : vector<32x256xf32>
    %cst_152 = arith.constant dense<0.000000e+00> : vector<256xf32>
    %208 = vector.multi_reduction <add>, %207, %cst_152 [0] : vector<32x256xf32> to vector<256xf32>
    %209 = vector.shape_cast %208 : vector<256xf32> to vector<1x256xf32>
    %c16_i32_153 = arith.constant 16 : i32
    %210 = tpu.dynamic_rotate %209 by %c16_i32_153 dim 1 : vector<1x256xf32>, i32 -> vector<1x256xf32>
    %211 = arith.addf %209, %210 : vector<1x256xf32>
    %c32_i32_154 = arith.constant 32 : i32
    %212 = tpu.dynamic_rotate %211 by %c32_i32_154 dim 1 : vector<1x256xf32>, i32 -> vector<1x256xf32>
    %213 = arith.addf %211, %212 : vector<1x256xf32>
    %c64_i32_155 = arith.constant 64 : i32
    %214 = tpu.dynamic_rotate %213 by %c64_i32_155 dim 1 : vector<1x256xf32>, i32 -> vector<1x256xf32>
    %215 = arith.addf %213, %214 : vector<1x256xf32>
    %c128_i32_156 = arith.constant 128 : i32
    %216 = tpu.dynamic_rotate %215 by %c128_i32_156 dim 1 : vector<1x256xf32>, i32 -> vector<1x256xf32>
    %217 = arith.addf %215, %216 : vector<1x256xf32>
    %cst_157 = arith.constant 0.001953125 : f32
    %218 = vector.broadcast %cst_157 : f32 to vector<1x256xf32>
    %219 = arith.mulf %217, %218 : vector<1x256xf32>
    %cst_158 = arith.constant 9.99999974E-6 : f32
    %220 = vector.broadcast %cst_158 : f32 to vector<1x256xf32>
    %221 = arith.addf %219, %220 : vector<1x256xf32>
    %222 = math.rsqrt %221 : vector<1x256xf32>
    %223 = arith.mulf %191, %222 : vector<1x256xf32>
    %224 = vector.broadcast %223 : vector<1x256xf32> to vector<32x256xf32>
    %225 = arith.mulf %206, %224 : vector<32x256xf32>
    %226 = vector.broadcast %192 : vector<1x256xf32> to vector<32x256xf32>
    %227 = arith.addf %225, %226 : vector<32x256xf32>
    %228 = arith.addf %227, %115 : vector<32x256xf32>
    %cst_159 = arith.constant 0.000000e+00 : f32
    %229 = vector.broadcast %cst_159 : f32 to vector<32x256xf32>
    %230 = arith.maximumf %228, %229 : vector<32x256xf32>
    %c0_160 = arith.constant 0 : index
    %c0_161 = arith.constant 0 : index
    %231 = vector.load %arg3[%c0_160, %c0_161] : memref<32x256xf32, #tpu.memory_space<vmem>>, vector<32x256xf32>
    tpu.vector_store %arg3[%c0_160, %c0_161], %230 {strides = array<i32>} : memref<32x256xf32, #tpu.memory_space<vmem>>, vector<32x256xf32>,
    return
  }
}

</mosaic_0001>

<llo_original>
// kernel: resnet20_split_05_forward.1
$region0: #{resnet20_split_05_forward.1}
  #allocation0 [shape = 'u32[]', space=smem, size = 0x4, offset = 0x4, fixed_abs, tag = 'smem constant byte address 0x4 - core index']
  #allocation1 [shape = 'u32[144,128]{1,0:T(1,128)}', space=vmem, size = 0x12000, scoped, tag = 'internal scratch']
  #allocation2 [shape = 'bf16[36,256]{1,0:T(8,128)(2,1)}', space=vmem, size = 0x5000, scoped, tag = 'scratch operand']
  %s0 = inlined_call_operand.vmem [shape: bf16[32,256], index: 0, kind: input, shape index: {}]
  %s1 = inlined_call_operand.hbm [shape: bf16[4,3,256,256], index: 1, kind: input, shape index: {}]
  %s2 = inlined_call_operand.hbm [shape: f32[8,256], index: 2, kind: input, shape index: {}]
  %s3 = inlined_call_operand.vmem [shape: f32[32,256], index: 3, kind: output, shape index: {}]
  %s4 = sld [smem:[#allocation0]]
  $region30: #{resnet20_split_05_forward.1} parent=0
    _
  %s6 = ssub.s32 1, %s4
  %s7 = scalar_select 0, %s6, %s4
  $region1: #{resnet20_split_05_forward.1} parent=0
    #allocation3 [shape = 'u8[1572864]{0}', space=vmem, size = 0x180000, scoped, tag = 'input window, operand 1, single buffered']
    #allocation4 [shape = 's32[1]{0}', space=sflag, size = 0x4, scoped, tag = 'scoped memory for resnet20_split_05_forward.1']
    #allocation5 [shape = 'u8[8192]{0}', space=vmem, size = 0x2000, scoped, tag = 'input window, operand 2, single buffered']
    #allocation6 [shape = 's32[1]{0}', space=sflag, size = 0x4, scoped, tag = 'scoped memory for resnet20_split_05_forward.1']
    %8 = vsyncpa [#allocation4], 0
    %9 = vsyncpa [#allocation6], 0
    // Predicated region
    $region2: #{resnet20_split_05_forward.1} parent=1 // pred_check
      _
    $region3: #{resnet20_split_05_forward.1} parent=1 // pred_check_branch
      %11 = sbr.rel (0) target = $region5
    $region4: #{resnet20_split_05_forward.1} parent=1 // pred_region
      _
    $region5: #{resnet20_split_05_forward.1} parent=1 // pred_fallthru
      _
    // Predicated region
    $region6: #{resnet20_split_05_forward.1} parent=1 // pred_check
      _
    $region7: #{resnet20_split_05_forward.1} parent=1 // pred_check_branch
      %13 = sbr.rel (0) target = $region9
    $region8: #{resnet20_split_05_forward.1} parent=1 // pred_region
      %s15 = ssub.s32 49152, 49152
      %16 = vsyncadd [#allocation4], %s15
      %s17 = sshll.u32 [#allocation3], 4
      %s18 = int_to_ptr.vmem [resolvable:$true] %s17
      %23 = dma.hbm_to_vmem [thread:$0]  %s1, 49152, %s18, [#allocation4], 128, 128, 8
    $region9: #{resnet20_split_05_forward.1} parent=1 // pred_fallthru
      _
    // Predicated region
    $region10: #{resnet20_split_05_forward.1} parent=1 // pred_check
      _
    $region11: #{resnet20_split_05_forward.1} parent=1 // pred_check_branch
      %25 = sbr.rel (0) target = $region13
    $region12: #{resnet20_split_05_forward.1} parent=1 // pred_region
      %s27 = ssub.s32 256, 256
      %28 = vsyncadd [#allocation6], %s27
      %s30 = sshll.u32 [#allocation5], 4
      %s31 = int_to_ptr.vmem [resolvable:$true] %s30
      %33 = dma.hbm_to_vmem [thread:$0]  %s2, 256, %s31, [#allocation6]
    $region13: #{resnet20_split_05_forward.1} parent=1 // pred_fallthru
      _
    // Predicated region
    $region14: #{resnet20_split_05_forward.1} parent=1 // pred_check
      _
    $region15: #{resnet20_split_05_forward.1} parent=1 // pred_check_branch
      %35 = sbr.rel (0) target = $region17
    $region16: #{resnet20_split_05_forward.1} parent=1 // pred_region
      %36 = dma.done [#allocation4], 49152
    $region17: #{resnet20_split_05_forward.1} parent=1 // pred_fallthru
      _
    // Predicated region
    $region18: #{resnet20_split_05_forward.1} parent=1 // pred_check
      _
    $region19: #{resnet20_split_05_forward.1} parent=1 // pred_check_branch
      %38 = sbr.rel (0) target = $region21
    $region20: #{resnet20_split_05_forward.1} parent=1 // pred_region
      %39 = dma.done [#allocation6], 256
    $region21: #{resnet20_split_05_forward.1} parent=1 // pred_fallthru
      _
    %41 = vst [vmem:[#allocation2] sm:$0xff] 0
    %42 = vst [vmem:[#allocation2 + $0x8] sm:$0xff] 0
    %43 = vst [vmem:[#allocation2 + $0x10] sm:$0xff] 0
    %44 = vst [vmem:[#allocation2 + $0x18] sm:$0xff] 0
    %45 = vst [vmem:[#allocation2 + $0x20] sm:$0x33] 0
    %v46 = vld [vmem:[%s0] sm:$0xff]
    %v47 = vld [vmem:[%s0 + $0x8] sm:$0xff]
    %v48 = vld [vmem:[%s0 + $0x10] sm:$0xff]
    %v49 = vld [vmem:[%s0 + $0x18] sm:$0xff]
    %vm54 = vcmask 1040384
    %vm55 = vcmask 1044484
    %vm56 = vmor %vm54, %vm55
    %v57 = vrot.slane %v46, 7
    %v58 = vrot.slane %v57, 4
    %v59 = vrot.slane %v47, 7
    %v60 = vsel %vm56, %v58, %v59
    %v61 = vrot.slane %v59, 4
    %v62 = vrot.slane %v48, 7
    %v63 = vsel %vm56, %v61, %v62
    %v64 = vrot.slane %v62, 4
    %v65 = vrot.slane %v49, 7
    %v66 = vsel %vm56, %v64, %v65
    %v67 = vrot.slane %v65, 4
    %73 = vst [vmem:[#allocation2] sm:$0xee] %v57
    %74 = vst [vmem:[#allocation2 + $0x8] sm:$0xff] %v60
    %75 = vst [vmem:[#allocation2 + $0x10] sm:$0xff] %v63
    %76 = vst [vmem:[#allocation2 + $0x18] sm:$0xff] %v66
    %77 = vst [vmem:[#allocation2 + $0x20] sm:$0x11] %v67
    %v78 = vld [vmem:[#allocation2] sm:$0xff]
    %v79 = vld [vmem:[#allocation2 + $0x8] sm:$0xff]
    %v80 = vld [vmem:[#allocation2 + $0x10] sm:$0xff]
    %v81 = vld [vmem:[#allocation2 + $0x18] sm:$0xff]
    %v82 = vld [vmem:[#allocation3] sm:$0xff]
    %v83 = vld [vmem:[#allocation3 + $0x8] sm:$0xff]
    %v84 = vld [vmem:[#allocation3 + $0x10] sm:$0xff]
    %v85 = vld [vmem:[#allocation3 + $0x18] sm:$0xff]
    %v86 = vld [vmem:[#allocation3 + $0x20] sm:$0xff]
    %v87 = vld [vmem:[#allocation3 + $0x28] sm:$0xff]
    %v88 = vld [vmem:[#allocation3 + $0x30] sm:$0xff]
    %v89 = vld [vmem:[#allocation3 + $0x38] sm:$0xff]
    %v90 = vld [vmem:[#allocation3 + $0x40] sm:$0xff]
    %v91 = vld [vmem:[#allocation3 + $0x48] sm:$0xff]
    %v92 = vld [vmem:[#allocation3 + $0x50] sm:$0xff]
    %v93 = vld [vmem:[#allocation3 + $0x58] sm:$0xff]
    %v94 = vld [vmem:[#allocation3 + $0x60] sm:$0xff]
    %v95 = vld [vmem:[#allocation3 + $0x68] sm:$0xff]
    %v96 = vld [vmem:[#allocation3 + $0x70] sm:$0xff]
    %v97 = vld [vmem:[#allocation3 + $0x78] sm:$0xff]
    %v98 = vld [vmem:[#allocation3 + $0x80] sm:$0xff]
    %v99 = vld [vmem:[#allocation3 + $0x88] sm:$0xff]
    %v100 = vld [vmem:[#allocation3 + $0x90] sm:$0xff]
    %v101 = vld [vmem:[#allocation3 + $0x98] sm:$0xff]
    %v102 = vld [vmem:[#allocation3 + $0xa0] sm:$0xff]
    %v103 = vld [vmem:[#allocation3 + $0xa8] sm:$0xff]
    %v104 = vld [vmem:[#allocation3 + $0xb0] sm:$0xff]
    %v105 = vld [vmem:[#allocation3 + $0xb8] sm:$0xff]
    %v106 = vld [vmem:[#allocation3 + $0xc0] sm:$0xff]
    %v107 = vld [vmem:[#allocation3 + $0xc8] sm:$0xff]
    %v108 = vld [vmem:[#allocation3 + $0xd0] sm:$0xff]
    %v109 = vld [vmem:[#allocation3 + $0xd8] sm:$0xff]
    %v110 = vld [vmem:[#allocation3 + $0xe0] sm:$0xff]
    %v111 = vld [vmem:[#allocation3 + $0xe8] sm:$0xff]
    %v112 = vld [vmem:[#allocation3 + $0xf0] sm:$0xff]
    %v113 = vld [vmem:[#allocation3 + $0xf8] sm:$0xff]
    %v114 = vld [vmem:[#allocation2] sm:$0xee]
    %v115 = vld [vmem:[#allocation2 + $0x20] sm:$0x11]
    %s116 = scalar_lea.vmem [#allocation3], 256
    %v117 = vld [vmem:[%s116] sm:$0xff]
    %v118 = vld [vmem:[%s116 + $0x8] sm:$0xff]
    %v119 = vld [vmem:[%s116 + $0x10] sm:$0xff]
    %v120 = vld [vmem:[%s116 + $0x18] sm:$0xff]
    %v121 = vld [vmem:[%s116 + $0x20] sm:$0xff]
    %v122 = vld [vmem:[%s116 + $0x28] sm:$0xff]
    %v123 = vld [vmem:[%s116 + $0x30] sm:$0xff]
    %v124 = vld [vmem:[%s116 + $0x38] sm:$0xff]
    %v125 = vld [vmem:[%s116 + $0x40] sm:$0xff]
    %v126 = vld [vmem:[%s116 + $0x48] sm:$0xff]
    %v127 = vld [vmem:[%s116 + $0x50] sm:$0xff]
    %v128 = vld [vmem:[%s116 + $0x58] sm:$0xff]
    %v129 = vld [vmem:[%s116 + $0x60] sm:$0xff]
    %v130 = vld [vmem:[%s116 + $0x68] sm:$0xff]
    %v131 = vld [vmem:[%s116 + $0x70] sm:$0xff]
    %v132 = vld [vmem:[%s116 + $0x78] sm:$0xff]
    %v133 = vld [vmem:[%s116 + $0x80] sm:$0xff]
    %v134 = vld [vmem:[%s116 + $0x88] sm:$0xff]
    %v135 = vld [vmem:[%s116 + $0x90] sm:$0xff]
    %v136 = vld [vmem:[%s116 + $0x98] sm:$0xff]
    %v137 = vld [vmem:[%s116 + $0xa0] sm:$0xff]
    %v138 = vld [vmem:[%s116 + $0xa8] sm:$0xff]
    %v139 = vld [vmem:[%s116 + $0xb0] sm:$0xff]
    %v140 = vld [vmem:[%s116 + $0xb8] sm:$0xff]
    %v141 = vld [vmem:[%s116 + $0xc0] sm:$0xff]
    %v142 = vld [vmem:[%s116 + $0xc8] sm:$0xff]
    %v143 = vld [vmem:[%s116 + $0xd0] sm:$0xff]
    %v144 = vld [vmem:[%s116 + $0xd8] sm:$0xff]
    %v145 = vld [vmem:[%s116 + $0xe0] sm:$0xff]
    %v146 = vld [vmem:[%s116 + $0xe8] sm:$0xff]
    %v147 = vld [vmem:[%s116 + $0xf0] sm:$0xff]
    %v148 = vld [vmem:[%s116 + $0xf8] sm:$0xff]
    %v154 = vunpack.c.l.b16 %v114
    %v155 = vunpack.c.h.b16 %v114
    %v156 = vunpack.c.l.b16 %v79
    %v157 = vunpack.c.h.b16 %v79
    %v158 = vunpack.c.l.b16 %v80
    %v159 = vunpack.c.h.b16 %v80
    %v160 = vunpack.c.l.b16 %v81
    %v161 = vunpack.c.h.b16 %v81
    %v162 = vunpack.c.l.b16 %v115
    %v163 = vunpack.c.h.b16 %v115
    %v164 = vpack.c.b16 %v156, %v154
    %v165 = vpack.c.b16 %v157, %v155
    %v166 = vpack.c.b16 %v160, %v158
    %v167 = vpack.c.b16 %v161, %v159
    %v168 = vpack.c.b16 %v162, %v162
    %v169 = vpack.c.b16 %v163, %v163
    %vm170 = vcmask 1046528
    %v171 = vrot.slane %v164, 1
    %v172 = vrot.slane %v166, 1
    %v173 = vsel %vm170, %v171, %v172
    %v174 = vrot.slane %v165, 1
    %v175 = vrot.slane %v167, 1
    %v176 = vsel %vm170, %v174, %v175
    %v177 = vrot.slane %v168, 1
    %v178 = vsel %vm170, %v172, %v177
    %v179 = vrot.slane %v169, 1
    %v180 = vsel %vm170, %v175, %v179
    %v217 = vunpack.c.l.b16 %v117
    %v218 = vunpack.c.h.b16 %v117
    %v219 = vunpack.c.l.b16 %v118
    %v220 = vunpack.c.h.b16 %v118
    %v221 = vunpack.c.l.b16 %v119
    %v222 = vunpack.c.h.b16 %v119
    %v223 = vunpack.c.l.b16 %v120
    %v224 = vunpack.c.h.b16 %v120
    %v225 = vunpack.c.l.b16 %v121
    %v226 = vunpack.c.h.b16 %v121
    %v227 = vunpack.c.l.b16 %v122
    %v228 = vunpack.c.h.b16 %v122
    %v229 = vunpack.c.l.b16 %v123
    %v230 = vunpack.c.h.b16 %v123
    %v231 = vunpack.c.l.b16 %v124
    %v232 = vunpack.c.h.b16 %v124
    %v233 = vunpack.c.l.b16 %v125
    %v234 = vunpack.c.h.b16 %v125
    %v235 = vunpack.c.l.b16 %v126
    %v236 = vunpack.c.h.b16 %v126
    %v237 = vunpack.c.l.b16 %v127
    %v238 = vunpack.c.h.b16 %v127
    %v239 = vunpack.c.l.b16 %v128
    %v240 = vunpack.c.h.b16 %v128
    %v241 = vunpack.c.l.b16 %v129
    %v242 = vunpack.c.h.b16 %v129
    %v243 = vunpack.c.l.b16 %v130
    %v244 = vunpack.c.h.b16 %v130
    %v245 = vunpack.c.l.b16 %v131
    %v246 = vunpack.c.h.b16 %v131
    %v247 = vunpack.c.l.b16 %v132
    %v248 = vunpack.c.h.b16 %v132
    %v249 = vunpack.c.l.b16 %v133
    %v250 = vunpack.c.h.b16 %v133
    %v251 = vunpack.c.l.b16 %v134
    %v252 = vunpack.c.h.b16 %v134
    %v253 = vunpack.c.l.b16 %v135
    %v254 = vunpack.c.h.b16 %v135
    %v255 = vunpack.c.l.b16 %v136
    %v256 = vunpack.c.h.b16 %v136
    %v257 = vunpack.c.l.b16 %v137
    %v258 = vunpack.c.h.b16 %v137
    %v259 = vunpack.c.l.b16 %v138
    %v260 = vunpack.c.h.b16 %v138
    %v261 = vunpack.c.l.b16 %v139
    %v262 = vunpack.c.h.b16 %v139
    %v263 = vunpack.c.l.b16 %v140
    %v264 = vunpack.c.h.b16 %v140
    %v265 = vunpack.c.l.b16 %v141
    %v266 = vunpack.c.h.b16 %v141
    %v267 = vunpack.c.l.b16 %v142
    %v268 = vunpack.c.h.b16 %v142
    %v269 = vunpack.c.l.b16 %v143
    %v270 = vunpack.c.h.b16 %v143
    %v271 = vunpack.c.l.b16 %v144
    %v272 = vunpack.c.h.b16 %v144
    %v273 = vunpack.c.l.b16 %v145
    %v274 = vunpack.c.h.b16 %v145
    %v275 = vunpack.c.l.b16 %v146
    %v276 = vunpack.c.h.b16 %v146
    %v277 = vunpack.c.l.b16 %v147
    %v278 = vunpack.c.h.b16 %v147
    %v279 = vunpack.c.l.b16 %v148
    %v280 = vunpack.c.h.b16 %v148
    %v281 = vpack.c.b16 %v219, %v217
    %v282 = vpack.c.b16 %v220, %v218
    %v283 = vpack.c.b16 %v223, %v221
    %v284 = vpack.c.b16 %v224, %v222
    %v285 = vpack.c.b16 %v227, %v225
    %v286 = vpack.c.b16 %v228, %v226
    %v287 = vpack.c.b16 %v231, %v229
    %v288 = vpack.c.b16 %v232, %v230
    %v289 = vpack.c.b16 %v235, %v233
    %v290 = vpack.c.b16 %v236, %v234
    %v291 = vpack.c.b16 %v239, %v237
    %v292 = vpack.c.b16 %v240, %v238
    %v293 = vpack.c.b16 %v243, %v241
    %v294 = vpack.c.b16 %v244, %v242
    %v295 = vpack.c.b16 %v247, %v245
    %v296 = vpack.c.b16 %v248, %v246
    %v297 = vpack.c.b16 %v251, %v249
    %v298 = vpack.c.b16 %v252, %v250
    %v299 = vpack.c.b16 %v255, %v253
    %v300 = vpack.c.b16 %v256, %v254
    %v301 = vpack.c.b16 %v259, %v257
    %v302 = vpack.c.b16 %v260, %v258
    %v303 = vpack.c.b16 %v263, %v261
    %v304 = vpack.c.b16 %v264, %v262
    %v305 = vpack.c.b16 %v267, %v265
    %v306 = vpack.c.b16 %v268, %v266
    %v307 = vpack.c.b16 %v271, %v269
    %v308 = vpack.c.b16 %v272, %v270
    %v309 = vpack.c.b16 %v275, %v273
    %v310 = vpack.c.b16 %v276, %v274
    %v311 = vpack.c.b16 %v279, %v277
    %v312 = vpack.c.b16 %v280, %v278
    %345 = vmatprep.subr.bf16.mxu0 %v296
    %346 = vmatpush1.bf16.msra.mxu0 %v295
    %347 = vmatprep.subr.bf16.mxu0 %v294
    %348 = vmatpush1.bf16.msra.mxu0 %v293
    %349 = vmatprep.subr.bf16.mxu0 %v292
    %350 = vmatpush1.bf16.msra.mxu0 %v291
    %351 = vmatprep.subr.bf16.mxu0 %v290
    %352 = vmatpush1.bf16.msra.mxu0 %v289
    %353 = vmatprep.subr.bf16.mxu0 %v288
    %354 = vmatpush1.bf16.msra.mxu0 %v287
    %355 = vmatprep.subr.bf16.mxu0 %v286
    %356 = vmatpush1.bf16.msra.mxu0 %v285
    %357 = vmatprep.subr.bf16.mxu0 %v284
    %358 = vmatpush1.bf16.msra.mxu0 %v283
    %359 = vmatprep.subr.bf16.mxu0 %v282
    %360 = vmatpush1.bf16.msra.mxu0 %v281
    %361 = vmatprep.subr.bf16.mxu0 %v312
    %362 = vmatpush2.bf16.msra.mxu0 %v311
    %363 = vmatprep.subr.bf16.mxu0 %v310
    %364 = vmatpush2.bf16.msra.mxu0 %v309
    %365 = vmatprep.subr.bf16.mxu0 %v308
    %366 = vmatpush2.bf16.msra.mxu0 %v307
    %367 = vmatprep.subr.bf16.mxu0 %v306
    %368 = vmatpush2.bf16.msra.mxu0 %v305
    %369 = vmatprep.subr.bf16.mxu0 %v304
    %370 = vmatpush2.bf16.msra.mxu0 %v303
    %371 = vmatprep.subr.bf16.mxu0 %v302
    %372 = vmatpush2.bf16.msra.mxu0 %v301
    %373 = vmatprep.subr.bf16.mxu0 %v300
    %374 = vmatpush2.bf16.msra.mxu0 %v299
    %375 = vmatprep.subr.bf16.mxu0 %v298
    %376 = vmatpush2.bf16.msra.mxu0 %v297
    %377 = vmatprep.mubr.bf16.mxu0 %v176
    %378 = vmatmul.mubr.bf16.gmra.mxu0 %v173
    %v379 = vpop.f32.mrf.mxu0
    %v380 = vadd.f32 0.0, %v379
    %v381 = vpop.f32.mrf.mxu0
    %v382 = vadd.f32 0.0, %v381
    %v383 = vpop.f32.mrf.mxu0
    %v384 = vadd.f32 0.0, %v383
    %v385 = vpop.f32.mrf.mxu0
    %v386 = vadd.f32 0.0, %v385
    %387 = vmatprep.mubr.bf16.mxu0 %v180
    %388 = vmatmul.mubr.bf16.gmra.mxu0 %v178
    %v389 = vpop.f32.mrf.mxu0
    %v390 = vadd.f32 0.0, %v389
    %v391 = vpop.f32.mrf.mxu0
    %v392 = vadd.f32 0.0, %v391
    %v393 = vpop.f32.mrf.mxu0
    %v394 = vadd.f32 0.0, %v393
    %v395 = vpop.f32.mrf.mxu0
    %v396 = vadd.f32 0.0, %v395
    %397 = vdwg.mxu0
    %v399 = vunpack.c.l.b16 %v78
    %v400 = vunpack.c.h.b16 %v78
    %v401 = vpack.c.b16 %v156, %v399
    %v402 = vpack.c.b16 %v157, %v400
    %v439 = vunpack.c.l.b16 %v82
    %v440 = vunpack.c.h.b16 %v82
    %v441 = vunpack.c.l.b16 %v83
    %v442 = vunpack.c.h.b16 %v83
    %v443 = vunpack.c.l.b16 %v84
    %v444 = vunpack.c.h.b16 %v84
    %v445 = vunpack.c.l.b16 %v85
    %v446 = vunpack.c.h.b16 %v85
    %v447 = vunpack.c.l.b16 %v86
    %v448 = vunpack.c.h.b16 %v86
    %v449 = vunpack.c.l.b16 %v87
    %v450 = vunpack.c.h.b16 %v87
    %v451 = vunpack.c.l.b16 %v88
    %v452 = vunpack.c.h.b16 %v88
    %v453 = vunpack.c.l.b16 %v89
    %v454 = vunpack.c.h.b16 %v89
    %v455 = vunpack.c.l.b16 %v90
    %v456 = vunpack.c.h.b16 %v90
    %v457 = vunpack.c.l.b16 %v91
    %v458 = vunpack.c.h.b16 %v91
    %v459 = vunpack.c.l.b16 %v92
    %v460 = vunpack.c.h.b16 %v92
    %v461 = vunpack.c.l.b16 %v93
    %v462 = vunpack.c.h.b16 %v93
    %v463 = vunpack.c.l.b16 %v94
    %v464 = vunpack.c.h.b16 %v94
    %v465 = vunpack.c.l.b16 %v95
    %v466 = vunpack.c.h.b16 %v95
    %v467 = vunpack.c.l.b16 %v96
    %v468 = vunpack.c.h.b16 %v96
    %v469 = vunpack.c.l.b16 %v97
    %v470 = vunpack.c.h.b16 %v97
    %v471 = vunpack.c.l.b16 %v98
    %v472 = vunpack.c.h.b16 %v98
    %v473 = vunpack.c.l.b16 %v99
    %v474 = vunpack.c.h.b16 %v99
    %v475 = vunpack.c.l.b16 %v100
    %v476 = vunpack.c.h.b16 %v100
    %v477 = vunpack.c.l.b16 %v101
    %v478 = vunpack.c.h.b16 %v101
    %v479 = vunpack.c.l.b16 %v102
    %v480 = vunpack.c.h.b16 %v102
    %v481 = vunpack.c.l.b16 %v103
    %v482 = vunpack.c.h.b16 %v103
    %v483 = vunpack.c.l.b16 %v104
    %v484 = vunpack.c.h.b16 %v104
    %v485 = vunpack.c.l.b16 %v105
    %v486 = vunpack.c.h.b16 %v105
    %v487 = vunpack.c.l.b16 %v106
    %v488 = vunpack.c.h.b16 %v106
    %v489 = vunpack.c.l.b16 %v107
    %v490 = vunpack.c.h.b16 %v107
    %v491 = vunpack.c.l.b16 %v108
    %v492 = vunpack.c.h.b16 %v108
    %v493 = vunpack.c.l.b16 %v109
    %v494 = vunpack.c.h.b16 %v109
    %v495 = vunpack.c.l.b16 %v110
    %v496 = vunpack.c.h.b16 %v110
    %v497 = vunpack.c.l.b16 %v111
    %v498 = vunpack.c.h.b16 %v111
    %v499 = vunpack.c.l.b16 %v112
    %v500 = vunpack.c.h.b16 %v112
    %v501 = vunpack.c.l.b16 %v113
    %v502 = vunpack.c.h.b16 %v113
    %v503 = vpack.c.b16 %v441, %v439
    %v504 = vpack.c.b16 %v442, %v440
    %v505 = vpack.c.b16 %v445, %v443
    %v506 = vpack.c.b16 %v446, %v444
    %v507 = vpack.c.b16 %v449, %v447
    %v508 = vpack.c.b16 %v450, %v448
    %v509 = vpack.c.b16 %v453, %v451
    %v510 = vpack.c.b16 %v454, %v452
    %v511 = vpack.c.b16 %v457, %v455
    %v512 = vpack.c.b16 %v458, %v456
    %v513 = vpack.c.b16 %v461, %v459
    %v514 = vpack.c.b16 %v462, %v460
    %v515 = vpack.c.b16 %v465, %v463
    %v516 = vpack.c.b16 %v466, %v464
    %v517 = vpack.c.b16 %v469, %v467
    %v518 = vpack.c.b16 %v470, %v468
    %v519 = vpack.c.b16 %v473, %v471
    %v520 = vpack.c.b16 %v474, %v472
    %v521 = vpack.c.b16 %v477, %v475
    %v522 = vpack.c.b16 %v478, %v476
    %v523 = vpack.c.b16 %v481, %v479
    %v524 = vpack.c.b16 %v482, %v480
    %v525 = vpack.c.b16 %v485, %v483
    %v526 = vpack.c.b16 %v486, %v484
    %v527 = vpack.c.b16 %v489, %v487
    %v528 = vpack.c.b16 %v490, %v488
    %v529 = vpack.c.b16 %v493, %v491
    %v530 = vpack.c.b16 %v494, %v492
    %v531 = vpack.c.b16 %v497, %v495
    %v532 = vpack.c.b16 %v498, %v496
    %v533 = vpack.c.b16 %v501, %v499
    %v534 = vpack.c.b16 %v502, %v500
    %567 = vmatprep.subr.bf16.mxu0 %v518
    %568 = vmatpush1.bf16.msra.mxu0 %v517
    %569 = vmatprep.subr.bf16.mxu0 %v516
    %570 = vmatpush1.bf16.msra.mxu0 %v515
    %571 = vmatprep.subr.bf16.mxu0 %v514
    %572 = vmatpush1.bf16.msra.mxu0 %v513
    %573 = vmatprep.subr.bf16.mxu0 %v512
    %574 = vmatpush1.bf16.msra.mxu0 %v511
    %575 = vmatprep.subr.bf16.mxu0 %v510
    %576 = vmatpush1.bf16.msra.mxu0 %v509
    %577 = vmatprep.subr.bf16.mxu0 %v508
    %578 = vmatpush1.bf16.msra.mxu0 %v507
    %579 = vmatprep.subr.bf16.mxu0 %v506
    %580 = vmatpush1.bf16.msra.mxu0 %v505
    %581 = vmatprep.subr.bf16.mxu0 %v504
    %582 = vmatpush1.bf16.msra.mxu0 %v503
    %583 = vmatprep.subr.bf16.mxu0 %v534
    %584 = vmatpush2.bf16.msra.mxu0 %v533
    %585 = vmatprep.subr.bf16.mxu0 %v532
    %586 = vmatpush2.bf16.msra.mxu0 %v531
    %587 = vmatprep.subr.bf16.mxu0 %v530
    %588 = vmatpush2.bf16.msra.mxu0 %v529
    %589 = vmatprep.subr.bf16.mxu0 %v528
    %590 = vmatpush2.bf16.msra.mxu0 %v527
    %591 = vmatprep.subr.bf16.mxu0 %v526
    %592 = vmatpush2.bf16.msra.mxu0 %v525
    %593 = vmatprep.subr.bf16.mxu0 %v524
    %594 = vmatpush2.bf16.msra.mxu0 %v523
    %595 = vmatprep.subr.bf16.mxu0 %v522
    %596 = vmatpush2.bf16.msra.mxu0 %v521
    %597 = vmatprep.subr.bf16.mxu0 %v520
    %598 = vmatpush2.bf16.msra.mxu0 %v519
    %599 = vmatprep.mubr.bf16.mxu0 %v402
    %600 = vmatmul.mubr.bf16.gmra.mxu0 %v401
    %v601 = vpop.f32.mrf.mxu0
    %v602 = vadd.f32 %v380, %v601
    %v603 = vpop.f32.mrf.mxu0
    %v604 = vadd.f32 %v382, %v603
    %v605 = vpop.f32.mrf.mxu0
    %v606 = vadd.f32 %v384, %v605
    %v607 = vpop.f32.mrf.mxu0
    %v608 = vadd.f32 %v386, %v607
    %609 = vmatprep.mubr.bf16.mxu0 %v167
    %610 = vmatmul.mubr.bf16.gmra.mxu0 %v166
    %v611 = vpop.f32.mrf.mxu0
    %v612 = vadd.f32 %v390, %v611
    %v613 = vpop.f32.mrf.mxu0
    %v614 = vadd.f32 %v392, %v613
    %v615 = vpop.f32.mrf.mxu0
    %v616 = vadd.f32 %v394, %v615
    %v617 = vpop.f32.mrf.mxu0
    %v618 = vadd.f32 %v396, %v617
    %619 = vdwg.mxu0
    %v620 = vld [vmem:[#allocation2] sm:$0xcc]
    %v621 = vld [vmem:[#allocation2 + $0x20] sm:$0x33]
    %s622 = scalar_lea.vmem [#allocation3], 512
    %v623 = vld [vmem:[%s622] sm:$0xff]
    %v624 = vld [vmem:[%s622 + $0x8] sm:$0xff]
    %v625 = vld [vmem:[%s622 + $0x10] sm:$0xff]
    %v626 = vld [vmem:[%s622 + $0x18] sm:$0xff]
    %v627 = vld [vmem:[%s622 + $0x20] sm:$0xff]
    %v628 = vld [vmem:[%s622 + $0x28] sm:$0xff]
    %v629 = vld [vmem:[%s622 + $0x30] sm:$0xff]
    %v630 = vld [vmem:[%s622 + $0x38] sm:$0xff]
    %v631 = vld [vmem:[%s622 + $0x40] sm:$0xff]
    %v632 = vld [vmem:[%s622 + $0x48] sm:$0xff]
    %v633 = vld [vmem:[%s622 + $0x50] sm:$0xff]
    %v634 = vld [vmem:[%s622 + $0x58] sm:$0xff]
    %v635 = vld [vmem:[%s622 + $0x60] sm:$0xff]
    %v636 = vld [vmem:[%s622 + $0x68] sm:$0xff]
    %v637 = vld [vmem:[%s622 + $0x70] sm:$0xff]
    %v638 = vld [vmem:[%s622 + $0x78] sm:$0xff]
    %v639 = vld [vmem:[%s622 + $0x80] sm:$0xff]
    %v640 = vld [vmem:[%s622 + $0x88] sm:$0xff]
    %v641 = vld [vmem:[%s622 + $0x90] sm:$0xff]
    %v642 = vld [vmem:[%s622 + $0x98] sm:$0xff]
    %v643 = vld [vmem:[%s622 + $0xa0] sm:$0xff]
    %v644 = vld [vmem:[%s622 + $0xa8] sm:$0xff]
    %v645 = vld [vmem:[%s622 + $0xb0] sm:$0xff]
    %v646 = vld [vmem:[%s622 + $0xb8] sm:$0xff]
    %v647 = vld [vmem:[%s622 + $0xc0] sm:$0xff]
    %v648 = vld [vmem:[%s622 + $0xc8] sm:$0xff]
    %v649 = vld [vmem:[%s622 + $0xd0] sm:$0xff]
    %v650 = vld [vmem:[%s622 + $0xd8] sm:$0xff]
    %v651 = vld [vmem:[%s622 + $0xe0] sm:$0xff]
    %v652 = vld [vmem:[%s622 + $0xe8] sm:$0xff]
    %v653 = vld [vmem:[%s622 + $0xf0] sm:$0xff]
    %v654 = vld [vmem:[%s622 + $0xf8] sm:$0xff]
    %v657 = vunpack.c.l.b16 %v620
    %v658 = vunpack.c.h.b16 %v620
    %v659 = vunpack.c.l.b16 %v621
    %v660 = vunpack.c.h.b16 %v621
    %v661 = vpack.c.b16 %v156, %v657
    %v662 = vpack.c.b16 %v157, %v658
    %v663 = vpack.c.b16 %v659, %v659
    %v664 = vpack.c.b16 %v660, %v660
    %vm665 = vcmask 1045504
    %v666 = vrot.slane %v661, 2
    %v667 = vrot.slane %v166, 2
    %v668 = vsel %vm665, %v666, %v667
    %v669 = vrot.slane %v662, 2
    %v670 = vrot.slane %v167, 2
    %v671 = vsel %vm665, %v669, %v670
    %v672 = vrot.slane %v663, 2
    %v673 = vsel %vm665, %v667, %v672
    %v674 = vrot.slane %v664, 2
    %v675 = vsel %vm665, %v670, %v674
    %v712 = vunpack.c.l.b16 %v623
    %v713 = vunpack.c.h.b16 %v623
    %v714 = vunpack.c.l.b16 %v624
    %v715 = vunpack.c.h.b16 %v624
    %v716 = vunpack.c.l.b16 %v625
    %v717 = vunpack.c.h.b16 %v625
    %v718 = vunpack.c.l.b16 %v626
    %v719 = vunpack.c.h.b16 %v626
    %v720 = vunpack.c.l.b16 %v627
    %v721 = vunpack.c.h.b16 %v627
    %v722 = vunpack.c.l.b16 %v628
    %v723 = vunpack.c.h.b16 %v628
    %v724 = vunpack.c.l.b16 %v629
    %v725 = vunpack.c.h.b16 %v629
    %v726 = vunpack.c.l.b16 %v630
    %v727 = vunpack.c.h.b16 %v630
    %v728 = vunpack.c.l.b16 %v631
    %v729 = vunpack.c.h.b16 %v631
    %v730 = vunpack.c.l.b16 %v632
    %v731 = vunpack.c.h.b16 %v632
    %v732 = vunpack.c.l.b16 %v633
    %v733 = vunpack.c.h.b16 %v633
    %v734 = vunpack.c.l.b16 %v634
    %v735 = vunpack.c.h.b16 %v634
    %v736 = vunpack.c.l.b16 %v635
    %v737 = vunpack.c.h.b16 %v635
    %v738 = vunpack.c.l.b16 %v636
    %v739 = vunpack.c.h.b16 %v636
    %v740 = vunpack.c.l.b16 %v637
    %v741 = vunpack.c.h.b16 %v637
    %v742 = vunpack.c.l.b16 %v638
    %v743 = vunpack.c.h.b16 %v638
    %v744 = vunpack.c.l.b16 %v639
    %v745 = vunpack.c.h.b16 %v639
    %v746 = vunpack.c.l.b16 %v640
    %v747 = vunpack.c.h.b16 %v640
    %v748 = vunpack.c.l.b16 %v641
    %v749 = vunpack.c.h.b16 %v641
    %v750 = vunpack.c.l.b16 %v642
    %v751 = vunpack.c.h.b16 %v642
    %v752 = vunpack.c.l.b16 %v643
    %v753 = vunpack.c.h.b16 %v643
    %v754 = vunpack.c.l.b16 %v644
    %v755 = vunpack.c.h.b16 %v644
    %v756 = vunpack.c.l.b16 %v645
    %v757 = vunpack.c.h.b16 %v645
    %v758 = vunpack.c.l.b16 %v646
    %v759 = vunpack.c.h.b16 %v646
    %v760 = vunpack.c.l.b16 %v647
    %v761 = vunpack.c.h.b16 %v647
    %v762 = vunpack.c.l.b16 %v648
    %v763 = vunpack.c.h.b16 %v648
    %v764 = vunpack.c.l.b16 %v649
    %v765 = vunpack.c.h.b16 %v649
    %v766 = vunpack.c.l.b16 %v650
    %v767 = vunpack.c.h.b16 %v650
    %v768 = vunpack.c.l.b16 %v651
    %v769 = vunpack.c.h.b16 %v651
    %v770 = vunpack.c.l.b16 %v652
    %v771 = vunpack.c.h.b16 %v652
    %v772 = vunpack.c.l.b16 %v653
    %v773 = vunpack.c.h.b16 %v653
    %v774 = vunpack.c.l.b16 %v654
    %v775 = vunpack.c.h.b16 %v654
    %v776 = vpack.c.b16 %v714, %v712
    %v777 = vpack.c.b16 %v715, %v713
    %v778 = vpack.c.b16 %v718, %v716
    %v779 = vpack.c.b16 %v719, %v717
    %v780 = vpack.c.b16 %v722, %v720
    %v781 = vpack.c.b16 %v723, %v721
    %v782 = vpack.c.b16 %v726, %v724
    %v783 = vpack.c.b16 %v727, %v725
    %v784 = vpack.c.b16 %v730, %v728
    %v785 = vpack.c.b16 %v731, %v729
    %v786 = vpack.c.b16 %v734, %v732
    %v787 = vpack.c.b16 %v735, %v733
    %v788 = vpack.c.b16 %v738, %v736
    %v789 = vpack.c.b16 %v739, %v737
    %v790 = vpack.c.b16 %v742, %v740
    %v791 = vpack.c.b16 %v743, %v741
    %v792 = vpack.c.b16 %v746, %v744
    %v793 = vpack.c.b16 %v747, %v745
    %v794 = vpack.c.b16 %v750, %v748
    %v795 = vpack.c.b16 %v751, %v749
    %v796 = vpack.c.b16 %v754, %v752
    %v797 = vpack.c.b16 %v755, %v753
    %v798 = vpack.c.b16 %v758, %v756
    %v799 = vpack.c.b16 %v759, %v757
    %v800 = vpack.c.b16 %v762, %v760
    %v801 = vpack.c.b16 %v763, %v761
    %v802 = vpack.c.b16 %v766, %v764
    %v803 = vpack.c.b16 %v767, %v765
    %v804 = vpack.c.b16 %v770, %v768
    %v805 = vpack.c.b16 %v771, %v769
    %v806 = vpack.c.b16 %v774, %v772
    %v807 = vpack.c.b16 %v775, %v773
    %840 = vmatprep.subr.bf16.mxu0 %v791
    %841 = vmatpush1.bf16.msra.mxu0 %v790
    %842 = vmatprep.subr.bf16.mxu0 %v789
    %843 = vmatpush1.bf16.msra.mxu0 %v788
    %844 = vmatprep.subr.bf16.mxu0 %v787
    %845 = vmatpush1.bf16.msra.mxu0 %v786
    %846 = vmatprep.subr.bf16.mxu0 %v785
    %847 = vmatpush1.bf16.msra.mxu0 %v784
    %848 = vmatprep.subr.bf16.mxu0 %v783
    %849 = vmatpush1.bf16.msra.mxu0 %v782
    %850 = vmatprep.subr.bf16.mxu0 %v781
    %851 = vmatpush1.bf16.msra.mxu0 %v780
    %852 = vmatprep.subr.bf16.mxu0 %v779
    %853 = vmatpush1.bf16.msra.mxu0 %v778
    %854 = vmatprep.subr.bf16.mxu0 %v777
    %855 = vmatpush1.bf16.msra.mxu0 %v776
    %856 = vmatprep.subr.bf16.mxu0 %v807
    %857 = vmatpush2.bf16.msra.mxu0 %v806
    %858 = vmatprep.subr.bf16.mxu0 %v805
    %859 = vmatpush2.bf16.msra.mxu0 %v804
    %860 = vmatprep.subr.bf16.mxu0 %v803
    %861 = vmatpush2.bf16.msra.mxu0 %v802
    %862 = vmatprep.subr.bf16.mxu0 %v801
    %863 = vmatpush2.bf16.msra.mxu0 %v800
    %864 = vmatprep.subr.bf16.mxu0 %v799
    %865 = vmatpush2.bf16.msra.mxu0 %v798
    %866 = vmatprep.subr.bf16.mxu0 %v797
    %867 = vmatpush2.bf16.msra.mxu0 %v796
    %868 = vmatprep.subr.bf16.mxu0 %v795
    %869 = vmatpush2.bf16.msra.mxu0 %v794
    %870 = vmatprep.subr.bf16.mxu0 %v793
    %871 = vmatpush2.bf16.msra.mxu0 %v792
    %872 = vmatprep.mubr.bf16.mxu0 %v671
    %873 = vmatmul.mubr.bf16.gmra.mxu0 %v668
    %v874 = vpop.f32.mrf.mxu0
    %v875 = vadd.f32 0.0, %v874
    %v876 = vpop.f32.mrf.mxu0
    %v877 = vadd.f32 0.0, %v876
    %v878 = vpop.f32.mrf.mxu0
    %v879 = vadd.f32 0.0, %v878
    %v880 = vpop.f32.mrf.mxu0
    %v881 = vadd.f32 0.0, %v880
    %882 = vmatprep.mubr.bf16.mxu0 %v675
    %883 = vmatmul.mubr.bf16.gmra.mxu0 %v673
    %v884 = vpop.f32.mrf.mxu0
    %v885 = vadd.f32 0.0, %v884
    %v886 = vpop.f32.mrf.mxu0
    %v887 = vadd.f32 0.0, %v886
    %v888 = vpop.f32.mrf.mxu0
    %v889 = vadd.f32 0.0, %v888
    %v890 = vpop.f32.mrf.mxu0
    %v891 = vadd.f32 0.0, %v890
    %892 = vdwg.mxu0
    %v893 = vadd.f32 %v602, %v875
    %v894 = vadd.f32 %v604, %v877
    %v895 = vadd.f32 %v606, %v879
    %v896 = vadd.f32 %v608, %v881
    %v897 = vadd.f32 %v612, %v885
    %v898 = vadd.f32 %v614, %v887
    %v899 = vadd.f32 %v616, %v889
    %v900 = vadd.f32 %v618, %v891
    %v901 = vld [vmem:[#allocation5] ss:$8 sm:$0x3]
    %s902 = scalar_lea.vmem [#allocation5], 1
    %v903 = vld [vmem:[%s902] ss:$8 sm:$0x3]
    %v904 = vadd.f32 %v893, %v895
    %v905 = vadd.f32 %v904, %v897
    %v906 = vadd.f32 %v905, %v899
    %v907 = vrot.slane %v906, 4
    %v908 = vadd.f32 %v906, %v907
    %v909 = vrot.slane %v908, 2
    %v910 = vadd.f32 %v908, %v909
    %v911 = vrot.slane %v910, 1
    %v912 = vadd.f32 %v910, %v911
    %v913 = vadd.f32 %v894, %v896
    %v914 = vadd.f32 %v913, %v898
    %v915 = vadd.f32 %v914, %v900
    %v916 = vrot.slane %v915, 4
    %v917 = vadd.f32 %v915, %v916
    %v918 = vrot.slane %v917, 2
    %v919 = vadd.f32 %v917, %v918
    %v920 = vrot.slane %v919, 1
    %v921 = vadd.f32 %v919, %v920
    %922 = vrot.lane.b32.xlu0 %v912, 16
    %v923 = vpop.permute.xlu0 %922
    %924 = vrot.lane.b32.xlu0 %v921, 16
    %v925 = vpop.permute.xlu0 %924
    %v926 = vlaneseq
    %v927 = vand.u32 %v926, 127
    %vm928 = vcmp.lt.s32.totalorder %v927, 16
    %v929 = vsel %vm928, %v923, %v925
    %v930 = vsel %vm928, %v925, %v923
    %v931 = vadd.f32 %v912, %v930
    %v932 = vadd.f32 %v921, %v929
    %933 = vrot.lane.b32.xlu0 %v931, 32
    %v934 = vpop.permute.xlu0 %933
    %935 = vrot.lane.b32.xlu0 %v932, 32
    %v936 = vpop.permute.xlu0 %935
    %vm937 = vcmp.lt.s32.totalorder %v927, 32
    %v938 = vsel %vm937, %v934, %v936
    %v939 = vsel %vm937, %v936, %v934
    %v940 = vadd.f32 %v931, %v939
    %v941 = vadd.f32 %v932, %v938
    %942 = vrot.lane.b32.xlu0 %v940, 64
    %v943 = vpop.permute.xlu0 %942
    %944 = vrot.lane.b32.xlu0 %v941, 64
    %v945 = vpop.permute.xlu0 %944
    %vm946 = vcmp.lt.s32.totalorder %v927, 64
    %v947 = vsel %vm946, %v943, %v945
    %v948 = vsel %vm946, %v945, %v943
    %v949 = vadd.f32 %v940, %v948
    %v950 = vadd.f32 %v941, %v947
    %v951 = vadd.f32 %v949, %v950
    %v952 = vmul.f32 %v951, 0.001953125
    %v953 = vlaneseq
    %v954 = vshrl.u32 %v953, 7
    %v955 = vsub.s32 0, %v954
    %v956 = vrot.slane %v952, %v955
    %v957 = vsub.f32 %v893, %v956
    %v958 = vsub.f32 %v894, %v956
    %v959 = vsub.f32 %v895, %v956
    %v960 = vsub.f32 %v896, %v956
    %v961 = vsub.f32 %v897, %v956
    %v962 = vsub.f32 %v898, %v956
    %v963 = vsub.f32 %v899, %v956
    %v964 = vsub.f32 %v900, %v956
    %v965 = vmul.f32 %v957, %v957
    %v966 = vmul.f32 %v958, %v958
    %v967 = vmul.f32 %v959, %v959
    %v968 = vmul.f32 %v960, %v960
    %v969 = vmul.f32 %v961, %v961
    %v970 = vmul.f32 %v962, %v962
    %v971 = vmul.f32 %v963, %v963
    %v972 = vmul.f32 %v964, %v964
    %v973 = vadd.f32 %v965, %v967
    %v974 = vadd.f32 %v973, %v969
    %v975 = vadd.f32 %v974, %v971
    %v976 = vrot.slane %v975, 4
    %v977 = vadd.f32 %v975, %v976
    %v978 = vrot.slane %v977, 2
    %v979 = vadd.f32 %v977, %v978
    %v980 = vrot.slane %v979, 1
    %v981 = vadd.f32 %v979, %v980
    %v982 = vadd.f32 %v966, %v968
    %v983 = vadd.f32 %v982, %v970
    %v984 = vadd.f32 %v983, %v972
    %v985 = vrot.slane %v984, 4
    %v986 = vadd.f32 %v984, %v985
    %v987 = vrot.slane %v986, 2
    %v988 = vadd.f32 %v986, %v987
    %v989 = vrot.slane %v988, 1
    %v990 = vadd.f32 %v988, %v989
    %991 = vrot.lane.b32.xlu0 %v981, 16
    %v992 = vpop.permute.xlu0 %991
    %993 = vrot.lane.b32.xlu0 %v990, 16
    %v994 = vpop.permute.xlu0 %993
    %v995 = vsel %vm928, %v992, %v994
    %v996 = vsel %vm928, %v994, %v992
    %v997 = vadd.f32 %v981, %v996
    %v998 = vadd.f32 %v990, %v995
    %999 = vrot.lane.b32.xlu0 %v997, 32
    %v1000 = vpop.permute.xlu0 %999
    %1001 = vrot.lane.b32.xlu0 %v998, 32
    %v1002 = vpop.permute.xlu0 %1001
    %v1003 = vsel %vm937, %v1000, %v1002
    %v1004 = vsel %vm937, %v1002, %v1000
    %v1005 = vadd.f32 %v997, %v1004
    %v1006 = vadd.f32 %v998, %v1003
    %1007 = vrot.lane.b32.xlu0 %v1005, 64
    %v1008 = vpop.permute.xlu0 %1007
    %1009 = vrot.lane.b32.xlu0 %v1006, 64
    %v1010 = vpop.permute.xlu0 %1009
    %v1011 = vsel %vm946, %v1008, %v1010
    %v1012 = vsel %vm946, %v1010, %v1008
    %v1013 = vadd.f32 %v1005, %v1012
    %v1014 = vadd.f32 %v1006, %v1011
    %v1015 = vadd.f32 %v1013, %v1014
    %v1016 = vmul.f32 %v1015, 0.001953125
    %v1017 = vadd.f32 %v1016, 1e-05
    %v1018 = vrsqrt.pop %v1017
    %v1020 = vcombine.low %v1018, %v1018
    %v1022 = vunpack.c.l.s4 1966171168
    %v1023 = vunpack.c.0.s8 %v1022
    %v1024 = vlaneseq
    %v1025 = vshrl.u32 %v1024, 7
    %v1026 = vsub.s32 %v1023, %v1025
    %v1027 = vrot.slane %v1020, %v1026
    %v1029 = vunpack.c.l.s4 1966171168
    %v1030 = vunpack.c.0.s8 %v1029
    %v1031 = vlaneseq
    %v1032 = vshrl.u32 %v1031, 7
    %v1033 = vsub.s32 %v1030, %v1032
    %v1034 = vrot.slane %v1027, %v1033
    %v1036 = vmul.f32 %v901, %v1034
    %v1038 = vlaneseq
    %v1039 = vshrl.u32 %v1038, 7
    %v1040 = vsub.s32 0, %v1039
    %v1041 = vrot.slane %v1036, %v1040
    %v1042 = vlaneseq
    %v1043 = vshrl.u32 %v1042, 7
    %v1044 = vsub.s32 1, %v1043
    %v1045 = vrot.slane %v1036, %v1044
    %v1048 = vmul.f32 %v957, %v1041
    %v1049 = vmul.f32 %v958, %v1045
    %v1050 = vmul.f32 %v959, %v1041
    %v1051 = vmul.f32 %v960, %v1045
    %v1052 = vmul.f32 %v961, %v1041
    %v1053 = vmul.f32 %v962, %v1045
    %v1054 = vmul.f32 %v963, %v1041
    %v1055 = vmul.f32 %v964, %v1045
    %v1057 = vlaneseq
    %v1058 = vshrl.u32 %v1057, 7
    %v1059 = vsub.s32 0, %v1058
    %v1060 = vrot.slane %v903, %v1059
    %v1061 = vlaneseq
    %v1062 = vshrl.u32 %v1061, 7
    %v1063 = vsub.s32 1, %v1062
    %v1064 = vrot.slane %v903, %v1063
    %v1067 = vadd.f32 %v1048, %v1060
    %v1068 = vadd.f32 %v1049, %v1064
    %v1069 = vadd.f32 %v1050, %v1060
    %v1070 = vadd.f32 %v1051, %v1064
    %v1071 = vadd.f32 %v1052, %v1060
    %v1072 = vadd.f32 %v1053, %v1064
    %v1073 = vadd.f32 %v1054, %v1060
    %v1074 = vadd.f32 %v1055, %v1064
    %v1075 = vmax.f32 %v1067, 0.0
    %v1076 = vmax.f32 %v1068, 0.0
    %v1077 = vmax.f32 %v1069, 0.0
    %v1078 = vmax.f32 %v1070, 0.0
    %v1079 = vmax.f32 %v1071, 0.0
    %v1080 = vmax.f32 %v1072, 0.0
    %v1081 = vmax.f32 %v1073, 0.0
    %v1082 = vmax.f32 %v1074, 0.0
    %v1083 = vpack.c.bf16 %v1077, %v1075
    %v1084 = vpack.c.bf16 %v1078, %v1076
    %v1085 = vpack.c.bf16 %v1081, %v1079
    %v1086 = vpack.c.bf16 %v1082, %v1080
    %v1091 = vunpack.c.l.b16 %v1083
    %v1092 = vunpack.c.l.b16 %v1084
    %v1093 = vunpack.c.h.b16 %v1083
    %v1094 = vunpack.c.h.b16 %v1084
    %v1095 = vunpack.c.l.b16 %v1085
    %v1096 = vunpack.c.l.b16 %v1086
    %v1097 = vunpack.c.h.b16 %v1085
    %v1098 = vunpack.c.h.b16 %v1086
    %v1099 = vpack.c.b16 %v1092, %v1091
    %v1100 = vpack.c.b16 %v1094, %v1093
    %v1101 = vpack.c.b16 %v1096, %v1095
    %v1102 = vpack.c.b16 %v1098, %v1097
    %v1103 = vrot.slane %v1099, 7
    %v1104 = vrot.slane %v1103, 4
    %v1105 = vrot.slane %v1100, 7
    %v1106 = vsel %vm56, %v1104, %v1105
    %v1107 = vrot.slane %v1105, 4
    %v1108 = vrot.slane %v1101, 7
    %v1109 = vsel %vm56, %v1107, %v1108
    %v1110 = vrot.slane %v1108, 4
    %v1111 = vrot.slane %v1102, 7
    %v1112 = vsel %vm56, %v1110, %v1111
    %v1113 = vrot.slane %v1111, 4
    %1119 = vst [vmem:[#allocation2] sm:$0xee] %v1103
    %1120 = vst [vmem:[#allocation2 + $0x8] sm:$0xff] %v1106
    %1121 = vst [vmem:[#allocation2 + $0x10] sm:$0xff] %v1109
    %1122 = vst [vmem:[#allocation2 + $0x18] sm:$0xff] %v1112
    %1123 = vst [vmem:[#allocation2 + $0x20] sm:$0x11] %v1113
    %v1124 = vld [vmem:[#allocation2] sm:$0xff]
    %v1125 = vld [vmem:[#allocation2 + $0x8] sm:$0xff]
    %v1126 = vld [vmem:[#allocation2 + $0x10] sm:$0xff]
    %v1127 = vld [vmem:[#allocation2 + $0x18] sm:$0xff]
    %s1128 = scalar_lea.vmem [#allocation3], 768
    %v1129 = vld [vmem:[%s1128] sm:$0xff]
    %v1130 = vld [vmem:[%s1128 + $0x8] sm:$0xff]
    %v1131 = vld [vmem:[%s1128 + $0x10] sm:$0xff]
    %v1132 = vld [vmem:[%s1128 + $0x18] sm:$0xff]
    %v1133 = vld [vmem:[%s1128 + $0x20] sm:$0xff]
    %v1134 = vld [vmem:[%s1128 + $0x28] sm:$0xff]
    %v1135 = vld [vmem:[%s1128 + $0x30] sm:$0xff]
    %v1136 = vld [vmem:[%s1128 + $0x38] sm:$0xff]
    %v1137 = vld [vmem:[%s1128 + $0x40] sm:$0xff]
    %v1138 = vld [vmem:[%s1128 + $0x48] sm:$0xff]
    %v1139 = vld [vmem:[%s1128 + $0x50] sm:$0xff]
    %v1140 = vld [vmem:[%s1128 + $0x58] sm:$0xff]
    %v1141 = vld [vmem:[%s1128 + $0x60] sm:$0xff]
    %v1142 = vld [vmem:[%s1128 + $0x68] sm:$0xff]
    %v1143 = vld [vmem:[%s1128 + $0x70] sm:$0xff]
    %v1144 = vld [vmem:[%s1128 + $0x78] sm:$0xff]
    %v1145 = vld [vmem:[%s1128 + $0x80] sm:$0xff]
    %v1146 = vld [vmem:[%s1128 + $0x88] sm:$0xff]
    %v1147 = vld [vmem:[%s1128 + $0x90] sm:$0xff]
    %v1148 = vld [vmem:[%s1128 + $0x98] sm:$0xff]
    %v1149 = vld [vmem:[%s1128 + $0xa0] sm:$0xff]
    %v1150 = vld [vmem:[%s1128 + $0xa8] sm:$0xff]
    %v1151 = vld [vmem:[%s1128 + $0xb0] sm:$0xff]
    %v1152 = vld [vmem:[%s1128 + $0xb8] sm:$0xff]
    %v1153 = vld [vmem:[%s1128 + $0xc0] sm:$0xff]
    %v1154 = vld [vmem:[%s1128 + $0xc8] sm:$0xff]
    %v1155 = vld [vmem:[%s1128 + $0xd0] sm:$0xff]
    %v1156 = vld [vmem:[%s1128 + $0xd8] sm:$0xff]
    %v1157 = vld [vmem:[%s1128 + $0xe0] sm:$0xff]
    %v1158 = vld [vmem:[%s1128 + $0xe8] sm:$0xff]
    %v1159 = vld [vmem:[%s1128 + $0xf0] sm:$0xff]
    %v1160 = vld [vmem:[%s1128 + $0xf8] sm:$0xff]
    %v1161 = vld [vmem:[#allocation2] sm:$0xee]
    %v1162 = vld [vmem:[#allocation2 + $0x20] sm:$0x11]
    %s1163 = scalar_lea.vmem [#allocation3], 1024
    %v1164 = vld [vmem:[%s1163] sm:$0xff]
    %v1165 = vld [vmem:[%s1163 + $0x8] sm:$0xff]
    %v1166 = vld [vmem:[%s1163 + $0x10] sm:$0xff]
    %v1167 = vld [vmem:[%s1163 + $0x18] sm:$0xff]
    %v1168 = vld [vmem:[%s1163 + $0x20] sm:$0xff]
    %v1169 = vld [vmem:[%s1163 + $0x28] sm:$0xff]
    %v1170 = vld [vmem:[%s1163 + $0x30] sm:$0xff]
    %v1171 = vld [vmem:[%s1163 + $0x38] sm:$0xff]
    %v1172 = vld [vmem:[%s1163 + $0x40] sm:$0xff]
    %v1173 = vld [vmem:[%s1163 + $0x48] sm:$0xff]
    %v1174 = vld [vmem:[%s1163 + $0x50] sm:$0xff]
    %v1175 = vld [vmem:[%s1163 + $0x58] sm:$0xff]
    %v1176 = vld [vmem:[%s1163 + $0x60] sm:$0xff]
    %v1177 = vld [vmem:[%s1163 + $0x68] sm:$0xff]
    %v1178 = vld [vmem:[%s1163 + $0x70] sm:$0xff]
    %v1179 = vld [vmem:[%s1163 + $0x78] sm:$0xff]
    %v1180 = vld [vmem:[%s1163 + $0x80] sm:$0xff]
    %v1181 = vld [vmem:[%s1163 + $0x88] sm:$0xff]
    %v1182 = vld [vmem:[%s1163 + $0x90] sm:$0xff]
    %v1183 = vld [vmem:[%s1163 + $0x98] sm:$0xff]
    %v1184 = vld [vmem:[%s1163 + $0xa0] sm:$0xff]
    %v1185 = vld [vmem:[%s1163 + $0xa8] sm:$0xff]
    %v1186 = vld [vmem:[%s1163 + $0xb0] sm:$0xff]
    %v1187 = vld [vmem:[%s1163 + $0xb8] sm:$0xff]
    %v1188 = vld [vmem:[%s1163 + $0xc0] sm:$0xff]
    %v1189 = vld [vmem:[%s1163 + $0xc8] sm:$0xff]
    %v1190 = vld [vmem:[%s1163 + $0xd0] sm:$0xff]
    %v1191 = vld [vmem:[%s1163 + $0xd8] sm:$0xff]
    %v1192 = vld [vmem:[%s1163 + $0xe0] sm:$0xff]
    %v1193 = vld [vmem:[%s1163 + $0xe8] sm:$0xff]
    %v1194 = vld [vmem:[%s1163 + $0xf0] sm:$0xff]
    %v1195 = vld [vmem:[%s1163 + $0xf8] sm:$0xff]
    %v1201 = vunpack.c.l.b16 %v1161
    %v1202 = vunpack.c.h.b16 %v1161
    %v1203 = vunpack.c.l.b16 %v1125
    %v1204 = vunpack.c.h.b16 %v1125
    %v1205 = vunpack.c.l.b16 %v1126
    %v1206 = vunpack.c.h.b16 %v1126
    %v1207 = vunpack.c.l.b16 %v1127
    %v1208 = vunpack.c.h.b16 %v1127
    %v1209 = vunpack.c.l.b16 %v1162
    %v1210 = vunpack.c.h.b16 %v1162
    %v1211 = vpack.c.b16 %v1203, %v1201
    %v1212 = vpack.c.b16 %v1204, %v1202
    %v1213 = vpack.c.b16 %v1207, %v1205
    %v1214 = vpack.c.b16 %v1208, %v1206
    %v1215 = vpack.c.b16 %v1209, %v1209
    %v1216 = vpack.c.b16 %v1210, %v1210
    %v1217 = vrot.slane %v1211, 1
    %v1218 = vrot.slane %v1213, 1
    %v1219 = vsel %vm170, %v1217, %v1218
    %v1220 = vrot.slane %v1212, 1
    %v1221 = vrot.slane %v1214, 1
    %v1222 = vsel %vm170, %v1220, %v1221
    %v1223 = vrot.slane %v1215, 1
    %v1224 = vsel %vm170, %v1218, %v1223
    %v1225 = vrot.slane %v1216, 1
    %v1226 = vsel %vm170, %v1221, %v1225
    %v1263 = vunpack.c.l.b16 %v1164
    %v1264 = vunpack.c.h.b16 %v1164
    %v1265 = vunpack.c.l.b16 %v1165
    %v1266 = vunpack.c.h.b16 %v1165
    %v1267 = vunpack.c.l.b16 %v1166
    %v1268 = vunpack.c.h.b16 %v1166
    %v1269 = vunpack.c.l.b16 %v1167
    %v1270 = vunpack.c.h.b16 %v1167
    %v1271 = vunpack.c.l.b16 %v1168
    %v1272 = vunpack.c.h.b16 %v1168
    %v1273 = vunpack.c.l.b16 %v1169
    %v1274 = vunpack.c.h.b16 %v1169
    %v1275 = vunpack.c.l.b16 %v1170
    %v1276 = vunpack.c.h.b16 %v1170
    %v1277 = vunpack.c.l.b16 %v1171
    %v1278 = vunpack.c.h.b16 %v1171
    %v1279 = vunpack.c.l.b16 %v1172
    %v1280 = vunpack.c.h.b16 %v1172
    %v1281 = vunpack.c.l.b16 %v1173
    %v1282 = vunpack.c.h.b16 %v1173
    %v1283 = vunpack.c.l.b16 %v1174
    %v1284 = vunpack.c.h.b16 %v1174
    %v1285 = vunpack.c.l.b16 %v1175
    %v1286 = vunpack.c.h.b16 %v1175
    %v1287 = vunpack.c.l.b16 %v1176
    %v1288 = vunpack.c.h.b16 %v1176
    %v1289 = vunpack.c.l.b16 %v1177
    %v1290 = vunpack.c.h.b16 %v1177
    %v1291 = vunpack.c.l.b16 %v1178
    %v1292 = vunpack.c.h.b16 %v1178
    %v1293 = vunpack.c.l.b16 %v1179
    %v1294 = vunpack.c.h.b16 %v1179
    %v1295 = vunpack.c.l.b16 %v1180
    %v1296 = vunpack.c.h.b16 %v1180
    %v1297 = vunpack.c.l.b16 %v1181
    %v1298 = vunpack.c.h.b16 %v1181
    %v1299 = vunpack.c.l.b16 %v1182
    %v1300 = vunpack.c.h.b16 %v1182
    %v1301 = vunpack.c.l.b16 %v1183
    %v1302 = vunpack.c.h.b16 %v1183
    %v1303 = vunpack.c.l.b16 %v1184
    %v1304 = vunpack.c.h.b16 %v1184
    %v1305 = vunpack.c.l.b16 %v1185
    %v1306 = vunpack.c.h.b16 %v1185
    %v1307 = vunpack.c.l.b16 %v1186
    %v1308 = vunpack.c.h.b16 %v1186
    %v1309 = vunpack.c.l.b16 %v1187
    %v1310 = vunpack.c.h.b16 %v1187
    %v1311 = vunpack.c.l.b16 %v1188
    %v1312 = vunpack.c.h.b16 %v1188
    %v1313 = vunpack.c.l.b16 %v1189
    %v1314 = vunpack.c.h.b16 %v1189
    %v1315 = vunpack.c.l.b16 %v1190
    %v1316 = vunpack.c.h.b16 %v1190
    %v1317 = vunpack.c.l.b16 %v1191
    %v1318 = vunpack.c.h.b16 %v1191
    %v1319 = vunpack.c.l.b16 %v1192
    %v1320 = vunpack.c.h.b16 %v1192
    %v1321 = vunpack.c.l.b16 %v1193
    %v1322 = vunpack.c.h.b16 %v1193
    %v1323 = vunpack.c.l.b16 %v1194
    %v1324 = vunpack.c.h.b16 %v1194
    %v1325 = vunpack.c.l.b16 %v1195
    %v1326 = vunpack.c.h.b16 %v1195
    %v1327 = vpack.c.b16 %v1265, %v1263
    %v1328 = vpack.c.b16 %v1266, %v1264
    %v1329 = vpack.c.b16 %v1269, %v1267
    %v1330 = vpack.c.b16 %v1270, %v1268
    %v1331 = vpack.c.b16 %v1273, %v1271
    %v1332 = vpack.c.b16 %v1274, %v1272
    %v1333 = vpack.c.b16 %v1277, %v1275
    %v1334 = vpack.c.b16 %v1278, %v1276
    %v1335 = vpack.c.b16 %v1281, %v1279
    %v1336 = vpack.c.b16 %v1282, %v1280
    %v1337 = vpack.c.b16 %v1285, %v1283
    %v1338 = vpack.c.b16 %v1286, %v1284
    %v1339 = vpack.c.b16 %v1289, %v1287
    %v1340 = vpack.c.b16 %v1290, %v1288
    %v1341 = vpack.c.b16 %v1293, %v1291
    %v1342 = vpack.c.b16 %v1294, %v1292
    %v1343 = vpack.c.b16 %v1297, %v1295
    %v1344 = vpack.c.b16 %v1298, %v1296
    %v1345 = vpack.c.b16 %v1301, %v1299
    %v1346 = vpack.c.b16 %v1302, %v1300
    %v1347 = vpack.c.b16 %v1305, %v1303
    %v1348 = vpack.c.b16 %v1306, %v1304
    %v1349 = vpack.c.b16 %v1309, %v1307
    %v1350 = vpack.c.b16 %v1310, %v1308
    %v1351 = vpack.c.b16 %v1313, %v1311
    %v1352 = vpack.c.b16 %v1314, %v1312
    %v1353 = vpack.c.b16 %v1317, %v1315
    %v1354 = vpack.c.b16 %v1318, %v1316
    %v1355 = vpack.c.b16 %v1321, %v1319
    %v1356 = vpack.c.b16 %v1322, %v1320
    %v1357 = vpack.c.b16 %v1325, %v1323
    %v1358 = vpack.c.b16 %v1326, %v1324
    %1391 = vmatprep.subr.bf16.mxu0 %v1342
    %1392 = vmatpush1.bf16.msra.mxu0 %v1341
    %1393 = vmatprep.subr.bf16.mxu0 %v1340
    %1394 = vmatpush1.bf16.msra.mxu0 %v1339
    %1395 = vmatprep.subr.bf16.mxu0 %v1338
    %1396 = vmatpush1.bf16.msra.mxu0 %v1337
    %1397 = vmatprep.subr.bf16.mxu0 %v1336
    %1398 = vmatpush1.bf16.msra.mxu0 %v1335
    %1399 = vmatprep.subr.bf16.mxu0 %v1334
    %1400 = vmatpush1.bf16.msra.mxu0 %v1333
    %1401 = vmatprep.subr.bf16.mxu0 %v1332
    %1402 = vmatpush1.bf16.msra.mxu0 %v1331
    %1403 = vmatprep.subr.bf16.mxu0 %v1330
    %1404 = vmatpush1.bf16.msra.mxu0 %v1329
    %1405 = vmatprep.subr.bf16.mxu0 %v1328
    %1406 = vmatpush1.bf16.msra.mxu0 %v1327
    %1407 = vmatprep.subr.bf16.mxu0 %v1358
    %1408 = vmatpush2.bf16.msra.mxu0 %v1357
    %1409 = vmatprep.subr.bf16.mxu0 %v1356
    %1410 = vmatpush2.bf16.msra.mxu0 %v1355
    %1411 = vmatprep.subr.bf16.mxu0 %v1354
    %1412 = vmatpush2.bf16.msra.mxu0 %v1353
    %1413 = vmatprep.subr.bf16.mxu0 %v1352
    %1414 = vmatpush2.bf16.msra.mxu0 %v1351
    %1415 = vmatprep.subr.bf16.mxu0 %v1350
    %1416 = vmatpush2.bf16.msra.mxu0 %v1349
    %1417 = vmatprep.subr.bf16.mxu0 %v1348
    %1418 = vmatpush2.bf16.msra.mxu0 %v1347
    %1419 = vmatprep.subr.bf16.mxu0 %v1346
    %1420 = vmatpush2.bf16.msra.mxu0 %v1345
    %1421 = vmatprep.subr.bf16.mxu0 %v1344
    %1422 = vmatpush2.bf16.msra.mxu0 %v1343
    %1423 = vmatprep.mubr.bf16.mxu0 %v1222
    %1424 = vmatmul.mubr.bf16.gmra.mxu0 %v1219
    %v1425 = vpop.f32.mrf.mxu0
    %v1426 = vadd.f32 0.0, %v1425
    %v1427 = vpop.f32.mrf.mxu0
    %v1428 = vadd.f32 0.0, %v1427
    %v1429 = vpop.f32.mrf.mxu0
    %v1430 = vadd.f32 0.0, %v1429
    %v1431 = vpop.f32.mrf.mxu0
    %v1432 = vadd.f32 0.0, %v1431
    %1433 = vmatprep.mubr.bf16.mxu0 %v1226
    %1434 = vmatmul.mubr.bf16.gmra.mxu0 %v1224
    %v1435 = vpop.f32.mrf.mxu0
    %v1436 = vadd.f32 0.0, %v1435
    %v1437 = vpop.f32.mrf.mxu0
    %v1438 = vadd.f32 0.0, %v1437
    %v1439 = vpop.f32.mrf.mxu0
    %v1440 = vadd.f32 0.0, %v1439
    %v1441 = vpop.f32.mrf.mxu0
    %v1442 = vadd.f32 0.0, %v1441
    %1443 = vdwg.mxu0
    %v1445 = vunpack.c.l.b16 %v1124
    %v1446 = vunpack.c.h.b16 %v1124
    %v1447 = vpack.c.b16 %v1203, %v1445
    %v1448 = vpack.c.b16 %v1204, %v1446
    %v1485 = vunpack.c.l.b16 %v1129
    %v1486 = vunpack.c.h.b16 %v1129
    %v1487 = vunpack.c.l.b16 %v1130
    %v1488 = vunpack.c.h.b16 %v1130
    %v1489 = vunpack.c.l.b16 %v1131
    %v1490 = vunpack.c.h.b16 %v1131
    %v1491 = vunpack.c.l.b16 %v1132
    %v1492 = vunpack.c.h.b16 %v1132
    %v1493 = vunpack.c.l.b16 %v1133
    %v1494 = vunpack.c.h.b16 %v1133
    %v1495 = vunpack.c.l.b16 %v1134
    %v1496 = vunpack.c.h.b16 %v1134
    %v1497 = vunpack.c.l.b16 %v1135
    %v1498 = vunpack.c.h.b16 %v1135
    %v1499 = vunpack.c.l.b16 %v1136
    %v1500 = vunpack.c.h.b16 %v1136
    %v1501 = vunpack.c.l.b16 %v1137
    %v1502 = vunpack.c.h.b16 %v1137
    %v1503 = vunpack.c.l.b16 %v1138
    %v1504 = vunpack.c.h.b16 %v1138
    %v1505 = vunpack.c.l.b16 %v1139
    %v1506 = vunpack.c.h.b16 %v1139
    %v1507 = vunpack.c.l.b16 %v1140
    %v1508 = vunpack.c.h.b16 %v1140
    %v1509 = vunpack.c.l.b16 %v1141
    %v1510 = vunpack.c.h.b16 %v1141
    %v1511 = vunpack.c.l.b16 %v1142
    %v1512 = vunpack.c.h.b16 %v1142
    %v1513 = vunpack.c.l.b16 %v1143
    %v1514 = vunpack.c.h.b16 %v1143
    %v1515 = vunpack.c.l.b16 %v1144
    %v1516 = vunpack.c.h.b16 %v1144
    %v1517 = vunpack.c.l.b16 %v1145
    %v1518 = vunpack.c.h.b16 %v1145
    %v1519 = vunpack.c.l.b16 %v1146
    %v1520 = vunpack.c.h.b16 %v1146
    %v1521 = vunpack.c.l.b16 %v1147
    %v1522 = vunpack.c.h.b16 %v1147
    %v1523 = vunpack.c.l.b16 %v1148
    %v1524 = vunpack.c.h.b16 %v1148
    %v1525 = vunpack.c.l.b16 %v1149
    %v1526 = vunpack.c.h.b16 %v1149
    %v1527 = vunpack.c.l.b16 %v1150
    %v1528 = vunpack.c.h.b16 %v1150
    %v1529 = vunpack.c.l.b16 %v1151
    %v1530 = vunpack.c.h.b16 %v1151
    %v1531 = vunpack.c.l.b16 %v1152
    %v1532 = vunpack.c.h.b16 %v1152
    %v1533 = vunpack.c.l.b16 %v1153
    %v1534 = vunpack.c.h.b16 %v1153
    %v1535 = vunpack.c.l.b16 %v1154
    %v1536 = vunpack.c.h.b16 %v1154
    %v1537 = vunpack.c.l.b16 %v1155
    %v1538 = vunpack.c.h.b16 %v1155
    %v1539 = vunpack.c.l.b16 %v1156
    %v1540 = vunpack.c.h.b16 %v1156
    %v1541 = vunpack.c.l.b16 %v1157
    %v1542 = vunpack.c.h.b16 %v1157
    %v1543 = vunpack.c.l.b16 %v1158
    %v1544 = vunpack.c.h.b16 %v1158
    %v1545 = vunpack.c.l.b16 %v1159
    %v1546 = vunpack.c.h.b16 %v1159
    %v1547 = vunpack.c.l.b16 %v1160
    %v1548 = vunpack.c.h.b16 %v1160
    %v1549 = vpack.c.b16 %v1487, %v1485
    %v1550 = vpack.c.b16 %v1488, %v1486
    %v1551 = vpack.c.b16 %v1491, %v1489
    %v1552 = vpack.c.b16 %v1492, %v1490
    %v1553 = vpack.c.b16 %v1495, %v1493
    %v1554 = vpack.c.b16 %v1496, %v1494
    %v1555 = vpack.c.b16 %v1499, %v1497
    %v1556 = vpack.c.b16 %v1500, %v1498
    %v1557 = vpack.c.b16 %v1503, %v1501
    %v1558 = vpack.c.b16 %v1504, %v1502
    %v1559 = vpack.c.b16 %v1507, %v1505
    %v1560 = vpack.c.b16 %v1508, %v1506
    %v1561 = vpack.c.b16 %v1511, %v1509
    %v1562 = vpack.c.b16 %v1512, %v1510
    %v1563 = vpack.c.b16 %v1515, %v1513
    %v1564 = vpack.c.b16 %v1516, %v1514
    %v1565 = vpack.c.b16 %v1519, %v1517
    %v1566 = vpack.c.b16 %v1520, %v1518
    %v1567 = vpack.c.b16 %v1523, %v1521
    %v1568 = vpack.c.b16 %v1524, %v1522
    %v1569 = vpack.c.b16 %v1527, %v1525
    %v1570 = vpack.c.b16 %v1528, %v1526
    %v1571 = vpack.c.b16 %v1531, %v1529
    %v1572 = vpack.c.b16 %v1532, %v1530
    %v1573 = vpack.c.b16 %v1535, %v1533
    %v1574 = vpack.c.b16 %v1536, %v1534
    %v1575 = vpack.c.b16 %v1539, %v1537
    %v1576 = vpack.c.b16 %v1540, %v1538
    %v1577 = vpack.c.b16 %v1543, %v1541
    %v1578 = vpack.c.b16 %v1544, %v1542
    %v1579 = vpack.c.b16 %v1547, %v1545
    %v1580 = vpack.c.b16 %v1548, %v1546
    %1613 = vmatprep.subr.bf16.mxu0 %v1564
    %1614 = vmatpush1.bf16.msra.mxu0 %v1563
    %1615 = vmatprep.subr.bf16.mxu0 %v1562
    %1616 = vmatpush1.bf16.msra.mxu0 %v1561
    %1617 = vmatprep.subr.bf16.mxu0 %v1560
    %1618 = vmatpush1.bf16.msra.mxu0 %v1559
    %1619 = vmatprep.subr.bf16.mxu0 %v1558
    %1620 = vmatpush1.bf16.msra.mxu0 %v1557
    %1621 = vmatprep.subr.bf16.mxu0 %v1556
    %1622 = vmatpush1.bf16.msra.mxu0 %v1555
    %1623 = vmatprep.subr.bf16.mxu0 %v1554
    %1624 = vmatpush1.bf16.msra.mxu0 %v1553
    %1625 = vmatprep.subr.bf16.mxu0 %v1552
    %1626 = vmatpush1.bf16.msra.mxu0 %v1551
    %1627 = vmatprep.subr.bf16.mxu0 %v1550
    %1628 = vmatpush1.bf16.msra.mxu0 %v1549
    %1629 = vmatprep.subr.bf16.mxu0 %v1580
    %1630 = vmatpush2.bf16.msra.mxu0 %v1579
    %1631 = vmatprep.subr.bf16.mxu0 %v1578
    %1632 = vmatpush2.bf16.msra.mxu0 %v1577
    %1633 = vmatprep.subr.bf16.mxu0 %v1576
    %1634 = vmatpush2.bf16.msra.mxu0 %v1575
    %1635 = vmatprep.subr.bf16.mxu0 %v1574
    %1636 = vmatpush2.bf16.msra.mxu0 %v1573
    %1637 = vmatprep.subr.bf16.mxu0 %v1572
    %1638 = vmatpush2.bf16.msra.mxu0 %v1571
    %1639 = vmatprep.subr.bf16.mxu0 %v1570
    %1640 = vmatpush2.bf16.msra.mxu0 %v1569
    %1641 = vmatprep.subr.bf16.mxu0 %v1568
    %1642 = vmatpush2.bf16.msra.mxu0 %v1567
    %1643 = vmatprep.subr.bf16.mxu0 %v1566
    %1644 = vmatpush2.bf16.msra.mxu0 %v1565
    %1645 = vmatprep.mubr.bf16.mxu0 %v1448
    %1646 = vmatmul.mubr.bf16.gmra.mxu0 %v1447
    %v1647 = vpop.f32.mrf.mxu0
    %v1648 = vadd.f32 %v1426, %v1647
    %v1649 = vpop.f32.mrf.mxu0
    %v1650 = vadd.f32 %v1428, %v1649
    %v1651 = vpop.f32.mrf.mxu0
    %v1652 = vadd.f32 %v1430, %v1651
    %v1653 = vpop.f32.mrf.mxu0
    %v1654 = vadd.f32 %v1432, %v1653
    %1655 = vmatprep.mubr.bf16.mxu0 %v1214
    %1656 = vmatmul.mubr.bf16.gmra.mxu0 %v1213
    %v1657 = vpop.f32.mrf.mxu0
    %v1658 = vadd.f32 %v1436, %v1657
    %v1659 = vpop.f32.mrf.mxu0
    %v1660 = vadd.f32 %v1438, %v1659
    %v1661 = vpop.f32.mrf.mxu0
    %v1662 = vadd.f32 %v1440, %v1661
    %v1663 = vpop.f32.mrf.mxu0
    %v1664 = vadd.f32 %v1442, %v1663
    %1665 = vdwg.mxu0
    %v1666 = vld [vmem:[#allocation2] sm:$0xcc]
    %v1667 = vld [vmem:[#allocation2 + $0x20] sm:$0x33]
    %s1668 = scalar_lea.vmem [#allocation3], 1280
    %v1669 = vld [vmem:[%s1668] sm:$0xff]
    %v1670 = vld [vmem:[%s1668 + $0x8] sm:$0xff]
    %v1671 = vld [vmem:[%s1668 + $0x10] sm:$0xff]
    %v1672 = vld [vmem:[%s1668 + $0x18] sm:$0xff]
    %v1673 = vld [vmem:[%s1668 + $0x20] sm:$0xff]
    %v1674 = vld [vmem:[%s1668 + $0x28] sm:$0xff]
    %v1675 = vld [vmem:[%s1668 + $0x30] sm:$0xff]
    %v1676 = vld [vmem:[%s1668 + $0x38] sm:$0xff]
    %v1677 = vld [vmem:[%s1668 + $0x40] sm:$0xff]
    %v1678 = vld [vmem:[%s1668 + $0x48] sm:$0xff]
    %v1679 = vld [vmem:[%s1668 + $0x50] sm:$0xff]
    %v1680 = vld [vmem:[%s1668 + $0x58] sm:$0xff]
    %v1681 = vld [vmem:[%s1668 + $0x60] sm:$0xff]
    %v1682 = vld [vmem:[%s1668 + $0x68] sm:$0xff]
    %v1683 = vld [vmem:[%s1668 + $0x70] sm:$0xff]
    %v1684 = vld [vmem:[%s1668 + $0x78] sm:$0xff]
    %v1685 = vld [vmem:[%s1668 + $0x80] sm:$0xff]
    %v1686 = vld [vmem:[%s1668 + $0x88] sm:$0xff]
    %v1687 = vld [vmem:[%s1668 + $0x90] sm:$0xff]
    %v1688 = vld [vmem:[%s1668 + $0x98] sm:$0xff]
    %v1689 = vld [vmem:[%s1668 + $0xa0] sm:$0xff]
    %v1690 = vld [vmem:[%s1668 + $0xa8] sm:$0xff]
    %v1691 = vld [vmem:[%s1668 + $0xb0] sm:$0xff]
    %v1692 = vld [vmem:[%s1668 + $0xb8] sm:$0xff]
    %v1693 = vld [vmem:[%s1668 + $0xc0] sm:$0xff]
    %v1694 = vld [vmem:[%s1668 + $0xc8] sm:$0xff]
    %v1695 = vld [vmem:[%s1668 + $0xd0] sm:$0xff]
    %v1696 = vld [vmem:[%s1668 + $0xd8] sm:$0xff]
    %v1697 = vld [vmem:[%s1668 + $0xe0] sm:$0xff]
    %v1698 = vld [vmem:[%s1668 + $0xe8] sm:$0xff]
    %v1699 = vld [vmem:[%s1668 + $0xf0] sm:$0xff]
    %v1700 = vld [vmem:[%s1668 + $0xf8] sm:$0xff]
    %v1703 = vunpack.c.l.b16 %v1666
    %v1704 = vunpack.c.h.b16 %v1666
    %v1705 = vunpack.c.l.b16 %v1667
    %v1706 = vunpack.c.h.b16 %v1667
    %v1707 = vpack.c.b16 %v1203, %v1703
    %v1708 = vpack.c.b16 %v1204, %v1704
    %v1709 = vpack.c.b16 %v1705, %v1705
    %v1710 = vpack.c.b16 %v1706, %v1706
    %v1711 = vrot.slane %v1707, 2
    %v1712 = vrot.slane %v1213, 2
    %v1713 = vsel %vm665, %v1711, %v1712
    %v1714 = vrot.slane %v1708, 2
    %v1715 = vrot.slane %v1214, 2
    %v1716 = vsel %vm665, %v1714, %v1715
    %v1717 = vrot.slane %v1709, 2
    %v1718 = vsel %vm665, %v1712, %v1717
    %v1719 = vrot.slane %v1710, 2
    %v1720 = vsel %vm665, %v1715, %v1719
    %v1757 = vunpack.c.l.b16 %v1669
    %v1758 = vunpack.c.h.b16 %v1669
    %v1759 = vunpack.c.l.b16 %v1670
    %v1760 = vunpack.c.h.b16 %v1670
    %v1761 = vunpack.c.l.b16 %v1671
    %v1762 = vunpack.c.h.b16 %v1671
    %v1763 = vunpack.c.l.b16 %v1672
    %v1764 = vunpack.c.h.b16 %v1672
    %v1765 = vunpack.c.l.b16 %v1673
    %v1766 = vunpack.c.h.b16 %v1673
    %v1767 = vunpack.c.l.b16 %v1674
    %v1768 = vunpack.c.h.b16 %v1674
    %v1769 = vunpack.c.l.b16 %v1675
    %v1770 = vunpack.c.h.b16 %v1675
    %v1771 = vunpack.c.l.b16 %v1676
    %v1772 = vunpack.c.h.b16 %v1676
    %v1773 = vunpack.c.l.b16 %v1677
    %v1774 = vunpack.c.h.b16 %v1677
    %v1775 = vunpack.c.l.b16 %v1678
    %v1776 = vunpack.c.h.b16 %v1678
    %v1777 = vunpack.c.l.b16 %v1679
    %v1778 = vunpack.c.h.b16 %v1679
    %v1779 = vunpack.c.l.b16 %v1680
    %v1780 = vunpack.c.h.b16 %v1680
    %v1781 = vunpack.c.l.b16 %v1681
    %v1782 = vunpack.c.h.b16 %v1681
    %v1783 = vunpack.c.l.b16 %v1682
    %v1784 = vunpack.c.h.b16 %v1682
    %v1785 = vunpack.c.l.b16 %v1683
    %v1786 = vunpack.c.h.b16 %v1683
    %v1787 = vunpack.c.l.b16 %v1684
    %v1788 = vunpack.c.h.b16 %v1684
    %v1789 = vunpack.c.l.b16 %v1685
    %v1790 = vunpack.c.h.b16 %v1685
    %v1791 = vunpack.c.l.b16 %v1686
    %v1792 = vunpack.c.h.b16 %v1686
    %v1793 = vunpack.c.l.b16 %v1687
    %v1794 = vunpack.c.h.b16 %v1687
    %v1795 = vunpack.c.l.b16 %v1688
    %v1796 = vunpack.c.h.b16 %v1688
    %v1797 = vunpack.c.l.b16 %v1689
    %v1798 = vunpack.c.h.b16 %v1689
    %v1799 = vunpack.c.l.b16 %v1690
    %v1800 = vunpack.c.h.b16 %v1690
    %v1801 = vunpack.c.l.b16 %v1691
    %v1802 = vunpack.c.h.b16 %v1691
    %v1803 = vunpack.c.l.b16 %v1692
    %v1804 = vunpack.c.h.b16 %v1692
    %v1805 = vunpack.c.l.b16 %v1693
    %v1806 = vunpack.c.h.b16 %v1693
    %v1807 = vunpack.c.l.b16 %v1694
    %v1808 = vunpack.c.h.b16 %v1694
    %v1809 = vunpack.c.l.b16 %v1695
    %v1810 = vunpack.c.h.b16 %v1695
    %v1811 = vunpack.c.l.b16 %v1696
    %v1812 = vunpack.c.h.b16 %v1696
    %v1813 = vunpack.c.l.b16 %v1697
    %v1814 = vunpack.c.h.b16 %v1697
    %v1815 = vunpack.c.l.b16 %v1698
    %v1816 = vunpack.c.h.b16 %v1698
    %v1817 = vunpack.c.l.b16 %v1699
    %v1818 = vunpack.c.h.b16 %v1699
    %v1819 = vunpack.c.l.b16 %v1700
    %v1820 = vunpack.c.h.b16 %v1700
    %v1821 = vpack.c.b16 %v1759, %v1757
    %v1822 = vpack.c.b16 %v1760, %v1758
    %v1823 = vpack.c.b16 %v1763, %v1761
    %v1824 = vpack.c.b16 %v1764, %v1762
    %v1825 = vpack.c.b16 %v1767, %v1765
    %v1826 = vpack.c.b16 %v1768, %v1766
    %v1827 = vpack.c.b16 %v1771, %v1769
    %v1828 = vpack.c.b16 %v1772, %v1770
    %v1829 = vpack.c.b16 %v1775, %v1773
    %v1830 = vpack.c.b16 %v1776, %v1774
    %v1831 = vpack.c.b16 %v1779, %v1777
    %v1832 = vpack.c.b16 %v1780, %v1778
    %v1833 = vpack.c.b16 %v1783, %v1781
    %v1834 = vpack.c.b16 %v1784, %v1782
    %v1835 = vpack.c.b16 %v1787, %v1785
    %v1836 = vpack.c.b16 %v1788, %v1786
    %v1837 = vpack.c.b16 %v1791, %v1789
    %v1838 = vpack.c.b16 %v1792, %v1790
    %v1839 = vpack.c.b16 %v1795, %v1793
    %v1840 = vpack.c.b16 %v1796, %v1794
    %v1841 = vpack.c.b16 %v1799, %v1797
    %v1842 = vpack.c.b16 %v1800, %v1798
    %v1843 = vpack.c.b16 %v1803, %v1801
    %v1844 = vpack.c.b16 %v1804, %v1802
    %v1845 = vpack.c.b16 %v1807, %v1805
    %v1846 = vpack.c.b16 %v1808, %v1806
    %v1847 = vpack.c.b16 %v1811, %v1809
    %v1848 = vpack.c.b16 %v1812, %v1810
    %v1849 = vpack.c.b16 %v1815, %v1813
    %v1850 = vpack.c.b16 %v1816, %v1814
    %v1851 = vpack.c.b16 %v1819, %v1817
    %v1852 = vpack.c.b16 %v1820, %v1818
    %1885 = vmatprep.subr.bf16.mxu0 %v1836
    %1886 = vmatpush1.bf16.msra.mxu0 %v1835
    %1887 = vmatprep.subr.bf16.mxu0 %v1834
    %1888 = vmatpush1.bf16.msra.mxu0 %v1833
    %1889 = vmatprep.subr.bf16.mxu0 %v1832
    %1890 = vmatpush1.bf16.msra.mxu0 %v1831
    %1891 = vmatprep.subr.bf16.mxu0 %v1830
    %1892 = vmatpush1.bf16.msra.mxu0 %v1829
    %1893 = vmatprep.subr.bf16.mxu0 %v1828
    %1894 = vmatpush1.bf16.msra.mxu0 %v1827
    %1895 = vmatprep.subr.bf16.mxu0 %v1826
    %1896 = vmatpush1.bf16.msra.mxu0 %v1825
    %1897 = vmatprep.subr.bf16.mxu0 %v1824
    %1898 = vmatpush1.bf16.msra.mxu0 %v1823
    %1899 = vmatprep.subr.bf16.mxu0 %v1822
    %1900 = vmatpush1.bf16.msra.mxu0 %v1821
    %1901 = vmatprep.subr.bf16.mxu0 %v1852
    %1902 = vmatpush2.bf16.msra.mxu0 %v1851
    %1903 = vmatprep.subr.bf16.mxu0 %v1850
    %1904 = vmatpush2.bf16.msra.mxu0 %v1849
    %1905 = vmatprep.subr.bf16.mxu0 %v1848
    %1906 = vmatpush2.bf16.msra.mxu0 %v1847
    %1907 = vmatprep.subr.bf16.mxu0 %v1846
    %1908 = vmatpush2.bf16.msra.mxu0 %v1845
    %1909 = vmatprep.subr.bf16.mxu0 %v1844
    %1910 = vmatpush2.bf16.msra.mxu0 %v1843
    %1911 = vmatprep.subr.bf16.mxu0 %v1842
    %1912 = vmatpush2.bf16.msra.mxu0 %v1841
    %1913 = vmatprep.subr.bf16.mxu0 %v1840
    %1914 = vmatpush2.bf16.msra.mxu0 %v1839
    %1915 = vmatprep.subr.bf16.mxu0 %v1838
    %1916 = vmatpush2.bf16.msra.mxu0 %v1837
    %1917 = vmatprep.mubr.bf16.mxu0 %v1716
    %1918 = vmatmul.mubr.bf16.gmra.mxu0 %v1713
    %v1919 = vpop.f32.mrf.mxu0
    %v1920 = vadd.f32 0.0, %v1919
    %v1921 = vpop.f32.mrf.mxu0
    %v1922 = vadd.f32 0.0, %v1921
    %v1923 = vpop.f32.mrf.mxu0
    %v1924 = vadd.f32 0.0, %v1923
    %v1925 = vpop.f32.mrf.mxu0
    %v1926 = vadd.f32 0.0, %v1925
    %1927 = vmatprep.mubr.bf16.mxu0 %v1720
    %1928 = vmatmul.mubr.bf16.gmra.mxu0 %v1718
    %v1929 = vpop.f32.mrf.mxu0
    %v1930 = vadd.f32 0.0, %v1929
    %v1931 = vpop.f32.mrf.mxu0
    %v1932 = vadd.f32 0.0, %v1931
    %v1933 = vpop.f32.mrf.mxu0
    %v1934 = vadd.f32 0.0, %v1933
    %v1935 = vpop.f32.mrf.mxu0
    %v1936 = vadd.f32 0.0, %v1935
    %1937 = vdwg.mxu0
    %v1938 = vadd.f32 %v1648, %v1920
    %v1939 = vadd.f32 %v1650, %v1922
    %v1940 = vadd.f32 %v1652, %v1924
    %v1941 = vadd.f32 %v1654, %v1926
    %v1942 = vadd.f32 %v1658, %v1930
    %v1943 = vadd.f32 %v1660, %v1932
    %v1944 = vadd.f32 %v1662, %v1934
    %v1945 = vadd.f32 %v1664, %v1936
    %s1946 = scalar_lea.vmem [#allocation5], 2
    %v1947 = vld [vmem:[%s1946] ss:$8 sm:$0x3]
    %s1948 = scalar_lea.vmem [#allocation5], 3
    %v1949 = vld [vmem:[%s1948] ss:$8 sm:$0x3]
    %v1950 = vadd.f32 %v1938, %v1940
    %v1951 = vadd.f32 %v1950, %v1942
    %v1952 = vadd.f32 %v1951, %v1944
    %v1953 = vrot.slane %v1952, 4
    %v1954 = vadd.f32 %v1952, %v1953
    %v1955 = vrot.slane %v1954, 2
    %v1956 = vadd.f32 %v1954, %v1955
    %v1957 = vrot.slane %v1956, 1
    %v1958 = vadd.f32 %v1956, %v1957
    %v1959 = vadd.f32 %v1939, %v1941
    %v1960 = vadd.f32 %v1959, %v1943
    %v1961 = vadd.f32 %v1960, %v1945
    %v1962 = vrot.slane %v1961, 4
    %v1963 = vadd.f32 %v1961, %v1962
    %v1964 = vrot.slane %v1963, 2
    %v1965 = vadd.f32 %v1963, %v1964
    %v1966 = vrot.slane %v1965, 1
    %v1967 = vadd.f32 %v1965, %v1966
    %1968 = vrot.lane.b32.xlu0 %v1958, 16
    %v1969 = vpop.permute.xlu0 %1968
    %1970 = vrot.lane.b32.xlu0 %v1967, 16
    %v1971 = vpop.permute.xlu0 %1970
    %v1972 = vsel %vm928, %v1969, %v1971
    %v1973 = vsel %vm928, %v1971, %v1969
    %v1974 = vadd.f32 %v1958, %v1973
    %v1975 = vadd.f32 %v1967, %v1972
    %1976 = vrot.lane.b32.xlu0 %v1974, 32
    %v1977 = vpop.permute.xlu0 %1976
    %1978 = vrot.lane.b32.xlu0 %v1975, 32
    %v1979 = vpop.permute.xlu0 %1978
    %v1980 = vsel %vm937, %v1977, %v1979
    %v1981 = vsel %vm937, %v1979, %v1977
    %v1982 = vadd.f32 %v1974, %v1981
    %v1983 = vadd.f32 %v1975, %v1980
    %1984 = vrot.lane.b32.xlu0 %v1982, 64
    %v1985 = vpop.permute.xlu0 %1984
    %1986 = vrot.lane.b32.xlu0 %v1983, 64
    %v1987 = vpop.permute.xlu0 %1986
    %v1988 = vsel %vm946, %v1985, %v1987
    %v1989 = vsel %vm946, %v1987, %v1985
    %v1990 = vadd.f32 %v1982, %v1989
    %v1991 = vadd.f32 %v1983, %v1988
    %v1992 = vadd.f32 %v1990, %v1991
    %v1993 = vmul.f32 %v1992, 0.001953125
    %v1994 = vlaneseq
    %v1995 = vshrl.u32 %v1994, 7
    %v1996 = vsub.s32 0, %v1995
    %v1997 = vrot.slane %v1993, %v1996
    %v1998 = vsub.f32 %v1938, %v1997
    %v1999 = vsub.f32 %v1939, %v1997
    %v2000 = vsub.f32 %v1940, %v1997
    %v2001 = vsub.f32 %v1941, %v1997
    %v2002 = vsub.f32 %v1942, %v1997
    %v2003 = vsub.f32 %v1943, %v1997
    %v2004 = vsub.f32 %v1944, %v1997
    %v2005 = vsub.f32 %v1945, %v1997
    %v2006 = vmul.f32 %v1998, %v1998
    %v2007 = vmul.f32 %v1999, %v1999
    %v2008 = vmul.f32 %v2000, %v2000
    %v2009 = vmul.f32 %v2001, %v2001
    %v2010 = vmul.f32 %v2002, %v2002
    %v2011 = vmul.f32 %v2003, %v2003
    %v2012 = vmul.f32 %v2004, %v2004
    %v2013 = vmul.f32 %v2005, %v2005
    %v2014 = vadd.f32 %v2006, %v2008
    %v2015 = vadd.f32 %v2014, %v2010
    %v2016 = vadd.f32 %v2015, %v2012
    %v2017 = vrot.slane %v2016, 4
    %v2018 = vadd.f32 %v2016, %v2017
    %v2019 = vrot.slane %v2018, 2
    %v2020 = vadd.f32 %v2018, %v2019
    %v2021 = vrot.slane %v2020, 1
    %v2022 = vadd.f32 %v2020, %v2021
    %v2023 = vadd.f32 %v2007, %v2009
    %v2024 = vadd.f32 %v2023, %v2011
    %v2025 = vadd.f32 %v2024, %v2013
    %v2026 = vrot.slane %v2025, 4
    %v2027 = vadd.f32 %v2025, %v2026
    %v2028 = vrot.slane %v2027, 2
    %v2029 = vadd.f32 %v2027, %v2028
    %v2030 = vrot.slane %v2029, 1
    %v2031 = vadd.f32 %v2029, %v2030
    %2032 = vrot.lane.b32.xlu0 %v2022, 16
    %v2033 = vpop.permute.xlu0 %2032
    %2034 = vrot.lane.b32.xlu0 %v2031, 16
    %v2035 = vpop.permute.xlu0 %2034
    %v2036 = vsel %vm928, %v2033, %v2035
    %v2037 = vsel %vm928, %v2035, %v2033
    %v2038 = vadd.f32 %v2022, %v2037
    %v2039 = vadd.f32 %v2031, %v2036
    %2040 = vrot.lane.b32.xlu0 %v2038, 32
    %v2041 = vpop.permute.xlu0 %2040
    %2042 = vrot.lane.b32.xlu0 %v2039, 32
    %v2043 = vpop.permute.xlu0 %2042
    %v2044 = vsel %vm937, %v2041, %v2043
    %v2045 = vsel %vm937, %v2043, %v2041
    %v2046 = vadd.f32 %v2038, %v2045
    %v2047 = vadd.f32 %v2039, %v2044
    %2048 = vrot.lane.b32.xlu0 %v2046, 64
    %v2049 = vpop.permute.xlu0 %2048
    %2050 = vrot.lane.b32.xlu0 %v2047, 64
    %v2051 = vpop.permute.xlu0 %2050
    %v2052 = vsel %vm946, %v2049, %v2051
    %v2053 = vsel %vm946, %v2051, %v2049
    %v2054 = vadd.f32 %v2046, %v2053
    %v2055 = vadd.f32 %v2047, %v2052
    %v2056 = vadd.f32 %v2054, %v2055
    %v2057 = vmul.f32 %v2056, 0.001953125
    %v2058 = vadd.f32 %v2057, 1e-05
    %v2059 = vrsqrt.pop %v2058
    %v2061 = vcombine.low %v2059, %v2059
    %v2063 = vunpack.c.l.s4 1966171168
    %v2064 = vunpack.c.0.s8 %v2063
    %v2065 = vlaneseq
    %v2066 = vshrl.u32 %v2065, 7
    %v2067 = vsub.s32 %v2064, %v2066
    %v2068 = vrot.slane %v2061, %v2067
    %v2070 = vunpack.c.l.s4 1966171168
    %v2071 = vunpack.c.0.s8 %v2070
    %v2072 = vlaneseq
    %v2073 = vshrl.u32 %v2072, 7
    %v2074 = vsub.s32 %v2071, %v2073
    %v2075 = vrot.slane %v2068, %v2074
    %v2077 = vmul.f32 %v1947, %v2075
    %v2079 = vlaneseq
    %v2080 = vshrl.u32 %v2079, 7
    %v2081 = vsub.s32 0, %v2080
    %v2082 = vrot.slane %v2077, %v2081
    %v2083 = vlaneseq
    %v2084 = vshrl.u32 %v2083, 7
    %v2085 = vsub.s32 1, %v2084
    %v2086 = vrot.slane %v2077, %v2085
    %v2089 = vmul.f32 %v1998, %v2082
    %v2090 = vmul.f32 %v1999, %v2086
    %v2091 = vmul.f32 %v2000, %v2082
    %v2092 = vmul.f32 %v2001, %v2086
    %v2093 = vmul.f32 %v2002, %v2082
    %v2094 = vmul.f32 %v2003, %v2086
    %v2095 = vmul.f32 %v2004, %v2082
    %v2096 = vmul.f32 %v2005, %v2086
    %v2098 = vlaneseq
    %v2099 = vshrl.u32 %v2098, 7
    %v2100 = vsub.s32 0, %v2099
    %v2101 = vrot.slane %v1949, %v2100
    %v2102 = vlaneseq
    %v2103 = vshrl.u32 %v2102, 7
    %v2104 = vsub.s32 1, %v2103
    %v2105 = vrot.slane %v1949, %v2104
    %v2108 = vadd.f32 %v2089, %v2101
    %v2109 = vadd.f32 %v2090, %v2105
    %v2110 = vadd.f32 %v2091, %v2101
    %v2111 = vadd.f32 %v2092, %v2105
    %v2112 = vadd.f32 %v2093, %v2101
    %v2113 = vadd.f32 %v2094, %v2105
    %v2114 = vadd.f32 %v2095, %v2101
    %v2115 = vadd.f32 %v2096, %v2105
    %v2116 = vmax.f32 %v2108, 0.0
    %v2117 = vmax.f32 %v2109, 0.0
    %v2118 = vmax.f32 %v2110, 0.0
    %v2119 = vmax.f32 %v2111, 0.0
    %v2120 = vmax.f32 %v2112, 0.0
    %v2121 = vmax.f32 %v2113, 0.0
    %v2122 = vmax.f32 %v2114, 0.0
    %v2123 = vmax.f32 %v2115, 0.0
    %v2124 = vpack.c.bf16 %v2118, %v2116
    %v2125 = vpack.c.bf16 %v2119, %v2117
    %v2126 = vpack.c.bf16 %v2122, %v2120
    %v2127 = vpack.c.bf16 %v2123, %v2121
    %v2132 = vunpack.c.l.b16 %v2124
    %v2133 = vunpack.c.l.b16 %v2125
    %v2134 = vunpack.c.h.b16 %v2124
    %v2135 = vunpack.c.h.b16 %v2125
    %v2136 = vunpack.c.l.b16 %v2126
    %v2137 = vunpack.c.l.b16 %v2127
    %v2138 = vunpack.c.h.b16 %v2126
    %v2139 = vunpack.c.h.b16 %v2127
    %v2140 = vpack.c.b16 %v2133, %v2132
    %v2141 = vpack.c.b16 %v2135, %v2134
    %v2142 = vpack.c.b16 %v2137, %v2136
    %v2143 = vpack.c.b16 %v2139, %v2138
    %v2144 = vrot.slane %v2140, 7
    %v2145 = vrot.slane %v2144, 4
    %v2146 = vrot.slane %v2141, 7
    %v2147 = vsel %vm56, %v2145, %v2146
    %v2148 = vrot.slane %v2146, 4
    %v2149 = vrot.slane %v2142, 7
    %v2150 = vsel %vm56, %v2148, %v2149
    %v2151 = vrot.slane %v2149, 4
    %v2152 = vrot.slane %v2143, 7
    %v2153 = vsel %vm56, %v2151, %v2152
    %v2154 = vrot.slane %v2152, 4
    %2160 = vst [vmem:[#allocation2] sm:$0xee] %v2144
    %2161 = vst [vmem:[#allocation2 + $0x8] sm:$0xff] %v2147
    %2162 = vst [vmem:[#allocation2 + $0x10] sm:$0xff] %v2150
    %2163 = vst [vmem:[#allocation2 + $0x18] sm:$0xff] %v2153
    %2164 = vst [vmem:[#allocation2 + $0x20] sm:$0x11] %v2154
    %v2165 = vld [vmem:[#allocation2] sm:$0xff]
    %v2166 = vld [vmem:[#allocation2 + $0x8] sm:$0xff]
    %v2167 = vld [vmem:[#allocation2 + $0x10] sm:$0xff]
    %v2168 = vld [vmem:[#allocation2 + $0x18] sm:$0xff]
    %s2169 = scalar_lea.vmem [#allocation3], 1536
    %v2170 = vld [vmem:[%s2169] sm:$0xff]
    %v2171 = vld [vmem:[%s2169 + $0x8] sm:$0xff]
    %v2172 = vld [vmem:[%s2169 + $0x10] sm:$0xff]
    %v2173 = vld [vmem:[%s2169 + $0x18] sm:$0xff]
    %v2174 = vld [vmem:[%s2169 + $0x20] sm:$0xff]
    %v2175 = vld [vmem:[%s2169 + $0x28] sm:$0xff]
    %v2176 = vld [vmem:[%s2169 + $0x30] sm:$0xff]
    %v2177 = vld [vmem:[%s2169 + $0x38] sm:$0xff]
    %v2178 = vld [vmem:[%s2169 + $0x40] sm:$0xff]
    %v2179 = vld [vmem:[%s2169 + $0x48] sm:$0xff]
    %v2180 = vld [vmem:[%s2169 + $0x50] sm:$0xff]
    %v2181 = vld [vmem:[%s2169 + $0x58] sm:$0xff]
    %v2182 = vld [vmem:[%s2169 + $0x60] sm:$0xff]
    %v2183 = vld [vmem:[%s2169 + $0x68] sm:$0xff]
    %v2184 = vld [vmem:[%s2169 + $0x70] sm:$0xff]
    %v2185 = vld [vmem:[%s2169 + $0x78] sm:$0xff]
    %v2186 = vld [vmem:[%s2169 + $0x80] sm:$0xff]
    %v2187 = vld [vmem:[%s2169 + $0x88] sm:$0xff]
    %v2188 = vld [vmem:[%s2169 + $0x90] sm:$0xff]
    %v2189 = vld [vmem:[%s2169 + $0x98] sm:$0xff]
    %v2190 = vld [vmem:[%s2169 + $0xa0] sm:$0xff]
    %v2191 = vld [vmem:[%s2169 + $0xa8] sm:$0xff]
    %v2192 = vld [vmem:[%s2169 + $0xb0] sm:$0xff]
    %v2193 = vld [vmem:[%s2169 + $0xb8] sm:$0xff]
    %v2194 = vld [vmem:[%s2169 + $0xc0] sm:$0xff]
    %v2195 = vld [vmem:[%s2169 + $0xc8] sm:$0xff]
    %v2196 = vld [vmem:[%s2169 + $0xd0] sm:$0xff]
    %v2197 = vld [vmem:[%s2169 + $0xd8] sm:$0xff]
    %v2198 = vld [vmem:[%s2169 + $0xe0] sm:$0xff]
    %v2199 = vld [vmem:[%s2169 + $0xe8] sm:$0xff]
    %v2200 = vld [vmem:[%s2169 + $0xf0] sm:$0xff]
    %v2201 = vld [vmem:[%s2169 + $0xf8] sm:$0xff]
    %v2202 = vld [vmem:[#allocation2] sm:$0xee]
    %v2203 = vld [vmem:[#allocation2 + $0x20] sm:$0x11]
    %s2204 = scalar_lea.vmem [#allocation3], 1792
    %v2205 = vld [vmem:[%s2204] sm:$0xff]
    %v2206 = vld [vmem:[%s2204 + $0x8] sm:$0xff]
    %v2207 = vld [vmem:[%s2204 + $0x10] sm:$0xff]
    %v2208 = vld [vmem:[%s2204 + $0x18] sm:$0xff]
    %v2209 = vld [vmem:[%s2204 + $0x20] sm:$0xff]
    %v2210 = vld [vmem:[%s2204 + $0x28] sm:$0xff]
    %v2211 = vld [vmem:[%s2204 + $0x30] sm:$0xff]
    %v2212 = vld [vmem:[%s2204 + $0x38] sm:$0xff]
    %v2213 = vld [vmem:[%s2204 + $0x40] sm:$0xff]
    %v2214 = vld [vmem:[%s2204 + $0x48] sm:$0xff]
    %v2215 = vld [vmem:[%s2204 + $0x50] sm:$0xff]
    %v2216 = vld [vmem:[%s2204 + $0x58] sm:$0xff]
    %v2217 = vld [vmem:[%s2204 + $0x60] sm:$0xff]
    %v2218 = vld [vmem:[%s2204 + $0x68] sm:$0xff]
    %v2219 = vld [vmem:[%s2204 + $0x70] sm:$0xff]
    %v2220 = vld [vmem:[%s2204 + $0x78] sm:$0xff]
    %v2221 = vld [vmem:[%s2204 + $0x80] sm:$0xff]
    %v2222 = vld [vmem:[%s2204 + $0x88] sm:$0xff]
    %v2223 = vld [vmem:[%s2204 + $0x90] sm:$0xff]
    %v2224 = vld [vmem:[%s2204 + $0x98] sm:$0xff]
    %v2225 = vld [vmem:[%s2204 + $0xa0] sm:$0xff]
    %v2226 = vld [vmem:[%s2204 + $0xa8] sm:$0xff]
    %v2227 = vld [vmem:[%s2204 + $0xb0] sm:$0xff]
    %v2228 = vld [vmem:[%s2204 + $0xb8] sm:$0xff]
    %v2229 = vld [vmem:[%s2204 + $0xc0] sm:$0xff]
    %v2230 = vld [vmem:[%s2204 + $0xc8] sm:$0xff]
    %v2231 = vld [vmem:[%s2204 + $0xd0] sm:$0xff]
    %v2232 = vld [vmem:[%s2204 + $0xd8] sm:$0xff]
    %v2233 = vld [vmem:[%s2204 + $0xe0] sm:$0xff]
    %v2234 = vld [vmem:[%s2204 + $0xe8] sm:$0xff]
    %v2235 = vld [vmem:[%s2204 + $0xf0] sm:$0xff]
    %v2236 = vld [vmem:[%s2204 + $0xf8] sm:$0xff]
    %v2242 = vunpack.c.l.b16 %v2202
    %v2243 = vunpack.c.h.b16 %v2202
    %v2244 = vunpack.c.l.b16 %v2166
    %v2245 = vunpack.c.h.b16 %v2166
    %v2246 = vunpack.c.l.b16 %v2167
    %v2247 = vunpack.c.h.b16 %v2167
    %v2248 = vunpack.c.l.b16 %v2168
    %v2249 = vunpack.c.h.b16 %v2168
    %v2250 = vunpack.c.l.b16 %v2203
    %v2251 = vunpack.c.h.b16 %v2203
    %v2252 = vpack.c.b16 %v2244, %v2242
    %v2253 = vpack.c.b16 %v2245, %v2243
    %v2254 = vpack.c.b16 %v2248, %v2246
    %v2255 = vpack.c.b16 %v2249, %v2247
    %v2256 = vpack.c.b16 %v2250, %v2250
    %v2257 = vpack.c.b16 %v2251, %v2251
    %v2258 = vrot.slane %v2252, 1
    %v2259 = vrot.slane %v2254, 1
    %v2260 = vsel %vm170, %v2258, %v2259
    %v2261 = vrot.slane %v2253, 1
    %v2262 = vrot.slane %v2255, 1
    %v2263 = vsel %vm170, %v2261, %v2262
    %v2264 = vrot.slane %v2256, 1
    %v2265 = vsel %vm170, %v2259, %v2264
    %v2266 = vrot.slane %v2257, 1
    %v2267 = vsel %vm170, %v2262, %v2266
    %v2304 = vunpack.c.l.b16 %v2205
    %v2305 = vunpack.c.h.b16 %v2205
    %v2306 = vunpack.c.l.b16 %v2206
    %v2307 = vunpack.c.h.b16 %v2206
    %v2308 = vunpack.c.l.b16 %v2207
    %v2309 = vunpack.c.h.b16 %v2207
    %v2310 = vunpack.c.l.b16 %v2208
    %v2311 = vunpack.c.h.b16 %v2208
    %v2312 = vunpack.c.l.b16 %v2209
    %v2313 = vunpack.c.h.b16 %v2209
    %v2314 = vunpack.c.l.b16 %v2210
    %v2315 = vunpack.c.h.b16 %v2210
    %v2316 = vunpack.c.l.b16 %v2211
    %v2317 = vunpack.c.h.b16 %v2211
    %v2318 = vunpack.c.l.b16 %v2212
    %v2319 = vunpack.c.h.b16 %v2212
    %v2320 = vunpack.c.l.b16 %v2213
    %v2321 = vunpack.c.h.b16 %v2213
    %v2322 = vunpack.c.l.b16 %v2214
    %v2323 = vunpack.c.h.b16 %v2214
    %v2324 = vunpack.c.l.b16 %v2215
    %v2325 = vunpack.c.h.b16 %v2215
    %v2326 = vunpack.c.l.b16 %v2216
    %v2327 = vunpack.c.h.b16 %v2216
    %v2328 = vunpack.c.l.b16 %v2217
    %v2329 = vunpack.c.h.b16 %v2217
    %v2330 = vunpack.c.l.b16 %v2218
    %v2331 = vunpack.c.h.b16 %v2218
    %v2332 = vunpack.c.l.b16 %v2219
    %v2333 = vunpack.c.h.b16 %v2219
    %v2334 = vunpack.c.l.b16 %v2220
    %v2335 = vunpack.c.h.b16 %v2220
    %v2336 = vunpack.c.l.b16 %v2221
    %v2337 = vunpack.c.h.b16 %v2221
    %v2338 = vunpack.c.l.b16 %v2222
    %v2339 = vunpack.c.h.b16 %v2222
    %v2340 = vunpack.c.l.b16 %v2223
    %v2341 = vunpack.c.h.b16 %v2223
    %v2342 = vunpack.c.l.b16 %v2224
    %v2343 = vunpack.c.h.b16 %v2224
    %v2344 = vunpack.c.l.b16 %v2225
    %v2345 = vunpack.c.h.b16 %v2225
    %v2346 = vunpack.c.l.b16 %v2226
    %v2347 = vunpack.c.h.b16 %v2226
    %v2348 = vunpack.c.l.b16 %v2227
    %v2349 = vunpack.c.h.b16 %v2227
    %v2350 = vunpack.c.l.b16 %v2228
    %v2351 = vunpack.c.h.b16 %v2228
    %v2352 = vunpack.c.l.b16 %v2229
    %v2353 = vunpack.c.h.b16 %v2229
    %v2354 = vunpack.c.l.b16 %v2230
    %v2355 = vunpack.c.h.b16 %v2230
    %v2356 = vunpack.c.l.b16 %v2231
    %v2357 = vunpack.c.h.b16 %v2231
    %v2358 = vunpack.c.l.b16 %v2232
    %v2359 = vunpack.c.h.b16 %v2232
    %v2360 = vunpack.c.l.b16 %v2233
    %v2361 = vunpack.c.h.b16 %v2233
    %v2362 = vunpack.c.l.b16 %v2234
    %v2363 = vunpack.c.h.b16 %v2234
    %v2364 = vunpack.c.l.b16 %v2235
    %v2365 = vunpack.c.h.b16 %v2235
    %v2366 = vunpack.c.l.b16 %v2236
    %v2367 = vunpack.c.h.b16 %v2236
    %v2368 = vpack.c.b16 %v2306, %v2304
    %v2369 = vpack.c.b16 %v2307, %v2305
    %v2370 = vpack.c.b16 %v2310, %v2308
    %v2371 = vpack.c.b16 %v2311, %v2309
    %v2372 = vpack.c.b16 %v2314, %v2312
    %v2373 = vpack.c.b16 %v2315, %v2313
    %v2374 = vpack.c.b16 %v2318, %v2316
    %v2375 = vpack.c.b16 %v2319, %v2317
    %v2376 = vpack.c.b16 %v2322, %v2320
    %v2377 = vpack.c.b16 %v2323, %v2321
    %v2378 = vpack.c.b16 %v2326, %v2324
    %v2379 = vpack.c.b16 %v2327, %v2325
    %v2380 = vpack.c.b16 %v2330, %v2328
    %v2381 = vpack.c.b16 %v2331, %v2329
    %v2382 = vpack.c.b16 %v2334, %v2332
    %v2383 = vpack.c.b16 %v2335, %v2333
    %v2384 = vpack.c.b16 %v2338, %v2336
    %v2385 = vpack.c.b16 %v2339, %v2337
    %v2386 = vpack.c.b16 %v2342, %v2340
    %v2387 = vpack.c.b16 %v2343, %v2341
    %v2388 = vpack.c.b16 %v2346, %v2344
    %v2389 = vpack.c.b16 %v2347, %v2345
    %v2390 = vpack.c.b16 %v2350, %v2348
    %v2391 = vpack.c.b16 %v2351, %v2349
    %v2392 = vpack.c.b16 %v2354, %v2352
    %v2393 = vpack.c.b16 %v2355, %v2353
    %v2394 = vpack.c.b16 %v2358, %v2356
    %v2395 = vpack.c.b16 %v2359, %v2357
    %v2396 = vpack.c.b16 %v2362, %v2360
    %v2397 = vpack.c.b16 %v2363, %v2361
    %v2398 = vpack.c.b16 %v2366, %v2364
    %v2399 = vpack.c.b16 %v2367, %v2365
    %2432 = vmatprep.subr.bf16.mxu0 %v2383
    %2433 = vmatpush1.bf16.msra.mxu0 %v2382
    %2434 = vmatprep.subr.bf16.mxu0 %v2381
    %2435 = vmatpush1.bf16.msra.mxu0 %v2380
    %2436 = vmatprep.subr.bf16.mxu0 %v2379
    %2437 = vmatpush1.bf16.msra.mxu0 %v2378
    %2438 = vmatprep.subr.bf16.mxu0 %v2377
    %2439 = vmatpush1.bf16.msra.mxu0 %v2376
    %2440 = vmatprep.subr.bf16.mxu0 %v2375
    %2441 = vmatpush1.bf16.msra.mxu0 %v2374
    %2442 = vmatprep.subr.bf16.mxu0 %v2373
    %2443 = vmatpush1.bf16.msra.mxu0 %v2372
    %2444 = vmatprep.subr.bf16.mxu0 %v2371
    %2445 = vmatpush1.bf16.msra.mxu0 %v2370
    %2446 = vmatprep.subr.bf16.mxu0 %v2369
    %2447 = vmatpush1.bf16.msra.mxu0 %v2368
    %2448 = vmatprep.subr.bf16.mxu0 %v2399
    %2449 = vmatpush2.bf16.msra.mxu0 %v2398
    %2450 = vmatprep.subr.bf16.mxu0 %v2397
    %2451 = vmatpush2.bf16.msra.mxu0 %v2396
    %2452 = vmatprep.subr.bf16.mxu0 %v2395
    %2453 = vmatpush2.bf16.msra.mxu0 %v2394
    %2454 = vmatprep.subr.bf16.mxu0 %v2393
    %2455 = vmatpush2.bf16.msra.mxu0 %v2392
    %2456 = vmatprep.subr.bf16.mxu0 %v2391
    %2457 = vmatpush2.bf16.msra.mxu0 %v2390
    %2458 = vmatprep.subr.bf16.mxu0 %v2389
    %2459 = vmatpush2.bf16.msra.mxu0 %v2388
    %2460 = vmatprep.subr.bf16.mxu0 %v2387
    %2461 = vmatpush2.bf16.msra.mxu0 %v2386
    %2462 = vmatprep.subr.bf16.mxu0 %v2385
    %2463 = vmatpush2.bf16.msra.mxu0 %v2384
    %2464 = vmatprep.mubr.bf16.mxu0 %v2263
    %2465 = vmatmul.mubr.bf16.gmra.mxu0 %v2260
    %v2466 = vpop.f32.mrf.mxu0
    %v2467 = vadd.f32 0.0, %v2466
    %v2468 = vpop.f32.mrf.mxu0
    %v2469 = vadd.f32 0.0, %v2468
    %v2470 = vpop.f32.mrf.mxu0
    %v2471 = vadd.f32 0.0, %v2470
    %v2472 = vpop.f32.mrf.mxu0
    %v2473 = vadd.f32 0.0, %v2472
    %2474 = vmatprep.mubr.bf16.mxu0 %v2267
    %2475 = vmatmul.mubr.bf16.gmra.mxu0 %v2265
    %v2476 = vpop.f32.mrf.mxu0
    %v2477 = vadd.f32 0.0, %v2476
    %v2478 = vpop.f32.mrf.mxu0
    %v2479 = vadd.f32 0.0, %v2478
    %v2480 = vpop.f32.mrf.mxu0
    %v2481 = vadd.f32 0.0, %v2480
    %v2482 = vpop.f32.mrf.mxu0
    %v2483 = vadd.f32 0.0, %v2482
    %2484 = vdwg.mxu0
    %v2486 = vunpack.c.l.b16 %v2165
    %v2487 = vunpack.c.h.b16 %v2165
    %v2488 = vpack.c.b16 %v2244, %v2486
    %v2489 = vpack.c.b16 %v2245, %v2487
    %v2526 = vunpack.c.l.b16 %v2170
    %v2527 = vunpack.c.h.b16 %v2170
    %v2528 = vunpack.c.l.b16 %v2171
    %v2529 = vunpack.c.h.b16 %v2171
    %v2530 = vunpack.c.l.b16 %v2172
    %v2531 = vunpack.c.h.b16 %v2172
    %v2532 = vunpack.c.l.b16 %v2173
    %v2533 = vunpack.c.h.b16 %v2173
    %v2534 = vunpack.c.l.b16 %v2174
    %v2535 = vunpack.c.h.b16 %v2174
    %v2536 = vunpack.c.l.b16 %v2175
    %v2537 = vunpack.c.h.b16 %v2175
    %v2538 = vunpack.c.l.b16 %v2176
    %v2539 = vunpack.c.h.b16 %v2176
    %v2540 = vunpack.c.l.b16 %v2177
    %v2541 = vunpack.c.h.b16 %v2177
    %v2542 = vunpack.c.l.b16 %v2178
    %v2543 = vunpack.c.h.b16 %v2178
    %v2544 = vunpack.c.l.b16 %v2179
    %v2545 = vunpack.c.h.b16 %v2179
    %v2546 = vunpack.c.l.b16 %v2180
    %v2547 = vunpack.c.h.b16 %v2180
    %v2548 = vunpack.c.l.b16 %v2181
    %v2549 = vunpack.c.h.b16 %v2181
    %v2550 = vunpack.c.l.b16 %v2182
    %v2551 = vunpack.c.h.b16 %v2182
    %v2552 = vunpack.c.l.b16 %v2183
    %v2553 = vunpack.c.h.b16 %v2183
    %v2554 = vunpack.c.l.b16 %v2184
    %v2555 = vunpack.c.h.b16 %v2184
    %v2556 = vunpack.c.l.b16 %v2185
    %v2557 = vunpack.c.h.b16 %v2185
    %v2558 = vunpack.c.l.b16 %v2186
    %v2559 = vunpack.c.h.b16 %v2186
    %v2560 = vunpack.c.l.b16 %v2187
    %v2561 = vunpack.c.h.b16 %v2187
    %v2562 = vunpack.c.l.b16 %v2188
    %v2563 = vunpack.c.h.b16 %v2188
    %v2564 = vunpack.c.l.b16 %v2189
    %v2565 = vunpack.c.h.b16 %v2189
    %v2566 = vunpack.c.l.b16 %v2190
    %v2567 = vunpack.c.h.b16 %v2190
    %v2568 = vunpack.c.l.b16 %v2191
    %v2569 = vunpack.c.h.b16 %v2191
    %v2570 = vunpack.c.l.b16 %v2192
    %v2571 = vunpack.c.h.b16 %v2192
    %v2572 = vunpack.c.l.b16 %v2193
    %v2573 = vunpack.c.h.b16 %v2193
    %v2574 = vunpack.c.l.b16 %v2194
    %v2575 = vunpack.c.h.b16 %v2194
    %v2576 = vunpack.c.l.b16 %v2195
    %v2577 = vunpack.c.h.b16 %v2195
    %v2578 = vunpack.c.l.b16 %v2196
    %v2579 = vunpack.c.h.b16 %v2196
    %v2580 = vunpack.c.l.b16 %v2197
    %v2581 = vunpack.c.h.b16 %v2197
    %v2582 = vunpack.c.l.b16 %v2198
    %v2583 = vunpack.c.h.b16 %v2198
    %v2584 = vunpack.c.l.b16 %v2199
    %v2585 = vunpack.c.h.b16 %v2199
    %v2586 = vunpack.c.l.b16 %v2200
    %v2587 = vunpack.c.h.b16 %v2200
    %v2588 = vunpack.c.l.b16 %v2201
    %v2589 = vunpack.c.h.b16 %v2201
    %v2590 = vpack.c.b16 %v2528, %v2526
    %v2591 = vpack.c.b16 %v2529, %v2527
    %v2592 = vpack.c.b16 %v2532, %v2530
    %v2593 = vpack.c.b16 %v2533, %v2531
    %v2594 = vpack.c.b16 %v2536, %v2534
    %v2595 = vpack.c.b16 %v2537, %v2535
    %v2596 = vpack.c.b16 %v2540, %v2538
    %v2597 = vpack.c.b16 %v2541, %v2539
    %v2598 = vpack.c.b16 %v2544, %v2542
    %v2599 = vpack.c.b16 %v2545, %v2543
    %v2600 = vpack.c.b16 %v2548, %v2546
    %v2601 = vpack.c.b16 %v2549, %v2547
    %v2602 = vpack.c.b16 %v2552, %v2550
    %v2603 = vpack.c.b16 %v2553, %v2551
    %v2604 = vpack.c.b16 %v2556, %v2554
    %v2605 = vpack.c.b16 %v2557, %v2555
    %v2606 = vpack.c.b16 %v2560, %v2558
    %v2607 = vpack.c.b16 %v2561, %v2559
    %v2608 = vpack.c.b16 %v2564, %v2562
    %v2609 = vpack.c.b16 %v2565, %v2563
    %v2610 = vpack.c.b16 %v2568, %v2566
    %v2611 = vpack.c.b16 %v2569, %v2567
    %v2612 = vpack.c.b16 %v2572, %v2570
    %v2613 = vpack.c.b16 %v2573, %v2571
    %v2614 = vpack.c.b16 %v2576, %v2574
    %v2615 = vpack.c.b16 %v2577, %v2575
    %v2616 = vpack.c.b16 %v2580, %v2578
    %v2617 = vpack.c.b16 %v2581, %v2579
    %v2618 = vpack.c.b16 %v2584, %v2582
    %v2619 = vpack.c.b16 %v2585, %v2583
    %v2620 = vpack.c.b16 %v2588, %v2586
    %v2621 = vpack.c.b16 %v2589, %v2587
    %2654 = vmatprep.subr.bf16.mxu0 %v2605
    %2655 = vmatpush1.bf16.msra.mxu0 %v2604
    %2656 = vmatprep.subr.bf16.mxu0 %v2603
    %2657 = vmatpush1.bf16.msra.mxu0 %v2602
    %2658 = vmatprep.subr.bf16.mxu0 %v2601
    %2659 = vmatpush1.bf16.msra.mxu0 %v2600
    %2660 = vmatprep.subr.bf16.mxu0 %v2599
    %2661 = vmatpush1.bf16.msra.mxu0 %v2598
    %2662 = vmatprep.subr.bf16.mxu0 %v2597
    %2663 = vmatpush1.bf16.msra.mxu0 %v2596
    %2664 = vmatprep.subr.bf16.mxu0 %v2595
    %2665 = vmatpush1.bf16.msra.mxu0 %v2594
    %2666 = vmatprep.subr.bf16.mxu0 %v2593
    %2667 = vmatpush1.bf16.msra.mxu0 %v2592
    %2668 = vmatprep.subr.bf16.mxu0 %v2591
    %2669 = vmatpush1.bf16.msra.mxu0 %v2590
    %2670 = vmatprep.subr.bf16.mxu0 %v2621
    %2671 = vmatpush2.bf16.msra.mxu0 %v2620
    %2672 = vmatprep.subr.bf16.mxu0 %v2619
    %2673 = vmatpush2.bf16.msra.mxu0 %v2618
    %2674 = vmatprep.subr.bf16.mxu0 %v2617
    %2675 = vmatpush2.bf16.msra.mxu0 %v2616
    %2676 = vmatprep.subr.bf16.mxu0 %v2615
    %2677 = vmatpush2.bf16.msra.mxu0 %v2614
    %2678 = vmatprep.subr.bf16.mxu0 %v2613
    %2679 = vmatpush2.bf16.msra.mxu0 %v2612
    %2680 = vmatprep.subr.bf16.mxu0 %v2611
    %2681 = vmatpush2.bf16.msra.mxu0 %v2610
    %2682 = vmatprep.subr.bf16.mxu0 %v2609
    %2683 = vmatpush2.bf16.msra.mxu0 %v2608
    %2684 = vmatprep.subr.bf16.mxu0 %v2607
    %2685 = vmatpush2.bf16.msra.mxu0 %v2606
    %2686 = vmatprep.mubr.bf16.mxu0 %v2489
    %2687 = vmatmul.mubr.bf16.gmra.mxu0 %v2488
    %v2688 = vpop.f32.mrf.mxu0
    %v2689 = vadd.f32 %v2467, %v2688
    %v2690 = vpop.f32.mrf.mxu0
    %v2691 = vadd.f32 %v2469, %v2690
    %v2692 = vpop.f32.mrf.mxu0
    %v2693 = vadd.f32 %v2471, %v2692
    %v2694 = vpop.f32.mrf.mxu0
    %v2695 = vadd.f32 %v2473, %v2694
    %2696 = vmatprep.mubr.bf16.mxu0 %v2255
    %2697 = vmatmul.mubr.bf16.gmra.mxu0 %v2254
    %v2698 = vpop.f32.mrf.mxu0
    %v2699 = vadd.f32 %v2477, %v2698
    %v2700 = vpop.f32.mrf.mxu0
    %v2701 = vadd.f32 %v2479, %v2700
    %v2702 = vpop.f32.mrf.mxu0
    %v2703 = vadd.f32 %v2481, %v2702
    %v2704 = vpop.f32.mrf.mxu0
    %v2705 = vadd.f32 %v2483, %v2704
    %2706 = vdwg.mxu0
    %v2707 = vld [vmem:[#allocation2] sm:$0xcc]
    %v2708 = vld [vmem:[#allocation2 + $0x20] sm:$0x33]
    %s2709 = scalar_lea.vmem [#allocation3], 2048
    %v2710 = vld [vmem:[%s2709] sm:$0xff]
    %v2711 = vld [vmem:[%s2709 + $0x8] sm:$0xff]
    %v2712 = vld [vmem:[%s2709 + $0x10] sm:$0xff]
    %v2713 = vld [vmem:[%s2709 + $0x18] sm:$0xff]
    %v2714 = vld [vmem:[%s2709 + $0x20] sm:$0xff]
    %v2715 = vld [vmem:[%s2709 + $0x28] sm:$0xff]
    %v2716 = vld [vmem:[%s2709 + $0x30] sm:$0xff]
    %v2717 = vld [vmem:[%s2709 + $0x38] sm:$0xff]
    %v2718 = vld [vmem:[%s2709 + $0x40] sm:$0xff]
    %v2719 = vld [vmem:[%s2709 + $0x48] sm:$0xff]
    %v2720 = vld [vmem:[%s2709 + $0x50] sm:$0xff]
    %v2721 = vld [vmem:[%s2709 + $0x58] sm:$0xff]
    %v2722 = vld [vmem:[%s2709 + $0x60] sm:$0xff]
    %v2723 = vld [vmem:[%s2709 + $0x68] sm:$0xff]
    %v2724 = vld [vmem:[%s2709 + $0x70] sm:$0xff]
    %v2725 = vld [vmem:[%s2709 + $0x78] sm:$0xff]
    %v2726 = vld [vmem:[%s2709 + $0x80] sm:$0xff]
    %v2727 = vld [vmem:[%s2709 + $0x88] sm:$0xff]
    %v2728 = vld [vmem:[%s2709 + $0x90] sm:$0xff]
    %v2729 = vld [vmem:[%s2709 + $0x98] sm:$0xff]
    %v2730 = vld [vmem:[%s2709 + $0xa0] sm:$0xff]
    %v2731 = vld [vmem:[%s2709 + $0xa8] sm:$0xff]
    %v2732 = vld [vmem:[%s2709 + $0xb0] sm:$0xff]
    %v2733 = vld [vmem:[%s2709 + $0xb8] sm:$0xff]
    %v2734 = vld [vmem:[%s2709 + $0xc0] sm:$0xff]
    %v2735 = vld [vmem:[%s2709 + $0xc8] sm:$0xff]
    %v2736 = vld [vmem:[%s2709 + $0xd0] sm:$0xff]
    %v2737 = vld [vmem:[%s2709 + $0xd8] sm:$0xff]
    %v2738 = vld [vmem:[%s2709 + $0xe0] sm:$0xff]
    %v2739 = vld [vmem:[%s2709 + $0xe8] sm:$0xff]
    %v2740 = vld [vmem:[%s2709 + $0xf0] sm:$0xff]
    %v2741 = vld [vmem:[%s2709 + $0xf8] sm:$0xff]
    %v2744 = vunpack.c.l.b16 %v2707
    %v2745 = vunpack.c.h.b16 %v2707
    %v2746 = vunpack.c.l.b16 %v2708
    %v2747 = vunpack.c.h.b16 %v2708
    %v2748 = vpack.c.b16 %v2244, %v2744
    %v2749 = vpack.c.b16 %v2245, %v2745
    %v2750 = vpack.c.b16 %v2746, %v2746
    %v2751 = vpack.c.b16 %v2747, %v2747
    %v2752 = vrot.slane %v2748, 2
    %v2753 = vrot.slane %v2254, 2
    %v2754 = vsel %vm665, %v2752, %v2753
    %v2755 = vrot.slane %v2749, 2
    %v2756 = vrot.slane %v2255, 2
    %v2757 = vsel %vm665, %v2755, %v2756
    %v2758 = vrot.slane %v2750, 2
    %v2759 = vsel %vm665, %v2753, %v2758
    %v2760 = vrot.slane %v2751, 2
    %v2761 = vsel %vm665, %v2756, %v2760
    %v2798 = vunpack.c.l.b16 %v2710
    %v2799 = vunpack.c.h.b16 %v2710
    %v2800 = vunpack.c.l.b16 %v2711
    %v2801 = vunpack.c.h.b16 %v2711
    %v2802 = vunpack.c.l.b16 %v2712
    %v2803 = vunpack.c.h.b16 %v2712
    %v2804 = vunpack.c.l.b16 %v2713
    %v2805 = vunpack.c.h.b16 %v2713
    %v2806 = vunpack.c.l.b16 %v2714
    %v2807 = vunpack.c.h.b16 %v2714
    %v2808 = vunpack.c.l.b16 %v2715
    %v2809 = vunpack.c.h.b16 %v2715
    %v2810 = vunpack.c.l.b16 %v2716
    %v2811 = vunpack.c.h.b16 %v2716
    %v2812 = vunpack.c.l.b16 %v2717
    %v2813 = vunpack.c.h.b16 %v2717
    %v2814 = vunpack.c.l.b16 %v2718
    %v2815 = vunpack.c.h.b16 %v2718
    %v2816 = vunpack.c.l.b16 %v2719
    %v2817 = vunpack.c.h.b16 %v2719
    %v2818 = vunpack.c.l.b16 %v2720
    %v2819 = vunpack.c.h.b16 %v2720
    %v2820 = vunpack.c.l.b16 %v2721
    %v2821 = vunpack.c.h.b16 %v2721
    %v2822 = vunpack.c.l.b16 %v2722
    %v2823 = vunpack.c.h.b16 %v2722
    %v2824 = vunpack.c.l.b16 %v2723
    %v2825 = vunpack.c.h.b16 %v2723
    %v2826 = vunpack.c.l.b16 %v2724
    %v2827 = vunpack.c.h.b16 %v2724
    %v2828 = vunpack.c.l.b16 %v2725
    %v2829 = vunpack.c.h.b16 %v2725
    %v2830 = vunpack.c.l.b16 %v2726
    %v2831 = vunpack.c.h.b16 %v2726
    %v2832 = vunpack.c.l.b16 %v2727
    %v2833 = vunpack.c.h.b16 %v2727
    %v2834 = vunpack.c.l.b16 %v2728
    %v2835 = vunpack.c.h.b16 %v2728
    %v2836 = vunpack.c.l.b16 %v2729
    %v2837 = vunpack.c.h.b16 %v2729
    %v2838 = vunpack.c.l.b16 %v2730
    %v2839 = vunpack.c.h.b16 %v2730
    %v2840 = vunpack.c.l.b16 %v2731
    %v2841 = vunpack.c.h.b16 %v2731
    %v2842 = vunpack.c.l.b16 %v2732
    %v2843 = vunpack.c.h.b16 %v2732
    %v2844 = vunpack.c.l.b16 %v2733
    %v2845 = vunpack.c.h.b16 %v2733
    %v2846 = vunpack.c.l.b16 %v2734
    %v2847 = vunpack.c.h.b16 %v2734
    %v2848 = vunpack.c.l.b16 %v2735
    %v2849 = vunpack.c.h.b16 %v2735
    %v2850 = vunpack.c.l.b16 %v2736
    %v2851 = vunpack.c.h.b16 %v2736
    %v2852 = vunpack.c.l.b16 %v2737
    %v2853 = vunpack.c.h.b16 %v2737
    %v2854 = vunpack.c.l.b16 %v2738
    %v2855 = vunpack.c.h.b16 %v2738
    %v2856 = vunpack.c.l.b16 %v2739
    %v2857 = vunpack.c.h.b16 %v2739
    %v2858 = vunpack.c.l.b16 %v2740
    %v2859 = vunpack.c.h.b16 %v2740
    %v2860 = vunpack.c.l.b16 %v2741
    %v2861 = vunpack.c.h.b16 %v2741
    %v2862 = vpack.c.b16 %v2800, %v2798
    %v2863 = vpack.c.b16 %v2801, %v2799
    %v2864 = vpack.c.b16 %v2804, %v2802
    %v2865 = vpack.c.b16 %v2805, %v2803
    %v2866 = vpack.c.b16 %v2808, %v2806
    %v2867 = vpack.c.b16 %v2809, %v2807
    %v2868 = vpack.c.b16 %v2812, %v2810
    %v2869 = vpack.c.b16 %v2813, %v2811
    %v2870 = vpack.c.b16 %v2816, %v2814
    %v2871 = vpack.c.b16 %v2817, %v2815
    %v2872 = vpack.c.b16 %v2820, %v2818
    %v2873 = vpack.c.b16 %v2821, %v2819
    %v2874 = vpack.c.b16 %v2824, %v2822
    %v2875 = vpack.c.b16 %v2825, %v2823
    %v2876 = vpack.c.b16 %v2828, %v2826
    %v2877 = vpack.c.b16 %v2829, %v2827
    %v2878 = vpack.c.b16 %v2832, %v2830
    %v2879 = vpack.c.b16 %v2833, %v2831
    %v2880 = vpack.c.b16 %v2836, %v2834
    %v2881 = vpack.c.b16 %v2837, %v2835
    %v2882 = vpack.c.b16 %v2840, %v2838
    %v2883 = vpack.c.b16 %v2841, %v2839
    %v2884 = vpack.c.b16 %v2844, %v2842
    %v2885 = vpack.c.b16 %v2845, %v2843
    %v2886 = vpack.c.b16 %v2848, %v2846
    %v2887 = vpack.c.b16 %v2849, %v2847
    %v2888 = vpack.c.b16 %v2852, %v2850
    %v2889 = vpack.c.b16 %v2853, %v2851
    %v2890 = vpack.c.b16 %v2856, %v2854
    %v2891 = vpack.c.b16 %v2857, %v2855
    %v2892 = vpack.c.b16 %v2860, %v2858
    %v2893 = vpack.c.b16 %v2861, %v2859
    %2926 = vmatprep.subr.bf16.mxu0 %v2877
    %2927 = vmatpush1.bf16.msra.mxu0 %v2876
    %2928 = vmatprep.subr.bf16.mxu0 %v2875
    %2929 = vmatpush1.bf16.msra.mxu0 %v2874
    %2930 = vmatprep.subr.bf16.mxu0 %v2873
    %2931 = vmatpush1.bf16.msra.mxu0 %v2872
    %2932 = vmatprep.subr.bf16.mxu0 %v2871
    %2933 = vmatpush1.bf16.msra.mxu0 %v2870
    %2934 = vmatprep.subr.bf16.mxu0 %v2869
    %2935 = vmatpush1.bf16.msra.mxu0 %v2868
    %2936 = vmatprep.subr.bf16.mxu0 %v2867
    %2937 = vmatpush1.bf16.msra.mxu0 %v2866
    %2938 = vmatprep.subr.bf16.mxu0 %v2865
    %2939 = vmatpush1.bf16.msra.mxu0 %v2864
    %2940 = vmatprep.subr.bf16.mxu0 %v2863
    %2941 = vmatpush1.bf16.msra.mxu0 %v2862
    %2942 = vmatprep.subr.bf16.mxu0 %v2893
    %2943 = vmatpush2.bf16.msra.mxu0 %v2892
    %2944 = vmatprep.subr.bf16.mxu0 %v2891
    %2945 = vmatpush2.bf16.msra.mxu0 %v2890
    %2946 = vmatprep.subr.bf16.mxu0 %v2889
    %2947 = vmatpush2.bf16.msra.mxu0 %v2888
    %2948 = vmatprep.subr.bf16.mxu0 %v2887
    %2949 = vmatpush2.bf16.msra.mxu0 %v2886
    %2950 = vmatprep.subr.bf16.mxu0 %v2885
    %2951 = vmatpush2.bf16.msra.mxu0 %v2884
    %2952 = vmatprep.subr.bf16.mxu0 %v2883
    %2953 = vmatpush2.bf16.msra.mxu0 %v2882
    %2954 = vmatprep.subr.bf16.mxu0 %v2881
    %2955 = vmatpush2.bf16.msra.mxu0 %v2880
    %2956 = vmatprep.subr.bf16.mxu0 %v2879
    %2957 = vmatpush2.bf16.msra.mxu0 %v2878
    %2958 = vmatprep.mubr.bf16.mxu0 %v2757
    %2959 = vmatmul.mubr.bf16.gmra.mxu0 %v2754
    %v2960 = vpop.f32.mrf.mxu0
    %v2961 = vadd.f32 0.0, %v2960
    %v2962 = vpop.f32.mrf.mxu0
    %v2963 = vadd.f32 0.0, %v2962
    %v2964 = vpop.f32.mrf.mxu0
    %v2965 = vadd.f32 0.0, %v2964
    %v2966 = vpop.f32.mrf.mxu0
    %v2967 = vadd.f32 0.0, %v2966
    %2968 = vmatprep.mubr.bf16.mxu0 %v2761
    %2969 = vmatmul.mubr.bf16.gmra.mxu0 %v2759
    %v2970 = vpop.f32.mrf.mxu0
    %v2971 = vadd.f32 0.0, %v2970
    %v2972 = vpop.f32.mrf.mxu0
    %v2973 = vadd.f32 0.0, %v2972
    %v2974 = vpop.f32.mrf.mxu0
    %v2975 = vadd.f32 0.0, %v2974
    %v2976 = vpop.f32.mrf.mxu0
    %v2977 = vadd.f32 0.0, %v2976
    %2978 = vdwg.mxu0
    %v2979 = vadd.f32 %v2689, %v2961
    %v2980 = vadd.f32 %v2691, %v2963
    %v2981 = vadd.f32 %v2693, %v2965
    %v2982 = vadd.f32 %v2695, %v2967
    %v2983 = vadd.f32 %v2699, %v2971
    %v2984 = vadd.f32 %v2701, %v2973
    %v2985 = vadd.f32 %v2703, %v2975
    %v2986 = vadd.f32 %v2705, %v2977
    %s2987 = scalar_lea.vmem [#allocation5], 4
    %v2988 = vld [vmem:[%s2987] ss:$8 sm:$0x3]
    %s2989 = scalar_lea.vmem [#allocation5], 5
    %v2990 = vld [vmem:[%s2989] ss:$8 sm:$0x3]
    %v2991 = vadd.f32 %v2979, %v2981
    %v2992 = vadd.f32 %v2991, %v2983
    %v2993 = vadd.f32 %v2992, %v2985
    %v2994 = vrot.slane %v2993, 4
    %v2995 = vadd.f32 %v2993, %v2994
    %v2996 = vrot.slane %v2995, 2
    %v2997 = vadd.f32 %v2995, %v2996
    %v2998 = vrot.slane %v2997, 1
    %v2999 = vadd.f32 %v2997, %v2998
    %v3000 = vadd.f32 %v2980, %v2982
    %v3001 = vadd.f32 %v3000, %v2984
    %v3002 = vadd.f32 %v3001, %v2986
    %v3003 = vrot.slane %v3002, 4
    %v3004 = vadd.f32 %v3002, %v3003
    %v3005 = vrot.slane %v3004, 2
    %v3006 = vadd.f32 %v3004, %v3005
    %v3007 = vrot.slane %v3006, 1
    %v3008 = vadd.f32 %v3006, %v3007
    %3009 = vrot.lane.b32.xlu0 %v2999, 16
    %v3010 = vpop.permute.xlu0 %3009
    %3011 = vrot.lane.b32.xlu0 %v3008, 16
    %v3012 = vpop.permute.xlu0 %3011
    %v3013 = vsel %vm928, %v3010, %v3012
    %v3014 = vsel %vm928, %v3012, %v3010
    %v3015 = vadd.f32 %v2999, %v3014
    %v3016 = vadd.f32 %v3008, %v3013
    %3017 = vrot.lane.b32.xlu0 %v3015, 32
    %v3018 = vpop.permute.xlu0 %3017
    %3019 = vrot.lane.b32.xlu0 %v3016, 32
    %v3020 = vpop.permute.xlu0 %3019
    %v3021 = vsel %vm937, %v3018, %v3020
    %v3022 = vsel %vm937, %v3020, %v3018
    %v3023 = vadd.f32 %v3015, %v3022
    %v3024 = vadd.f32 %v3016, %v3021
    %3025 = vrot.lane.b32.xlu0 %v3023, 64
    %v3026 = vpop.permute.xlu0 %3025
    %3027 = vrot.lane.b32.xlu0 %v3024, 64
    %v3028 = vpop.permute.xlu0 %3027
    %v3029 = vsel %vm946, %v3026, %v3028
    %v3030 = vsel %vm946, %v3028, %v3026
    %v3031 = vadd.f32 %v3023, %v3030
    %v3032 = vadd.f32 %v3024, %v3029
    %v3033 = vadd.f32 %v3031, %v3032
    %v3034 = vmul.f32 %v3033, 0.001953125
    %v3035 = vlaneseq
    %v3036 = vshrl.u32 %v3035, 7
    %v3037 = vsub.s32 0, %v3036
    %v3038 = vrot.slane %v3034, %v3037
    %v3039 = vsub.f32 %v2979, %v3038
    %v3040 = vsub.f32 %v2980, %v3038
    %v3041 = vsub.f32 %v2981, %v3038
    %v3042 = vsub.f32 %v2982, %v3038
    %v3043 = vsub.f32 %v2983, %v3038
    %v3044 = vsub.f32 %v2984, %v3038
    %v3045 = vsub.f32 %v2985, %v3038
    %v3046 = vsub.f32 %v2986, %v3038
    %v3047 = vmul.f32 %v3039, %v3039
    %v3048 = vmul.f32 %v3040, %v3040
    %v3049 = vmul.f32 %v3041, %v3041
    %v3050 = vmul.f32 %v3042, %v3042
    %v3051 = vmul.f32 %v3043, %v3043
    %v3052 = vmul.f32 %v3044, %v3044
    %v3053 = vmul.f32 %v3045, %v3045
    %v3054 = vmul.f32 %v3046, %v3046
    %v3055 = vadd.f32 %v3047, %v3049
    %v3056 = vadd.f32 %v3055, %v3051
    %v3057 = vadd.f32 %v3056, %v3053
    %v3058 = vrot.slane %v3057, 4
    %v3059 = vadd.f32 %v3057, %v3058
    %v3060 = vrot.slane %v3059, 2
    %v3061 = vadd.f32 %v3059, %v3060
    %v3062 = vrot.slane %v3061, 1
    %v3063 = vadd.f32 %v3061, %v3062
    %v3064 = vadd.f32 %v3048, %v3050
    %v3065 = vadd.f32 %v3064, %v3052
    %v3066 = vadd.f32 %v3065, %v3054
    %v3067 = vrot.slane %v3066, 4
    %v3068 = vadd.f32 %v3066, %v3067
    %v3069 = vrot.slane %v3068, 2
    %v3070 = vadd.f32 %v3068, %v3069
    %v3071 = vrot.slane %v3070, 1
    %v3072 = vadd.f32 %v3070, %v3071
    %3073 = vrot.lane.b32.xlu0 %v3063, 16
    %v3074 = vpop.permute.xlu0 %3073
    %3075 = vrot.lane.b32.xlu0 %v3072, 16
    %v3076 = vpop.permute.xlu0 %3075
    %v3077 = vsel %vm928, %v3074, %v3076
    %v3078 = vsel %vm928, %v3076, %v3074
    %v3079 = vadd.f32 %v3063, %v3078
    %v3080 = vadd.f32 %v3072, %v3077
    %3081 = vrot.lane.b32.xlu0 %v3079, 32
    %v3082 = vpop.permute.xlu0 %3081
    %3083 = vrot.lane.b32.xlu0 %v3080, 32
    %v3084 = vpop.permute.xlu0 %3083
    %v3085 = vsel %vm937, %v3082, %v3084
    %v3086 = vsel %vm937, %v3084, %v3082
    %v3087 = vadd.f32 %v3079, %v3086
    %v3088 = vadd.f32 %v3080, %v3085
    %3089 = vrot.lane.b32.xlu0 %v3087, 64
    %v3090 = vpop.permute.xlu0 %3089
    %3091 = vrot.lane.b32.xlu0 %v3088, 64
    %v3092 = vpop.permute.xlu0 %3091
    %v3093 = vsel %vm946, %v3090, %v3092
    %v3094 = vsel %vm946, %v3092, %v3090
    %v3095 = vadd.f32 %v3087, %v3094
    %v3096 = vadd.f32 %v3088, %v3093
    %v3097 = vadd.f32 %v3095, %v3096
    %v3098 = vmul.f32 %v3097, 0.001953125
    %v3099 = vadd.f32 %v3098, 1e-05
    %v3100 = vrsqrt.pop %v3099
    %v3102 = vcombine.low %v3100, %v3100
    %v3104 = vunpack.c.l.s4 1966171168
    %v3105 = vunpack.c.0.s8 %v3104
    %v3106 = vlaneseq
    %v3107 = vshrl.u32 %v3106, 7
    %v3108 = vsub.s32 %v3105, %v3107
    %v3109 = vrot.slane %v3102, %v3108
    %v3111 = vunpack.c.l.s4 1966171168
    %v3112 = vunpack.c.0.s8 %v3111
    %v3113 = vlaneseq
    %v3114 = vshrl.u32 %v3113, 7
    %v3115 = vsub.s32 %v3112, %v3114
    %v3116 = vrot.slane %v3109, %v3115
    %v3118 = vmul.f32 %v2988, %v3116
    %v3120 = vlaneseq
    %v3121 = vshrl.u32 %v3120, 7
    %v3122 = vsub.s32 0, %v3121
    %v3123 = vrot.slane %v3118, %v3122
    %v3124 = vlaneseq
    %v3125 = vshrl.u32 %v3124, 7
    %v3126 = vsub.s32 1, %v3125
    %v3127 = vrot.slane %v3118, %v3126
    %v3130 = vmul.f32 %v3039, %v3123
    %v3131 = vmul.f32 %v3040, %v3127
    %v3132 = vmul.f32 %v3041, %v3123
    %v3133 = vmul.f32 %v3042, %v3127
    %v3134 = vmul.f32 %v3043, %v3123
    %v3135 = vmul.f32 %v3044, %v3127
    %v3136 = vmul.f32 %v3045, %v3123
    %v3137 = vmul.f32 %v3046, %v3127
    %v3139 = vlaneseq
    %v3140 = vshrl.u32 %v3139, 7
    %v3141 = vsub.s32 0, %v3140
    %v3142 = vrot.slane %v2990, %v3141
    %v3143 = vlaneseq
    %v3144 = vshrl.u32 %v3143, 7
    %v3145 = vsub.s32 1, %v3144
    %v3146 = vrot.slane %v2990, %v3145
    %v3149 = vadd.f32 %v3130, %v3142
    %v3150 = vadd.f32 %v3131, %v3146
    %v3151 = vadd.f32 %v3132, %v3142
    %v3152 = vadd.f32 %v3133, %v3146
    %v3153 = vadd.f32 %v3134, %v3142
    %v3154 = vadd.f32 %v3135, %v3146
    %v3155 = vadd.f32 %v3136, %v3142
    %v3156 = vadd.f32 %v3137, %v3146
    %v3157 = vmax.f32 %v3149, 0.0
    %v3158 = vmax.f32 %v3150, 0.0
    %v3159 = vmax.f32 %v3151, 0.0
    %v3160 = vmax.f32 %v3152, 0.0
    %v3161 = vmax.f32 %v3153, 0.0
    %v3162 = vmax.f32 %v3154, 0.0
    %v3163 = vmax.f32 %v3155, 0.0
    %v3164 = vmax.f32 %v3156, 0.0
    %v3165 = vpack.c.bf16 %v3159, %v3157
    %v3166 = vpack.c.bf16 %v3160, %v3158
    %v3167 = vpack.c.bf16 %v3163, %v3161
    %v3168 = vpack.c.bf16 %v3164, %v3162
    %v3173 = vunpack.c.l.b16 %v3165
    %v3174 = vunpack.c.l.b16 %v3166
    %v3175 = vunpack.c.h.b16 %v3165
    %v3176 = vunpack.c.h.b16 %v3166
    %v3177 = vunpack.c.l.b16 %v3167
    %v3178 = vunpack.c.l.b16 %v3168
    %v3179 = vunpack.c.h.b16 %v3167
    %v3180 = vunpack.c.h.b16 %v3168
    %v3181 = vpack.c.b16 %v3174, %v3173
    %v3182 = vpack.c.b16 %v3176, %v3175
    %v3183 = vpack.c.b16 %v3178, %v3177
    %v3184 = vpack.c.b16 %v3180, %v3179
    %v3185 = vrot.slane %v3181, 7
    %v3186 = vrot.slane %v3185, 4
    %v3187 = vrot.slane %v3182, 7
    %v3188 = vsel %vm56, %v3186, %v3187
    %v3189 = vrot.slane %v3187, 4
    %v3190 = vrot.slane %v3183, 7
    %v3191 = vsel %vm56, %v3189, %v3190
    %v3192 = vrot.slane %v3190, 4
    %v3193 = vrot.slane %v3184, 7
    %v3194 = vsel %vm56, %v3192, %v3193
    %v3195 = vrot.slane %v3193, 4
    %3201 = vst [vmem:[#allocation2] sm:$0xee] %v3185
    %3202 = vst [vmem:[#allocation2 + $0x8] sm:$0xff] %v3188
    %3203 = vst [vmem:[#allocation2 + $0x10] sm:$0xff] %v3191
    %3204 = vst [vmem:[#allocation2 + $0x18] sm:$0xff] %v3194
    %3205 = vst [vmem:[#allocation2 + $0x20] sm:$0x11] %v3195
    %v3206 = vld [vmem:[#allocation2] sm:$0xff]
    %v3207 = vld [vmem:[#allocation2 + $0x8] sm:$0xff]
    %v3208 = vld [vmem:[#allocation2 + $0x10] sm:$0xff]
    %v3209 = vld [vmem:[#allocation2 + $0x18] sm:$0xff]
    %s3210 = scalar_lea.vmem [#allocation3], 2304
    %v3211 = vld [vmem:[%s3210] sm:$0xff]
    %v3212 = vld [vmem:[%s3210 + $0x8] sm:$0xff]
    %v3213 = vld [vmem:[%s3210 + $0x10] sm:$0xff]
    %v3214 = vld [vmem:[%s3210 + $0x18] sm:$0xff]
    %v3215 = vld [vmem:[%s3210 + $0x20] sm:$0xff]
    %v3216 = vld [vmem:[%s3210 + $0x28] sm:$0xff]
    %v3217 = vld [vmem:[%s3210 + $0x30] sm:$0xff]
    %v3218 = vld [vmem:[%s3210 + $0x38] sm:$0xff]
    %v3219 = vld [vmem:[%s3210 + $0x40] sm:$0xff]
    %v3220 = vld [vmem:[%s3210 + $0x48] sm:$0xff]
    %v3221 = vld [vmem:[%s3210 + $0x50] sm:$0xff]
    %v3222 = vld [vmem:[%s3210 + $0x58] sm:$0xff]
    %v3223 = vld [vmem:[%s3210 + $0x60] sm:$0xff]
    %v3224 = vld [vmem:[%s3210 + $0x68] sm:$0xff]
    %v3225 = vld [vmem:[%s3210 + $0x70] sm:$0xff]
    %v3226 = vld [vmem:[%s3210 + $0x78] sm:$0xff]
    %v3227 = vld [vmem:[%s3210 + $0x80] sm:$0xff]
    %v3228 = vld [vmem:[%s3210 + $0x88] sm:$0xff]
    %v3229 = vld [vmem:[%s3210 + $0x90] sm:$0xff]
    %v3230 = vld [vmem:[%s3210 + $0x98] sm:$0xff]
    %v3231 = vld [vmem:[%s3210 + $0xa0] sm:$0xff]
    %v3232 = vld [vmem:[%s3210 + $0xa8] sm:$0xff]
    %v3233 = vld [vmem:[%s3210 + $0xb0] sm:$0xff]
    %v3234 = vld [vmem:[%s3210 + $0xb8] sm:$0xff]
    %v3235 = vld [vmem:[%s3210 + $0xc0] sm:$0xff]
    %v3236 = vld [vmem:[%s3210 + $0xc8] sm:$0xff]
    %v3237 = vld [vmem:[%s3210 + $0xd0] sm:$0xff]
    %v3238 = vld [vmem:[%s3210 + $0xd8] sm:$0xff]
    %v3239 = vld [vmem:[%s3210 + $0xe0] sm:$0xff]
    %v3240 = vld [vmem:[%s3210 + $0xe8] sm:$0xff]
    %v3241 = vld [vmem:[%s3210 + $0xf0] sm:$0xff]
    %v3242 = vld [vmem:[%s3210 + $0xf8] sm:$0xff]
    %v3243 = vld [vmem:[#allocation2] sm:$0xee]
    %v3244 = vld [vmem:[#allocation2 + $0x20] sm:$0x11]
    %s3245 = scalar_lea.vmem [#allocation3], 2560
    %v3246 = vld [vmem:[%s3245] sm:$0xff]
    %v3247 = vld [vmem:[%s3245 + $0x8] sm:$0xff]
    %v3248 = vld [vmem:[%s3245 + $0x10] sm:$0xff]
    %v3249 = vld [vmem:[%s3245 + $0x18] sm:$0xff]
    %v3250 = vld [vmem:[%s3245 + $0x20] sm:$0xff]
    %v3251 = vld [vmem:[%s3245 + $0x28] sm:$0xff]
    %v3252 = vld [vmem:[%s3245 + $0x30] sm:$0xff]
    %v3253 = vld [vmem:[%s3245 + $0x38] sm:$0xff]
    %v3254 = vld [vmem:[%s3245 + $0x40] sm:$0xff]
    %v3255 = vld [vmem:[%s3245 + $0x48] sm:$0xff]
    %v3256 = vld [vmem:[%s3245 + $0x50] sm:$0xff]
    %v3257 = vld [vmem:[%s3245 + $0x58] sm:$0xff]
    %v3258 = vld [vmem:[%s3245 + $0x60] sm:$0xff]
    %v3259 = vld [vmem:[%s3245 + $0x68] sm:$0xff]
    %v3260 = vld [vmem:[%s3245 + $0x70] sm:$0xff]
    %v3261 = vld [vmem:[%s3245 + $0x78] sm:$0xff]
    %v3262 = vld [vmem:[%s3245 + $0x80] sm:$0xff]
    %v3263 = vld [vmem:[%s3245 + $0x88] sm:$0xff]
    %v3264 = vld [vmem:[%s3245 + $0x90] sm:$0xff]
    %v3265 = vld [vmem:[%s3245 + $0x98] sm:$0xff]
    %v3266 = vld [vmem:[%s3245 + $0xa0] sm:$0xff]
    %v3267 = vld [vmem:[%s3245 + $0xa8] sm:$0xff]
    %v3268 = vld [vmem:[%s3245 + $0xb0] sm:$0xff]
    %v3269 = vld [vmem:[%s3245 + $0xb8] sm:$0xff]
    %v3270 = vld [vmem:[%s3245 + $0xc0] sm:$0xff]
    %v3271 = vld [vmem:[%s3245 + $0xc8] sm:$0xff]
    %v3272 = vld [vmem:[%s3245 + $0xd0] sm:$0xff]
    %v3273 = vld [vmem:[%s3245 + $0xd8] sm:$0xff]
    %v3274 = vld [vmem:[%s3245 + $0xe0] sm:$0xff]
    %v3275 = vld [vmem:[%s3245 + $0xe8] sm:$0xff]
    %v3276 = vld [vmem:[%s3245 + $0xf0] sm:$0xff]
    %v3277 = vld [vmem:[%s3245 + $0xf8] sm:$0xff]
    %v3283 = vunpack.c.l.b16 %v3243
    %v3284 = vunpack.c.h.b16 %v3243
    %v3285 = vunpack.c.l.b16 %v3207
    %v3286 = vunpack.c.h.b16 %v3207
    %v3287 = vunpack.c.l.b16 %v3208
    %v3288 = vunpack.c.h.b16 %v3208
    %v3289 = vunpack.c.l.b16 %v3209
    %v3290 = vunpack.c.h.b16 %v3209
    %v3291 = vunpack.c.l.b16 %v3244
    %v3292 = vunpack.c.h.b16 %v3244
    %v3293 = vpack.c.b16 %v3285, %v3283
    %v3294 = vpack.c.b16 %v3286, %v3284
    %v3295 = vpack.c.b16 %v3289, %v3287
    %v3296 = vpack.c.b16 %v3290, %v3288
    %v3297 = vpack.c.b16 %v3291, %v3291
    %v3298 = vpack.c.b16 %v3292, %v3292
    %v3299 = vrot.slane %v3293, 1
    %v3300 = vrot.slane %v3295, 1
    %v3301 = vsel %vm170, %v3299, %v3300
    %v3302 = vrot.slane %v3294, 1
    %v3303 = vrot.slane %v3296, 1
    %v3304 = vsel %vm170, %v3302, %v3303
    %v3305 = vrot.slane %v3297, 1
    %v3306 = vsel %vm170, %v3300, %v3305
    %v3307 = vrot.slane %v3298, 1
    %v3308 = vsel %vm170, %v3303, %v3307
    %v3345 = vunpack.c.l.b16 %v3246
    %v3346 = vunpack.c.h.b16 %v3246
    %v3347 = vunpack.c.l.b16 %v3247
    %v3348 = vunpack.c.h.b16 %v3247
    %v3349 = vunpack.c.l.b16 %v3248
    %v3350 = vunpack.c.h.b16 %v3248
    %v3351 = vunpack.c.l.b16 %v3249
    %v3352 = vunpack.c.h.b16 %v3249
    %v3353 = vunpack.c.l.b16 %v3250
    %v3354 = vunpack.c.h.b16 %v3250
    %v3355 = vunpack.c.l.b16 %v3251
    %v3356 = vunpack.c.h.b16 %v3251
    %v3357 = vunpack.c.l.b16 %v3252
    %v3358 = vunpack.c.h.b16 %v3252
    %v3359 = vunpack.c.l.b16 %v3253
    %v3360 = vunpack.c.h.b16 %v3253
    %v3361 = vunpack.c.l.b16 %v3254
    %v3362 = vunpack.c.h.b16 %v3254
    %v3363 = vunpack.c.l.b16 %v3255
    %v3364 = vunpack.c.h.b16 %v3255
    %v3365 = vunpack.c.l.b16 %v3256
    %v3366 = vunpack.c.h.b16 %v3256
    %v3367 = vunpack.c.l.b16 %v3257
    %v3368 = vunpack.c.h.b16 %v3257
    %v3369 = vunpack.c.l.b16 %v3258
    %v3370 = vunpack.c.h.b16 %v3258
    %v3371 = vunpack.c.l.b16 %v3259
    %v3372 = vunpack.c.h.b16 %v3259
    %v3373 = vunpack.c.l.b16 %v3260
    %v3374 = vunpack.c.h.b16 %v3260
    %v3375 = vunpack.c.l.b16 %v3261
    %v3376 = vunpack.c.h.b16 %v3261
    %v3377 = vunpack.c.l.b16 %v3262
    %v3378 = vunpack.c.h.b16 %v3262
    %v3379 = vunpack.c.l.b16 %v3263
    %v3380 = vunpack.c.h.b16 %v3263
    %v3381 = vunpack.c.l.b16 %v3264
    %v3382 = vunpack.c.h.b16 %v3264
    %v3383 = vunpack.c.l.b16 %v3265
    %v3384 = vunpack.c.h.b16 %v3265
    %v3385 = vunpack.c.l.b16 %v3266
    %v3386 = vunpack.c.h.b16 %v3266
    %v3387 = vunpack.c.l.b16 %v3267
    %v3388 = vunpack.c.h.b16 %v3267
    %v3389 = vunpack.c.l.b16 %v3268
    %v3390 = vunpack.c.h.b16 %v3268
    %v3391 = vunpack.c.l.b16 %v3269
    %v3392 = vunpack.c.h.b16 %v3269
    %v3393 = vunpack.c.l.b16 %v3270
    %v3394 = vunpack.c.h.b16 %v3270
    %v3395 = vunpack.c.l.b16 %v3271
    %v3396 = vunpack.c.h.b16 %v3271
    %v3397 = vunpack.c.l.b16 %v3272
    %v3398 = vunpack.c.h.b16 %v3272
    %v3399 = vunpack.c.l.b16 %v3273
    %v3400 = vunpack.c.h.b16 %v3273
    %v3401 = vunpack.c.l.b16 %v3274
    %v3402 = vunpack.c.h.b16 %v3274
    %v3403 = vunpack.c.l.b16 %v3275
    %v3404 = vunpack.c.h.b16 %v3275
    %v3405 = vunpack.c.l.b16 %v3276
    %v3406 = vunpack.c.h.b16 %v3276
    %v3407 = vunpack.c.l.b16 %v3277
    %v3408 = vunpack.c.h.b16 %v3277
    %v3409 = vpack.c.b16 %v3347, %v3345
    %v3410 = vpack.c.b16 %v3348, %v3346
    %v3411 = vpack.c.b16 %v3351, %v3349
    %v3412 = vpack.c.b16 %v3352, %v3350
    %v3413 = vpack.c.b16 %v3355, %v3353
    %v3414 = vpack.c.b16 %v3356, %v3354
    %v3415 = vpack.c.b16 %v3359, %v3357
    %v3416 = vpack.c.b16 %v3360, %v3358
    %v3417 = vpack.c.b16 %v3363, %v3361
    %v3418 = vpack.c.b16 %v3364, %v3362
    %v3419 = vpack.c.b16 %v3367, %v3365
    %v3420 = vpack.c.b16 %v3368, %v3366
    %v3421 = vpack.c.b16 %v3371, %v3369
    %v3422 = vpack.c.b16 %v3372, %v3370
    %v3423 = vpack.c.b16 %v3375, %v3373
    %v3424 = vpack.c.b16 %v3376, %v3374
    %v3425 = vpack.c.b16 %v3379, %v3377
    %v3426 = vpack.c.b16 %v3380, %v3378
    %v3427 = vpack.c.b16 %v3383, %v3381
    %v3428 = vpack.c.b16 %v3384, %v3382
    %v3429 = vpack.c.b16 %v3387, %v3385
    %v3430 = vpack.c.b16 %v3388, %v3386
    %v3431 = vpack.c.b16 %v3391, %v3389
    %v3432 = vpack.c.b16 %v3392, %v3390
    %v3433 = vpack.c.b16 %v3395, %v3393
    %v3434 = vpack.c.b16 %v3396, %v3394
    %v3435 = vpack.c.b16 %v3399, %v3397
    %v3436 = vpack.c.b16 %v3400, %v3398
    %v3437 = vpack.c.b16 %v3403, %v3401
    %v3438 = vpack.c.b16 %v3404, %v3402
    %v3439 = vpack.c.b16 %v3407, %v3405
    %v3440 = vpack.c.b16 %v3408, %v3406
    %3473 = vmatprep.subr.bf16.mxu0 %v3424
    %3474 = vmatpush1.bf16.msra.mxu0 %v3423
    %3475 = vmatprep.subr.bf16.mxu0 %v3422
    %3476 = vmatpush1.bf16.msra.mxu0 %v3421
    %3477 = vmatprep.subr.bf16.mxu0 %v3420
    %3478 = vmatpush1.bf16.msra.mxu0 %v3419
    %3479 = vmatprep.subr.bf16.mxu0 %v3418
    %3480 = vmatpush1.bf16.msra.mxu0 %v3417
    %3481 = vmatprep.subr.bf16.mxu0 %v3416
    %3482 = vmatpush1.bf16.msra.mxu0 %v3415
    %3483 = vmatprep.subr.bf16.mxu0 %v3414
    %3484 = vmatpush1.bf16.msra.mxu0 %v3413
    %3485 = vmatprep.subr.bf16.mxu0 %v3412
    %3486 = vmatpush1.bf16.msra.mxu0 %v3411
    %3487 = vmatprep.subr.bf16.mxu0 %v3410
    %3488 = vmatpush1.bf16.msra.mxu0 %v3409
    %3489 = vmatprep.subr.bf16.mxu0 %v3440
    %3490 = vmatpush2.bf16.msra.mxu0 %v3439
    %3491 = vmatprep.subr.bf16.mxu0 %v3438
    %3492 = vmatpush2.bf16.msra.mxu0 %v3437
    %3493 = vmatprep.subr.bf16.mxu0 %v3436
    %3494 = vmatpush2.bf16.msra.mxu0 %v3435
    %3495 = vmatprep.subr.bf16.mxu0 %v3434
    %3496 = vmatpush2.bf16.msra.mxu0 %v3433
    %3497 = vmatprep.subr.bf16.mxu0 %v3432
    %3498 = vmatpush2.bf16.msra.mxu0 %v3431
    %3499 = vmatprep.subr.bf16.mxu0 %v3430
    %3500 = vmatpush2.bf16.msra.mxu0 %v3429
    %3501 = vmatprep.subr.bf16.mxu0 %v3428
    %3502 = vmatpush2.bf16.msra.mxu0 %v3427
    %3503 = vmatprep.subr.bf16.mxu0 %v3426
    %3504 = vmatpush2.bf16.msra.mxu0 %v3425
    %3505 = vmatprep.mubr.bf16.mxu0 %v3304
    %3506 = vmatmul.mubr.bf16.gmra.mxu0 %v3301
    %v3507 = vpop.f32.mrf.mxu0
    %v3508 = vadd.f32 0.0, %v3507
    %v3509 = vpop.f32.mrf.mxu0
    %v3510 = vadd.f32 0.0, %v3509
    %v3511 = vpop.f32.mrf.mxu0
    %v3512 = vadd.f32 0.0, %v3511
    %v3513 = vpop.f32.mrf.mxu0
    %v3514 = vadd.f32 0.0, %v3513
    %3515 = vmatprep.mubr.bf16.mxu0 %v3308
    %3516 = vmatmul.mubr.bf16.gmra.mxu0 %v3306
    %v3517 = vpop.f32.mrf.mxu0
    %v3518 = vadd.f32 0.0, %v3517
    %v3519 = vpop.f32.mrf.mxu0
    %v3520 = vadd.f32 0.0, %v3519
    %v3521 = vpop.f32.mrf.mxu0
    %v3522 = vadd.f32 0.0, %v3521
    %v3523 = vpop.f32.mrf.mxu0
    %v3524 = vadd.f32 0.0, %v3523
    %3525 = vdwg.mxu0
    %v3527 = vunpack.c.l.b16 %v3206
    %v3528 = vunpack.c.h.b16 %v3206
    %v3529 = vpack.c.b16 %v3285, %v3527
    %v3530 = vpack.c.b16 %v3286, %v3528
    %v3567 = vunpack.c.l.b16 %v3211
    %v3568 = vunpack.c.h.b16 %v3211
    %v3569 = vunpack.c.l.b16 %v3212
    %v3570 = vunpack.c.h.b16 %v3212
    %v3571 = vunpack.c.l.b16 %v3213
    %v3572 = vunpack.c.h.b16 %v3213
    %v3573 = vunpack.c.l.b16 %v3214
    %v3574 = vunpack.c.h.b16 %v3214
    %v3575 = vunpack.c.l.b16 %v3215
    %v3576 = vunpack.c.h.b16 %v3215
    %v3577 = vunpack.c.l.b16 %v3216
    %v3578 = vunpack.c.h.b16 %v3216
    %v3579 = vunpack.c.l.b16 %v3217
    %v3580 = vunpack.c.h.b16 %v3217
    %v3581 = vunpack.c.l.b16 %v3218
    %v3582 = vunpack.c.h.b16 %v3218
    %v3583 = vunpack.c.l.b16 %v3219
    %v3584 = vunpack.c.h.b16 %v3219
    %v3585 = vunpack.c.l.b16 %v3220
    %v3586 = vunpack.c.h.b16 %v3220
    %v3587 = vunpack.c.l.b16 %v3221
    %v3588 = vunpack.c.h.b16 %v3221
    %v3589 = vunpack.c.l.b16 %v3222
    %v3590 = vunpack.c.h.b16 %v3222
    %v3591 = vunpack.c.l.b16 %v3223
    %v3592 = vunpack.c.h.b16 %v3223
    %v3593 = vunpack.c.l.b16 %v3224
    %v3594 = vunpack.c.h.b16 %v3224
    %v3595 = vunpack.c.l.b16 %v3225
    %v3596 = vunpack.c.h.b16 %v3225
    %v3597 = vunpack.c.l.b16 %v3226
    %v3598 = vunpack.c.h.b16 %v3226
    %v3599 = vunpack.c.l.b16 %v3227
    %v3600 = vunpack.c.h.b16 %v3227
    %v3601 = vunpack.c.l.b16 %v3228
    %v3602 = vunpack.c.h.b16 %v3228
    %v3603 = vunpack.c.l.b16 %v3229
    %v3604 = vunpack.c.h.b16 %v3229
    %v3605 = vunpack.c.l.b16 %v3230
    %v3606 = vunpack.c.h.b16 %v3230
    %v3607 = vunpack.c.l.b16 %v3231
    %v3608 = vunpack.c.h.b16 %v3231
    %v3609 = vunpack.c.l.b16 %v3232
    %v3610 = vunpack.c.h.b16 %v3232
    %v3611 = vunpack.c.l.b16 %v3233
    %v3612 = vunpack.c.h.b16 %v3233
    %v3613 = vunpack.c.l.b16 %v3234
    %v3614 = vunpack.c.h.b16 %v3234
    %v3615 = vunpack.c.l.b16 %v3235
    %v3616 = vunpack.c.h.b16 %v3235
    %v3617 = vunpack.c.l.b16 %v3236
    %v3618 = vunpack.c.h.b16 %v3236
    %v3619 = vunpack.c.l.b16 %v3237
    %v3620 = vunpack.c.h.b16 %v3237
    %v3621 = vunpack.c.l.b16 %v3238
    %v3622 = vunpack.c.h.b16 %v3238
    %v3623 = vunpack.c.l.b16 %v3239
    %v3624 = vunpack.c.h.b16 %v3239
    %v3625 = vunpack.c.l.b16 %v3240
    %v3626 = vunpack.c.h.b16 %v3240
    %v3627 = vunpack.c.l.b16 %v3241
    %v3628 = vunpack.c.h.b16 %v3241
    %v3629 = vunpack.c.l.b16 %v3242
    %v3630 = vunpack.c.h.b16 %v3242
    %v3631 = vpack.c.b16 %v3569, %v3567
    %v3632 = vpack.c.b16 %v3570, %v3568
    %v3633 = vpack.c.b16 %v3573, %v3571
    %v3634 = vpack.c.b16 %v3574, %v3572
    %v3635 = vpack.c.b16 %v3577, %v3575
    %v3636 = vpack.c.b16 %v3578, %v3576
    %v3637 = vpack.c.b16 %v3581, %v3579
    %v3638 = vpack.c.b16 %v3582, %v3580
    %v3639 = vpack.c.b16 %v3585, %v3583
    %v3640 = vpack.c.b16 %v3586, %v3584
    %v3641 = vpack.c.b16 %v3589, %v3587
    %v3642 = vpack.c.b16 %v3590, %v3588
    %v3643 = vpack.c.b16 %v3593, %v3591
    %v3644 = vpack.c.b16 %v3594, %v3592
    %v3645 = vpack.c.b16 %v3597, %v3595
    %v3646 = vpack.c.b16 %v3598, %v3596
    %v3647 = vpack.c.b16 %v3601, %v3599
    %v3648 = vpack.c.b16 %v3602, %v3600
    %v3649 = vpack.c.b16 %v3605, %v3603
    %v3650 = vpack.c.b16 %v3606, %v3604
    %v3651 = vpack.c.b16 %v3609, %v3607
    %v3652 = vpack.c.b16 %v3610, %v3608
    %v3653 = vpack.c.b16 %v3613, %v3611
    %v3654 = vpack.c.b16 %v3614, %v3612
    %v3655 = vpack.c.b16 %v3617, %v3615
    %v3656 = vpack.c.b16 %v3618, %v3616
    %v3657 = vpack.c.b16 %v3621, %v3619
    %v3658 = vpack.c.b16 %v3622, %v3620
    %v3659 = vpack.c.b16 %v3625, %v3623
    %v3660 = vpack.c.b16 %v3626, %v3624
    %v3661 = vpack.c.b16 %v3629, %v3627
    %v3662 = vpack.c.b16 %v3630, %v3628
    %3695 = vmatprep.subr.bf16.mxu0 %v3646
    %3696 = vmatpush1.bf16.msra.mxu0 %v3645
    %3697 = vmatprep.subr.bf16.mxu0 %v3644
    %3698 = vmatpush1.bf16.msra.mxu0 %v3643
    %3699 = vmatprep.subr.bf16.mxu0 %v3642
    %3700 = vmatpush1.bf16.msra.mxu0 %v3641
    %3701 = vmatprep.subr.bf16.mxu0 %v3640
    %3702 = vmatpush1.bf16.msra.mxu0 %v3639
    %3703 = vmatprep.subr.bf16.mxu0 %v3638
    %3704 = vmatpush1.bf16.msra.mxu0 %v3637
    %3705 = vmatprep.subr.bf16.mxu0 %v3636
    %3706 = vmatpush1.bf16.msra.mxu0 %v3635
    %3707 = vmatprep.subr.bf16.mxu0 %v3634
    %3708 = vmatpush1.bf16.msra.mxu0 %v3633
    %3709 = vmatprep.subr.bf16.mxu0 %v3632
    %3710 = vmatpush1.bf16.msra.mxu0 %v3631
    %3711 = vmatprep.subr.bf16.mxu0 %v3662
    %3712 = vmatpush2.bf16.msra.mxu0 %v3661
    %3713 = vmatprep.subr.bf16.mxu0 %v3660
    %3714 = vmatpush2.bf16.msra.mxu0 %v3659
    %3715 = vmatprep.subr.bf16.mxu0 %v3658
    %3716 = vmatpush2.bf16.msra.mxu0 %v3657
    %3717 = vmatprep.subr.bf16.mxu0 %v3656
    %3718 = vmatpush2.bf16.msra.mxu0 %v3655
    %3719 = vmatprep.subr.bf16.mxu0 %v3654
    %3720 = vmatpush2.bf16.msra.mxu0 %v3653
    %3721 = vmatprep.subr.bf16.mxu0 %v3652
    %3722 = vmatpush2.bf16.msra.mxu0 %v3651
    %3723 = vmatprep.subr.bf16.mxu0 %v3650
    %3724 = vmatpush2.bf16.msra.mxu0 %v3649
    %3725 = vmatprep.subr.bf16.mxu0 %v3648
    %3726 = vmatpush2.bf16.msra.mxu0 %v3647
    %3727 = vmatprep.mubr.bf16.mxu0 %v3530
    %3728 = vmatmul.mubr.bf16.gmra.mxu0 %v3529
    %v3729 = vpop.f32.mrf.mxu0
    %v3730 = vadd.f32 %v3508, %v3729
    %v3731 = vpop.f32.mrf.mxu0
    %v3732 = vadd.f32 %v3510, %v3731
    %v3733 = vpop.f32.mrf.mxu0
    %v3734 = vadd.f32 %v3512, %v3733
    %v3735 = vpop.f32.mrf.mxu0
    %v3736 = vadd.f32 %v3514, %v3735
    %3737 = vmatprep.mubr.bf16.mxu0 %v3296
    %3738 = vmatmul.mubr.bf16.gmra.mxu0 %v3295
    %v3739 = vpop.f32.mrf.mxu0
    %v3740 = vadd.f32 %v3518, %v3739
    %v3741 = vpop.f32.mrf.mxu0
    %v3742 = vadd.f32 %v3520, %v3741
    %v3743 = vpop.f32.mrf.mxu0
    %v3744 = vadd.f32 %v3522, %v3743
    %v3745 = vpop.f32.mrf.mxu0
    %v3746 = vadd.f32 %v3524, %v3745
    %3747 = vdwg.mxu0
    %v3748 = vld [vmem:[#allocation2] sm:$0xcc]
    %v3749 = vld [vmem:[#allocation2 + $0x20] sm:$0x33]
    %s3750 = scalar_lea.vmem [#allocation3], 2816
    %v3751 = vld [vmem:[%s3750] sm:$0xff]
    %v3752 = vld [vmem:[%s3750 + $0x8] sm:$0xff]
    %v3753 = vld [vmem:[%s3750 + $0x10] sm:$0xff]
    %v3754 = vld [vmem:[%s3750 + $0x18] sm:$0xff]
    %v3755 = vld [vmem:[%s3750 + $0x20] sm:$0xff]
    %v3756 = vld [vmem:[%s3750 + $0x28] sm:$0xff]
    %v3757 = vld [vmem:[%s3750 + $0x30] sm:$0xff]
    %v3758 = vld [vmem:[%s3750 + $0x38] sm:$0xff]
    %v3759 = vld [vmem:[%s3750 + $0x40] sm:$0xff]
    %v3760 = vld [vmem:[%s3750 + $0x48] sm:$0xff]
    %v3761 = vld [vmem:[%s3750 + $0x50] sm:$0xff]
    %v3762 = vld [vmem:[%s3750 + $0x58] sm:$0xff]
    %v3763 = vld [vmem:[%s3750 + $0x60] sm:$0xff]
    %v3764 = vld [vmem:[%s3750 + $0x68] sm:$0xff]
    %v3765 = vld [vmem:[%s3750 + $0x70] sm:$0xff]
    %v3766 = vld [vmem:[%s3750 + $0x78] sm:$0xff]
    %v3767 = vld [vmem:[%s3750 + $0x80] sm:$0xff]
    %v3768 = vld [vmem:[%s3750 + $0x88] sm:$0xff]
    %v3769 = vld [vmem:[%s3750 + $0x90] sm:$0xff]
    %v3770 = vld [vmem:[%s3750 + $0x98] sm:$0xff]
    %v3771 = vld [vmem:[%s3750 + $0xa0] sm:$0xff]
    %v3772 = vld [vmem:[%s3750 + $0xa8] sm:$0xff]
    %v3773 = vld [vmem:[%s3750 + $0xb0] sm:$0xff]
    %v3774 = vld [vmem:[%s3750 + $0xb8] sm:$0xff]
    %v3775 = vld [vmem:[%s3750 + $0xc0] sm:$0xff]
    %v3776 = vld [vmem:[%s3750 + $0xc8] sm:$0xff]
    %v3777 = vld [vmem:[%s3750 + $0xd0] sm:$0xff]
    %v3778 = vld [vmem:[%s3750 + $0xd8] sm:$0xff]
    %v3779 = vld [vmem:[%s3750 + $0xe0] sm:$0xff]
    %v3780 = vld [vmem:[%s3750 + $0xe8] sm:$0xff]
    %v3781 = vld [vmem:[%s3750 + $0xf0] sm:$0xff]
    %v3782 = vld [vmem:[%s3750 + $0xf8] sm:$0xff]
    %v3785 = vunpack.c.l.b16 %v3748
    %v3786 = vunpack.c.h.b16 %v3748
    %v3787 = vunpack.c.l.b16 %v3749
    %v3788 = vunpack.c.h.b16 %v3749
    %v3789 = vpack.c.b16 %v3285, %v3785
    %v3790 = vpack.c.b16 %v3286, %v3786
    %v3791 = vpack.c.b16 %v3787, %v3787
    %v3792 = vpack.c.b16 %v3788, %v3788
    %v3793 = vrot.slane %v3789, 2
    %v3794 = vrot.slane %v3295, 2
    %v3795 = vsel %vm665, %v3793, %v3794
    %v3796 = vrot.slane %v3790, 2
    %v3797 = vrot.slane %v3296, 2
    %v3798 = vsel %vm665, %v3796, %v3797
    %v3799 = vrot.slane %v3791, 2
    %v3800 = vsel %vm665, %v3794, %v3799
    %v3801 = vrot.slane %v3792, 2
    %v3802 = vsel %vm665, %v3797, %v3801
    %v3839 = vunpack.c.l.b16 %v3751
    %v3840 = vunpack.c.h.b16 %v3751
    %v3841 = vunpack.c.l.b16 %v3752
    %v3842 = vunpack.c.h.b16 %v3752
    %v3843 = vunpack.c.l.b16 %v3753
    %v3844 = vunpack.c.h.b16 %v3753
    %v3845 = vunpack.c.l.b16 %v3754
    %v3846 = vunpack.c.h.b16 %v3754
    %v3847 = vunpack.c.l.b16 %v3755
    %v3848 = vunpack.c.h.b16 %v3755
    %v3849 = vunpack.c.l.b16 %v3756
    %v3850 = vunpack.c.h.b16 %v3756
    %v3851 = vunpack.c.l.b16 %v3757
    %v3852 = vunpack.c.h.b16 %v3757
    %v3853 = vunpack.c.l.b16 %v3758
    %v3854 = vunpack.c.h.b16 %v3758
    %v3855 = vunpack.c.l.b16 %v3759
    %v3856 = vunpack.c.h.b16 %v3759
    %v3857 = vunpack.c.l.b16 %v3760
    %v3858 = vunpack.c.h.b16 %v3760
    %v3859 = vunpack.c.l.b16 %v3761
    %v3860 = vunpack.c.h.b16 %v3761
    %v3861 = vunpack.c.l.b16 %v3762
    %v3862 = vunpack.c.h.b16 %v3762
    %v3863 = vunpack.c.l.b16 %v3763
    %v3864 = vunpack.c.h.b16 %v3763
    %v3865 = vunpack.c.l.b16 %v3764
    %v3866 = vunpack.c.h.b16 %v3764
    %v3867 = vunpack.c.l.b16 %v3765
    %v3868 = vunpack.c.h.b16 %v3765
    %v3869 = vunpack.c.l.b16 %v3766
    %v3870 = vunpack.c.h.b16 %v3766
    %v3871 = vunpack.c.l.b16 %v3767
    %v3872 = vunpack.c.h.b16 %v3767
    %v3873 = vunpack.c.l.b16 %v3768
    %v3874 = vunpack.c.h.b16 %v3768
    %v3875 = vunpack.c.l.b16 %v3769
    %v3876 = vunpack.c.h.b16 %v3769
    %v3877 = vunpack.c.l.b16 %v3770
    %v3878 = vunpack.c.h.b16 %v3770
    %v3879 = vunpack.c.l.b16 %v3771
    %v3880 = vunpack.c.h.b16 %v3771
    %v3881 = vunpack.c.l.b16 %v3772
    %v3882 = vunpack.c.h.b16 %v3772
    %v3883 = vunpack.c.l.b16 %v3773
    %v3884 = vunpack.c.h.b16 %v3773
    %v3885 = vunpack.c.l.b16 %v3774
    %v3886 = vunpack.c.h.b16 %v3774
    %v3887 = vunpack.c.l.b16 %v3775
    %v3888 = vunpack.c.h.b16 %v3775
    %v3889 = vunpack.c.l.b16 %v3776
    %v3890 = vunpack.c.h.b16 %v3776
    %v3891 = vunpack.c.l.b16 %v3777
    %v3892 = vunpack.c.h.b16 %v3777
    %v3893 = vunpack.c.l.b16 %v3778
    %v3894 = vunpack.c.h.b16 %v3778
    %v3895 = vunpack.c.l.b16 %v3779
    %v3896 = vunpack.c.h.b16 %v3779
    %v3897 = vunpack.c.l.b16 %v3780
    %v3898 = vunpack.c.h.b16 %v3780
    %v3899 = vunpack.c.l.b16 %v3781
    %v3900 = vunpack.c.h.b16 %v3781
    %v3901 = vunpack.c.l.b16 %v3782
    %v3902 = vunpack.c.h.b16 %v3782
    %v3903 = vpack.c.b16 %v3841, %v3839
    %v3904 = vpack.c.b16 %v3842, %v3840
    %v3905 = vpack.c.b16 %v3845, %v3843
    %v3906 = vpack.c.b16 %v3846, %v3844
    %v3907 = vpack.c.b16 %v3849, %v3847
    %v3908 = vpack.c.b16 %v3850, %v3848
    %v3909 = vpack.c.b16 %v3853, %v3851
    %v3910 = vpack.c.b16 %v3854, %v3852
    %v3911 = vpack.c.b16 %v3857, %v3855
    %v3912 = vpack.c.b16 %v3858, %v3856
    %v3913 = vpack.c.b16 %v3861, %v3859
    %v3914 = vpack.c.b16 %v3862, %v3860
    %v3915 = vpack.c.b16 %v3865, %v3863
    %v3916 = vpack.c.b16 %v3866, %v3864
    %v3917 = vpack.c.b16 %v3869, %v3867
    %v3918 = vpack.c.b16 %v3870, %v3868
    %v3919 = vpack.c.b16 %v3873, %v3871
    %v3920 = vpack.c.b16 %v3874, %v3872
    %v3921 = vpack.c.b16 %v3877, %v3875
    %v3922 = vpack.c.b16 %v3878, %v3876
    %v3923 = vpack.c.b16 %v3881, %v3879
    %v3924 = vpack.c.b16 %v3882, %v3880
    %v3925 = vpack.c.b16 %v3885, %v3883
    %v3926 = vpack.c.b16 %v3886, %v3884
    %v3927 = vpack.c.b16 %v3889, %v3887
    %v3928 = vpack.c.b16 %v3890, %v3888
    %v3929 = vpack.c.b16 %v3893, %v3891
    %v3930 = vpack.c.b16 %v3894, %v3892
    %v3931 = vpack.c.b16 %v3897, %v3895
    %v3932 = vpack.c.b16 %v3898, %v3896
    %v3933 = vpack.c.b16 %v3901, %v3899
    %v3934 = vpack.c.b16 %v3902, %v3900
    %3967 = vmatprep.subr.bf16.mxu0 %v3918
    %3968 = vmatpush1.bf16.msra.mxu0 %v3917
    %3969 = vmatprep.subr.bf16.mxu0 %v3916
    %3970 = vmatpush1.bf16.msra.mxu0 %v3915
    %3971 = vmatprep.subr.bf16.mxu0 %v3914
    %3972 = vmatpush1.bf16.msra.mxu0 %v3913
    %3973 = vmatprep.subr.bf16.mxu0 %v3912
    %3974 = vmatpush1.bf16.msra.mxu0 %v3911
    %3975 = vmatprep.subr.bf16.mxu0 %v3910
    %3976 = vmatpush1.bf16.msra.mxu0 %v3909
    %3977 = vmatprep.subr.bf16.mxu0 %v3908
    %3978 = vmatpush1.bf16.msra.mxu0 %v3907
    %3979 = vmatprep.subr.bf16.mxu0 %v3906
    %3980 = vmatpush1.bf16.msra.mxu0 %v3905
    %3981 = vmatprep.subr.bf16.mxu0 %v3904
    %3982 = vmatpush1.bf16.msra.mxu0 %v3903
    %3983 = vmatprep.subr.bf16.mxu0 %v3934
    %3984 = vmatpush2.bf16.msra.mxu0 %v3933
    %3985 = vmatprep.subr.bf16.mxu0 %v3932
    %3986 = vmatpush2.bf16.msra.mxu0 %v3931
    %3987 = vmatprep.subr.bf16.mxu0 %v3930
    %3988 = vmatpush2.bf16.msra.mxu0 %v3929
    %3989 = vmatprep.subr.bf16.mxu0 %v3928
    %3990 = vmatpush2.bf16.msra.mxu0 %v3927
    %3991 = vmatprep.subr.bf16.mxu0 %v3926
    %3992 = vmatpush2.bf16.msra.mxu0 %v3925
    %3993 = vmatprep.subr.bf16.mxu0 %v3924
    %3994 = vmatpush2.bf16.msra.mxu0 %v3923
    %3995 = vmatprep.subr.bf16.mxu0 %v3922
    %3996 = vmatpush2.bf16.msra.mxu0 %v3921
    %3997 = vmatprep.subr.bf16.mxu0 %v3920
    %3998 = vmatpush2.bf16.msra.mxu0 %v3919
    %3999 = vmatprep.mubr.bf16.mxu0 %v3798
    %4000 = vmatmul.mubr.bf16.gmra.mxu0 %v3795
    %v4001 = vpop.f32.mrf.mxu0
    %v4002 = vadd.f32 0.0, %v4001
    %v4003 = vpop.f32.mrf.mxu0
    %v4004 = vadd.f32 0.0, %v4003
    %v4005 = vpop.f32.mrf.mxu0
    %v4006 = vadd.f32 0.0, %v4005
    %v4007 = vpop.f32.mrf.mxu0
    %v4008 = vadd.f32 0.0, %v4007
    %4009 = vmatprep.mubr.bf16.mxu0 %v3802
    %4010 = vmatmul.mubr.bf16.gmra.mxu0 %v3800
    %v4011 = vpop.f32.mrf.mxu0
    %v4012 = vadd.f32 0.0, %v4011
    %v4013 = vpop.f32.mrf.mxu0
    %v4014 = vadd.f32 0.0, %v4013
    %v4015 = vpop.f32.mrf.mxu0
    %v4016 = vadd.f32 0.0, %v4015
    %v4017 = vpop.f32.mrf.mxu0
    %v4018 = vadd.f32 0.0, %v4017
    %4019 = vdwg.mxu0
    %v4020 = vadd.f32 %v3730, %v4002
    %v4021 = vadd.f32 %v3732, %v4004
    %v4022 = vadd.f32 %v3734, %v4006
    %v4023 = vadd.f32 %v3736, %v4008
    %v4024 = vadd.f32 %v3740, %v4012
    %v4025 = vadd.f32 %v3742, %v4014
    %v4026 = vadd.f32 %v3744, %v4016
    %v4027 = vadd.f32 %v3746, %v4018
    %s4028 = scalar_lea.vmem [#allocation5], 6
    %v4029 = vld [vmem:[%s4028] ss:$8 sm:$0x3]
    %s4030 = scalar_lea.vmem [#allocation5], 7
    %v4031 = vld [vmem:[%s4030] ss:$8 sm:$0x3]
    %v4032 = vadd.f32 %v4020, %v4022
    %v4033 = vadd.f32 %v4032, %v4024
    %v4034 = vadd.f32 %v4033, %v4026
    %v4035 = vrot.slane %v4034, 4
    %v4036 = vadd.f32 %v4034, %v4035
    %v4037 = vrot.slane %v4036, 2
    %v4038 = vadd.f32 %v4036, %v4037
    %v4039 = vrot.slane %v4038, 1
    %v4040 = vadd.f32 %v4038, %v4039
    %v4041 = vadd.f32 %v4021, %v4023
    %v4042 = vadd.f32 %v4041, %v4025
    %v4043 = vadd.f32 %v4042, %v4027
    %v4044 = vrot.slane %v4043, 4
    %v4045 = vadd.f32 %v4043, %v4044
    %v4046 = vrot.slane %v4045, 2
    %v4047 = vadd.f32 %v4045, %v4046
    %v4048 = vrot.slane %v4047, 1
    %v4049 = vadd.f32 %v4047, %v4048
    %4050 = vrot.lane.b32.xlu0 %v4040, 16
    %v4051 = vpop.permute.xlu0 %4050
    %4052 = vrot.lane.b32.xlu0 %v4049, 16
    %v4053 = vpop.permute.xlu0 %4052
    %v4054 = vsel %vm928, %v4051, %v4053
    %v4055 = vsel %vm928, %v4053, %v4051
    %v4056 = vadd.f32 %v4040, %v4055
    %v4057 = vadd.f32 %v4049, %v4054
    %4058 = vrot.lane.b32.xlu0 %v4056, 32
    %v4059 = vpop.permute.xlu0 %4058
    %4060 = vrot.lane.b32.xlu0 %v4057, 32
    %v4061 = vpop.permute.xlu0 %4060
    %v4062 = vsel %vm937, %v4059, %v4061
    %v4063 = vsel %vm937, %v4061, %v4059
    %v4064 = vadd.f32 %v4056, %v4063
    %v4065 = vadd.f32 %v4057, %v4062
    %4066 = vrot.lane.b32.xlu0 %v4064, 64
    %v4067 = vpop.permute.xlu0 %4066
    %4068 = vrot.lane.b32.xlu0 %v4065, 64
    %v4069 = vpop.permute.xlu0 %4068
    %v4070 = vsel %vm946, %v4067, %v4069
    %v4071 = vsel %vm946, %v4069, %v4067
    %v4072 = vadd.f32 %v4064, %v4071
    %v4073 = vadd.f32 %v4065, %v4070
    %v4074 = vadd.f32 %v4072, %v4073
    %v4075 = vmul.f32 %v4074, 0.001953125
    %v4076 = vlaneseq
    %v4077 = vshrl.u32 %v4076, 7
    %v4078 = vsub.s32 0, %v4077
    %v4079 = vrot.slane %v4075, %v4078
    %v4080 = vsub.f32 %v4020, %v4079
    %v4081 = vsub.f32 %v4021, %v4079
    %v4082 = vsub.f32 %v4022, %v4079
    %v4083 = vsub.f32 %v4023, %v4079
    %v4084 = vsub.f32 %v4024, %v4079
    %v4085 = vsub.f32 %v4025, %v4079
    %v4086 = vsub.f32 %v4026, %v4079
    %v4087 = vsub.f32 %v4027, %v4079
    %v4088 = vmul.f32 %v4080, %v4080
    %v4089 = vmul.f32 %v4081, %v4081
    %v4090 = vmul.f32 %v4082, %v4082
    %v4091 = vmul.f32 %v4083, %v4083
    %v4092 = vmul.f32 %v4084, %v4084
    %v4093 = vmul.f32 %v4085, %v4085
    %v4094 = vmul.f32 %v4086, %v4086
    %v4095 = vmul.f32 %v4087, %v4087
    %v4096 = vadd.f32 %v4088, %v4090
    %v4097 = vadd.f32 %v4096, %v4092
    %v4098 = vadd.f32 %v4097, %v4094
    %v4099 = vrot.slane %v4098, 4
    %v4100 = vadd.f32 %v4098, %v4099
    %v4101 = vrot.slane %v4100, 2
    %v4102 = vadd.f32 %v4100, %v4101
    %v4103 = vrot.slane %v4102, 1
    %v4104 = vadd.f32 %v4102, %v4103
    %v4105 = vadd.f32 %v4089, %v4091
    %v4106 = vadd.f32 %v4105, %v4093
    %v4107 = vadd.f32 %v4106, %v4095
    %v4108 = vrot.slane %v4107, 4
    %v4109 = vadd.f32 %v4107, %v4108
    %v4110 = vrot.slane %v4109, 2
    %v4111 = vadd.f32 %v4109, %v4110
    %v4112 = vrot.slane %v4111, 1
    %v4113 = vadd.f32 %v4111, %v4112
    %4114 = vrot.lane.b32.xlu0 %v4104, 16
    %v4115 = vpop.permute.xlu0 %4114
    %4116 = vrot.lane.b32.xlu0 %v4113, 16
    %v4117 = vpop.permute.xlu0 %4116
    %v4118 = vsel %vm928, %v4115, %v4117
    %v4119 = vsel %vm928, %v4117, %v4115
    %v4120 = vadd.f32 %v4104, %v4119
    %v4121 = vadd.f32 %v4113, %v4118
    %4122 = vrot.lane.b32.xlu0 %v4120, 32
    %v4123 = vpop.permute.xlu0 %4122
    %4124 = vrot.lane.b32.xlu0 %v4121, 32
    %v4125 = vpop.permute.xlu0 %4124
    %v4126 = vsel %vm937, %v4123, %v4125
    %v4127 = vsel %vm937, %v4125, %v4123
    %v4128 = vadd.f32 %v4120, %v4127
    %v4129 = vadd.f32 %v4121, %v4126
    %4130 = vrot.lane.b32.xlu0 %v4128, 64
    %v4131 = vpop.permute.xlu0 %4130
    %4132 = vrot.lane.b32.xlu0 %v4129, 64
    %v4133 = vpop.permute.xlu0 %4132
    %v4134 = vsel %vm946, %v4131, %v4133
    %v4135 = vsel %vm946, %v4133, %v4131
    %v4136 = vadd.f32 %v4128, %v4135
    %v4137 = vadd.f32 %v4129, %v4134
    %v4138 = vadd.f32 %v4136, %v4137
    %v4139 = vmul.f32 %v4138, 0.001953125
    %v4140 = vadd.f32 %v4139, 1e-05
    %v4141 = vrsqrt.pop %v4140
    %v4143 = vcombine.low %v4141, %v4141
    %v4145 = vunpack.c.l.s4 1966171168
    %v4146 = vunpack.c.0.s8 %v4145
    %v4147 = vlaneseq
    %v4148 = vshrl.u32 %v4147, 7
    %v4149 = vsub.s32 %v4146, %v4148
    %v4150 = vrot.slane %v4143, %v4149
    %v4152 = vunpack.c.l.s4 1966171168
    %v4153 = vunpack.c.0.s8 %v4152
    %v4154 = vlaneseq
    %v4155 = vshrl.u32 %v4154, 7
    %v4156 = vsub.s32 %v4153, %v4155
    %v4157 = vrot.slane %v4150, %v4156
    %v4159 = vmul.f32 %v4029, %v4157
    %v4161 = vlaneseq
    %v4162 = vshrl.u32 %v4161, 7
    %v4163 = vsub.s32 0, %v4162
    %v4164 = vrot.slane %v4159, %v4163
    %v4165 = vlaneseq
    %v4166 = vshrl.u32 %v4165, 7
    %v4167 = vsub.s32 1, %v4166
    %v4168 = vrot.slane %v4159, %v4167
    %v4171 = vmul.f32 %v4080, %v4164
    %v4172 = vmul.f32 %v4081, %v4168
    %v4173 = vmul.f32 %v4082, %v4164
    %v4174 = vmul.f32 %v4083, %v4168
    %v4175 = vmul.f32 %v4084, %v4164
    %v4176 = vmul.f32 %v4085, %v4168
    %v4177 = vmul.f32 %v4086, %v4164
    %v4178 = vmul.f32 %v4087, %v4168
    %v4180 = vlaneseq
    %v4181 = vshrl.u32 %v4180, 7
    %v4182 = vsub.s32 0, %v4181
    %v4183 = vrot.slane %v4031, %v4182
    %v4184 = vlaneseq
    %v4185 = vshrl.u32 %v4184, 7
    %v4186 = vsub.s32 1, %v4185
    %v4187 = vrot.slane %v4031, %v4186
    %v4190 = vadd.f32 %v4171, %v4183
    %v4191 = vadd.f32 %v4172, %v4187
    %v4192 = vadd.f32 %v4173, %v4183
    %v4193 = vadd.f32 %v4174, %v4187
    %v4194 = vadd.f32 %v4175, %v4183
    %v4195 = vadd.f32 %v4176, %v4187
    %v4196 = vadd.f32 %v4177, %v4183
    %v4197 = vadd.f32 %v4178, %v4187
    %v4198 = vadd.f32 %v4190, %v2116
    %v4199 = vadd.f32 %v4191, %v2117
    %v4200 = vadd.f32 %v4192, %v2118
    %v4201 = vadd.f32 %v4193, %v2119
    %v4202 = vadd.f32 %v4194, %v2120
    %v4203 = vadd.f32 %v4195, %v2121
    %v4204 = vadd.f32 %v4196, %v2122
    %v4205 = vadd.f32 %v4197, %v2123
    %v4206 = vmax.f32 %v4198, 0.0
    %v4207 = vmax.f32 %v4199, 0.0
    %v4208 = vmax.f32 %v4200, 0.0
    %v4209 = vmax.f32 %v4201, 0.0
    %v4210 = vmax.f32 %v4202, 0.0
    %v4211 = vmax.f32 %v4203, 0.0
    %v4212 = vmax.f32 %v4204, 0.0
    %v4213 = vmax.f32 %v4205, 0.0
    %4214 = vst [vmem:[%s3] sm:$0xff] %v4206
    %4215 = vst [vmem:[%s3 + $0x8] sm:$0xff] %v4207
    %4216 = vst [vmem:[%s3 + $0x10] sm:$0xff] %v4208
    %4217 = vst [vmem:[%s3 + $0x18] sm:$0xff] %v4209
    %4218 = vst [vmem:[%s3 + $0x20] sm:$0xff] %v4210
    %4219 = vst [vmem:[%s3 + $0x28] sm:$0xff] %v4211
    %4220 = vst [vmem:[%s3 + $0x30] sm:$0xff] %v4212
    %4221 = vst [vmem:[%s3 + $0x38] sm:$0xff] %v4213
    // Predicated region
    $region22: #{resnet20_split_05_forward.1} parent=1 // pred_check
      _
    $region23: #{resnet20_split_05_forward.1} parent=1 // pred_check_branch
      %4223 = sbr.rel (0) target = $region25
    $region24: #{resnet20_split_05_forward.1} parent=1 // pred_region
      _
    $region25: #{resnet20_split_05_forward.1} parent=1 // pred_fallthru
      _
    // Predicated region
    $region26: #{resnet20_split_05_forward.1} parent=1 // pred_check
      _
    $region27: #{resnet20_split_05_forward.1} parent=1 // pred_check_branch
      %4225 = sbr.rel (0) target = $region29
    $region28: #{resnet20_split_05_forward.1} parent=1 // pred_region
      _
    $region29: #{resnet20_split_05_forward.1} parent=1 // pred_fallthru
      _
    %4226 = vsyncpa [#allocation4], 1
    %4227 = vsyncpa [#allocation6], 1

</llo_original>
